<compile_context>
chip_gen: v7x
topology: tpu7x:2x2x1
jax: 0.10.0
libtpu: 0.0.40
codegen_flags: <defaults>
</compile_context>

<pallas_src>
import math

import jax
import jax.numpy as jnp
from jax import lax
from jax.experimental import pallas as pl
from jax.experimental.pallas import tpu as pltpu

EMBED_DIM = 32          # embed_dim
N_HEADS = 4             # n_heads
EXPANSION = 4           # expansion_factor
NUM_LAYERS = 2          # num_layers
HEAD_DIM = EMBED_DIM // N_HEADS
HIDDEN = EMBED_DIM * EXPANSION
LN_EPS = 1e-5


def _layer_norm(x, gamma, beta):
    mean = jnp.mean(x, axis=-1, keepdims=True)
    var = jnp.mean((x - mean) ** 2, axis=-1, keepdims=True)
    inv = lax.rsqrt(var + LN_EPS)
    return (x - mean) * inv * gamma + beta


# --------------------------------- kernel -----------------------------------
def _make_kernel(n_batch, seq):
    """Build a kernel processing n_batch batch elements (n_batch*seq rows)."""

    def kernel(x_ref, wqkv_ref, wo_ref, w1_ref, w2_ref, vec_ref, bf1_ref, o_ref):
        x = x_ref[...]                                      # (R, E), R = n_batch*seq

        for l in range(NUM_LAYERS):                         # static layer loop
            wqkv = wqkv_ref[l]                              # (E, 3E), Q pre-scaled
            wo = wo_ref[l]                                  # (E, E)
            vec = vec_ref[l]                                # (6, E) packed vectors
            bo, g1, be1, bf2, g2, be2 = (vec[i:i + 1, :] for i in range(6))
            bf1 = bf1_ref[l]                                # (1, HIDDEN)

            # ---- multi-head self-attention ---------------------------------
            # Fused Q/K/V projection for every batch row at once.
            qkv = jnp.dot(x, wqkv, preferred_element_type=jnp.float32)  # (R, 3E)

            # attn_out + residual + output-bias accumulated in registers.
            acc = x + bo
            for h in range(N_HEADS):                        # static head loop
                c = h * HEAD_DIM
                ctx_rows = []
                for b in range(n_batch):                    # static per-element loop
                    r0 = b * seq
                    qh = qkv[r0:r0 + seq, c:c + HEAD_DIM]                        # (S, d)
                    kh = qkv[r0:r0 + seq, EMBED_DIM + c:EMBED_DIM + c + HEAD_DIM]
                    vh = qkv[r0:r0 + seq,
                             2 * EMBED_DIM + c:2 * EMBED_DIM + c + HEAD_DIM]

                    # q @ k^T without materializing a transpose of kh.
                    s = lax.dot_general(
                        qh, kh,
                        dimension_numbers=(((1,), (1,)), ((), ())),
                        preferred_element_type=jnp.float32)                      # (S, S)
                    s = s - jnp.max(s, axis=-1, keepdims=True)
                    p = jnp.exp(s)
                    p = p / jnp.sum(p, axis=-1, keepdims=True)   # exact softmax norm
                    ctx_rows.append(
                        jnp.dot(p, vh, preferred_element_type=jnp.float32))      # (S, d)

                ctx_h = (ctx_rows[0] if n_batch == 1
                         else jnp.concatenate(ctx_rows, axis=0))                 # (R, d)
                # One Wo matmul per head for ALL rows (sublane-aligned row slice).
                acc = acc + jnp.dot(ctx_h, wo[c:c + HEAD_DIM, :],
                                    preferred_element_type=jnp.float32)

            # residual + LayerNorm 1 (dropout1 is identity at inference)
            h1 = _layer_norm(acc, g1, be1)

            # ---- FFN: Linear(E->4E) -> ReLU -> Linear(4E->E) ----------------
            ff = jnp.dot(h1, w1_ref[l], preferred_element_type=jnp.float32) + bf1
            ff = jnp.maximum(ff, 0.0)
            ff = jnp.dot(ff, w2_ref[l], preferred_element_type=jnp.float32) + bf2

            # residual + LayerNorm 2 (dropout2 is identity at inference)
            x = _layer_norm(ff + h1, g2, be2)

        o_ref[...] = x

    return kernel


# ---------------------------- wrapper / packing ------------------------------
def _pack_params(layers):
    """Stack per-layer weights along a leading layer axis.

    Builds the fused, pre-scaled block-diagonal QKV weight (E, 3E) per layer
    and packs the six (1, E) bias/LN vectors into a single (6, E) slab.
    """
    eye = jnp.eye(N_HEADS, dtype=jnp.float32)
    scale = 1.0 / math.sqrt(HEAD_DIM)

    wqkv, wo, w1, w2, vec, bf1 = [], [], [], [], [], []
    for p in layers:
        wq_bd = jnp.kron(eye, p["wq"]) * scale          # 1/sqrt(d) folded into Q
        wk_bd = jnp.kron(eye, p["wk"])
        wv_bd = jnp.kron(eye, p["wv"])
        wqkv.append(jnp.concatenate([wq_bd, wk_bd, wv_bd], axis=1))   # (E, 3E)
        wo.append(p["wo"])
        w1.append(p["w1"])
        w2.append(p["w2"])
        vec.append(jnp.concatenate(
            [p["bo"], p["g1"], p["be1"], p["bf2"], p["g2"], p["be2"]], axis=0))
        bf1.append(p["bf1"])

    stack = lambda xs: jnp.stack(xs, axis=0)
    return stack(wqkv), stack(wo), stack(w1), stack(w2), stack(vec), stack(bf1)


def _full_spec(shape):
    nd = len(shape)
    return pl.BlockSpec(shape, lambda g, _nd=nd: (0,) * _nd)


def _num_batch_blocks(B):
    """One grid step (whole batch) on single-TC chips; two on dual-TC v7x."""
    try:
        kind = jax.devices()[0].device_kind.lower()
    except Exception:
        kind = ""
    if "v7" in kind and B % 2 == 0:
        return 2
    return 1


def sat_forward(x, layers, batch_blocks=None):
    """Single fused pallas_call for the whole SAT stack."""
    B, S, E = x.shape
    packed = _pack_params(layers)

    nblk = _num_batch_blocks(B) if batch_blocks is None else batch_blocks
    assert B % nblk == 0, "batch must divide the number of grid steps"
    bb = B // nblk                 # batch elements per grid step
    rows = bb * S                  # activation rows per grid step

    xf = x.reshape(B * S, E)       # flatten batch into the matmul M dimension
    kernel = _make_kernel(bb, S)

    in_specs = ([pl.BlockSpec((rows, E), lambda g: (g, 0))]
                + [_full_spec(w.shape) for w in packed])

    out = pl.pallas_call(
        kernel,
        out_shape=jax.ShapeDtypeStruct((B * S, E), jnp.float32),
        grid_spec=pltpu.PrefetchScalarGridSpec(
            num_scalar_prefetch=0,
            grid=(nblk,),
            in_specs=in_specs,
            out_specs=pl.BlockSpec((rows, E), lambda g: (g, 0)),
        ),
        compiler_params=pltpu.CompilerParams(
            dimension_semantics=("parallel",)),   # megacore on v7x; no-op elsewhere
    )(xf, *packed)
    return out.reshape(B, S, E)


# ----------------------- deterministic parameter init -----------------------
def init_params(key):
    layers = []
    for i in range(NUM_LAYERS):
        ks = jax.random.split(jax.random.fold_in(key, i), 8)

        def lin(k, fan_in, shape):
            return jax.random.normal(k, shape, jnp.float32) / jnp.sqrt(
                jnp.float32(fan_in))

        layers.append(dict(
            wq=lin(ks[0], HEAD_DIM, (HEAD_DIM, HEAD_DIM)),
            wk=lin(ks[1], HEAD_DIM, (HEAD_DIM, HEAD_DIM)),
            wv=lin(ks[2], HEAD_DIM, (HEAD_DIM, HEAD_DIM)),
            wo=lin(ks[3], EMBED_DIM, (EMBED_DIM, EMBED_DIM)),
            bo=jnp.zeros((1, EMBED_DIM), jnp.float32),
            g1=jnp.ones((1, EMBED_DIM), jnp.float32),
            be1=jnp.zeros((1, EMBED_DIM), jnp.float32),
            w1=lin(ks[4], EMBED_DIM, (EMBED_DIM, HIDDEN)),
            bf1=lin(ks[5], EMBED_DIM, (1, HIDDEN)),
            w2=lin(ks[6], HIDDEN, (HIDDEN, EMBED_DIM)),
            bf2=lin(ks[7], HIDDEN, (1, EMBED_DIM)),
            g2=jnp.ones((1, EMBED_DIM), jnp.float32),
            be2=jnp.zeros((1, EMBED_DIM), jnp.float32),
        ))
    return layers


# ------------------------- pure-JAX reference (check) -----------------------
def sat_reference(x, layers):
    for p in layers:
        B, S, E = x.shape
        xh = x.reshape(B, S, N_HEADS, HEAD_DIM)
        q = jnp.einsum("bshd,de->bshe", xh, p["wq"])
        k = jnp.einsum("bshd,de->bshe", xh, p["wk"])
        v = jnp.einsum("bshd,de->bshe", xh, p["wv"])
        scores = jnp.einsum("bqhd,bkhd->bhqk", q, k) / (HEAD_DIM ** 0.5)
        att = jax.nn.softmax(scores, axis=-1)
        ctx = jnp.einsum("bhqk,bkhd->bqhd", att, v).reshape(B, S, E)
        attn_out = ctx @ p["wo"] + p["bo"][0]

        h1 = _layer_norm(attn_out + x, p["g1"][0], p["be1"][0])
        ff = jnp.maximum(h1 @ p["w1"] + p["bf1"][0], 0.0)
        ff = ff @ p["w2"] + p["bf2"][0]
        x = _layer_norm(ff + h1, p["g2"][0], p["be2"][0])
    return x


if __name__ == "__main__":
    key = jax.random.PRNGKey(0)
    kx, kp = jax.random.split(key)

    B, S = 2, 8
    x = jax.random.normal(kx, (B, S, EMBED_DIM), jnp.float32)
    layers = init_params(kp)

    out = sat_forward(x, layers)
    out = jax.block_until_ready(out)

    ref = sat_reference(x, layers)
    assert out.shape == (B, S, EMBED_DIM)
    # Exact softmax normalization now; tolerance only covers f32 matmul
    # accumulation-order / MXU multi-pass differences (typically ~1e-6).
    assert jnp.allclose(out, ref, atol=1e-3, rtol=1e-3), "kernel != reference"

    print("KERNEL_OK")
</pallas_src>

<mosaic_0001>
module attributes {stable_mosaic.version = 11 : i64} {
  func.func @kernel(%arg0: i32, %arg1: memref<16x32xf32, #tpu.memory_space<vmem>>, %arg2: memref<2x32x96xf32, #tpu.memory_space<vmem>>, %arg3: memref<2x32x32xf32, #tpu.memory_space<vmem>>, %arg4: memref<2x32x128xf32, #tpu.memory_space<vmem>>, %arg5: memref<2x128x32xf32, #tpu.memory_space<vmem>>, %arg6: memref<2x6x32xf32, #tpu.memory_space<vmem>>, %arg7: memref<2x1x128xf32, #tpu.memory_space<vmem>>, %arg8: memref<16x32xf32, #tpu.memory_space<vmem>>) attributes {dimension_semantics = [#tpu.dimension_semantics<parallel>], iteration_bounds = array<i64: 1>, scalar_prefetch = 0 : i64, scratch_operands = 0 : i64, tpu.core_type = #tpu.core_type<tc>, window_params = [{transform_indices = @transform_0, window_bounds = array<i64: 16, 32>}, {pipeline_mode = #tpu.pipeline_mode<synchronous>, transform_indices = @transform_1, window_bounds = array<i64: 2, 32, 96>}, {pipeline_mode = #tpu.pipeline_mode<synchronous>, transform_indices = @transform_2, window_bounds = array<i64: 2, 32, 32>}, {pipeline_mode = #tpu.pipeline_mode<synchronous>, transform_indices = @transform_3, window_bounds = array<i64: 2, 32, 128>}, {pipeline_mode = #tpu.pipeline_mode<synchronous>, transform_indices = @transform_4, window_bounds = array<i64: 2, 128, 32>}, {pipeline_mode = #tpu.pipeline_mode<synchronous>, transform_indices = @transform_5, window_bounds = array<i64: 2, 6, 32>}, {pipeline_mode = #tpu.pipeline_mode<synchronous>, transform_indices = @transform_6, window_bounds = array<i64: 2, 1, 128>}, {transform_indices = @transform_7, window_bounds = array<i64: 16, 32>}]} {
    %c0 = arith.constant 0 : index
    %c0_0 = arith.constant 0 : index
    %0 = vector.load %arg1[%c0, %c0_0] : memref<16x32xf32, #tpu.memory_space<vmem>>, vector<16x32xf32>
    %c0_1 = arith.constant 0 : index
    %c0_2 = arith.constant 0 : index
    %c0_3 = arith.constant 0 : index
    %1 = vector.load %arg2[%c0_1, %c0_2, %c0_3] : memref<2x32x96xf32, #tpu.memory_space<vmem>>, vector<1x32x96xf32>
    %2 = vector.shape_cast %1 : vector<1x32x96xf32> to vector<32x96xf32>
    %c0_4 = arith.constant 0 : index
    %c0_5 = arith.constant 0 : index
    %c0_6 = arith.constant 0 : index
    %3 = vector.load %arg3[%c0_4, %c0_5, %c0_6] : memref<2x32x32xf32, #tpu.memory_space<vmem>>, vector<1x32x32xf32>
    %4 = vector.shape_cast %3 : vector<1x32x32xf32> to vector<32x32xf32>
    %c0_7 = arith.constant 0 : index
    %c0_8 = arith.constant 0 : index
    %c0_9 = arith.constant 0 : index
    %5 = vector.load %arg6[%c0_7, %c0_8, %c0_9] : memref<2x6x32xf32, #tpu.memory_space<vmem>>, vector<1x6x32xf32>
    %6 = vector.shape_cast %5 : vector<1x6x32xf32> to vector<6x32xf32>
    %7 = vector.extract_strided_slice %6 {offsets = [0, 0], sizes = [1, 32], strides = [1, 1]} : vector<6x32xf32> to vector<1x32xf32>
    %8 = vector.extract_strided_slice %6 {offsets = [1, 0], sizes = [1, 32], strides = [1, 1]} : vector<6x32xf32> to vector<1x32xf32>
    %9 = vector.extract_strided_slice %6 {offsets = [2, 0], sizes = [1, 32], strides = [1, 1]} : vector<6x32xf32> to vector<1x32xf32>
    %10 = vector.extract_strided_slice %6 {offsets = [3, 0], sizes = [1, 32], strides = [1, 1]} : vector<6x32xf32> to vector<1x32xf32>
    %11 = vector.extract_strided_slice %6 {offsets = [4, 0], sizes = [1, 32], strides = [1, 1]} : vector<6x32xf32> to vector<1x32xf32>
    %12 = vector.extract_strided_slice %6 {offsets = [5, 0], sizes = [1, 32], strides = [1, 1]} : vector<6x32xf32> to vector<1x32xf32>
    %c0_10 = arith.constant 0 : index
    %c0_11 = arith.constant 0 : index
    %c0_12 = arith.constant 0 : index
    %13 = vector.load %arg7[%c0_10, %c0_11, %c0_12] : memref<2x1x128xf32, #tpu.memory_space<vmem>>, vector<1x1x128xf32>
    %14 = vector.shape_cast %13 : vector<1x1x128xf32> to vector<1x128xf32>
    %cst = arith.constant dense<0.000000e+00> : vector<16x96xf32>
    %15 = tpu.matmul %0, %2, %cst {dimension_numbers = #tpu.dot_dimension_numbers<[1], [0], [0], [1], [0, 0, 1, 1], [], []>} : vector<16x32xf32>, vector<32x96xf32>, vector<16x96xf32> -> vector<16x96xf32>
    %16 = vector.broadcast %7 : vector<1x32xf32> to vector<16x32xf32>
    %17 = arith.addf %0, %16 : vector<16x32xf32>
    %18 = vector.extract_strided_slice %15 {offsets = [0, 0], sizes = [8, 8], strides = [1, 1]} : vector<16x96xf32> to vector<8x8xf32>
    %19 = vector.extract_strided_slice %15 {offsets = [0, 32], sizes = [8, 8], strides = [1, 1]} : vector<16x96xf32> to vector<8x8xf32>
    %20 = vector.extract_strided_slice %15 {offsets = [0, 64], sizes = [8, 8], strides = [1, 1]} : vector<16x96xf32> to vector<8x8xf32>
    %cst_13 = arith.constant dense<0.000000e+00> : vector<8x8xf32>
    %21 = tpu.matmul %18, %19, %cst_13 {dimension_numbers = #tpu.dot_dimension_numbers<[1], [1], [0], [0], [0, 0, 1, 0], [], []>} : vector<8x8xf32>, vector<8x8xf32>, vector<8x8xf32> -> vector<8x8xf32>
    %cst_14 = arith.constant dense<0xFF800000> : vector<8xf32>
    %22 = vector.multi_reduction <maximumf>, %21, %cst_14 [1] : vector<8x8xf32> to vector<8xf32>
    %23 = vector.shape_cast %22 : vector<8xf32> to vector<8x1xf32>
    %24 = vector.broadcast %23 : vector<8x1xf32> to vector<8x8xf32>
    %25 = arith.subf %21, %24 : vector<8x8xf32>
    %26 = math.exp %25 : vector<8x8xf32>
    %cst_15 = arith.constant dense<0.000000e+00> : vector<8xf32>
    %27 = vector.multi_reduction <add>, %26, %cst_15 [1] : vector<8x8xf32> to vector<8xf32>
    %28 = vector.shape_cast %27 : vector<8xf32> to vector<8x1xf32>
    %29 = vector.broadcast %28 : vector<8x1xf32> to vector<8x8xf32>
    %30 = arith.divf %26, %29 : vector<8x8xf32>
    %cst_16 = arith.constant dense<0.000000e+00> : vector<8x8xf32>
    %31 = tpu.matmul %30, %20, %cst_16 {dimension_numbers = #tpu.dot_dimension_numbers<[1], [0], [0], [1], [0, 0, 1, 1], [], []>} : vector<8x8xf32>, vector<8x8xf32>, vector<8x8xf32> -> vector<8x8xf32>
    %32 = vector.extract_strided_slice %15 {offsets = [8, 0], sizes = [8, 8], strides = [1, 1]} : vector<16x96xf32> to vector<8x8xf32>
    %33 = vector.extract_strided_slice %15 {offsets = [8, 32], sizes = [8, 8], strides = [1, 1]} : vector<16x96xf32> to vector<8x8xf32>
    %34 = vector.extract_strided_slice %15 {offsets = [8, 64], sizes = [8, 8], strides = [1, 1]} : vector<16x96xf32> to vector<8x8xf32>
    %cst_17 = arith.constant dense<0.000000e+00> : vector<8x8xf32>
    %35 = tpu.matmul %32, %33, %cst_17 {dimension_numbers = #tpu.dot_dimension_numbers<[1], [1], [0], [0], [0, 0, 1, 0], [], []>} : vector<8x8xf32>, vector<8x8xf32>, vector<8x8xf32> -> vector<8x8xf32>
    %cst_18 = arith.constant dense<0xFF800000> : vector<8xf32>
    %36 = vector.multi_reduction <maximumf>, %35, %cst_18 [1] : vector<8x8xf32> to vector<8xf32>
    %37 = vector.shape_cast %36 : vector<8xf32> to vector<8x1xf32>
    %38 = vector.broadcast %37 : vector<8x1xf32> to vector<8x8xf32>
    %39 = arith.subf %35, %38 : vector<8x8xf32>
    %40 = math.exp %39 : vector<8x8xf32>
    %cst_19 = arith.constant dense<0.000000e+00> : vector<8xf32>
    %41 = vector.multi_reduction <add>, %40, %cst_19 [1] : vector<8x8xf32> to vector<8xf32>
    %42 = vector.shape_cast %41 : vector<8xf32> to vector<8x1xf32>
    %43 = vector.broadcast %42 : vector<8x1xf32> to vector<8x8xf32>
    %44 = arith.divf %40, %43 : vector<8x8xf32>
    %cst_20 = arith.constant dense<0.000000e+00> : vector<8x8xf32>
    %45 = tpu.matmul %44, %34, %cst_20 {dimension_numbers = #tpu.dot_dimension_numbers<[1], [0], [0], [1], [0, 0, 1, 1], [], []>} : vector<8x8xf32>, vector<8x8xf32>, vector<8x8xf32> -> vector<8x8xf32>
    %46 = tpu.concatenate %31, %45 in 0 : vector<8x8xf32>, vector<8x8xf32> -> vector<16x8xf32>
    %47 = vector.extract_strided_slice %4 {offsets = [0, 0], sizes = [8, 32], strides = [1, 1]} : vector<32x32xf32> to vector<8x32xf32>
    %cst_21 = arith.constant dense<0.000000e+00> : vector<16x32xf32>
    %48 = tpu.matmul %46, %47, %cst_21 {dimension_numbers = #tpu.dot_dimension_numbers<[1], [0], [0], [1], [0, 0, 1, 1], [], []>} : vector<16x8xf32>, vector<8x32xf32>, vector<16x32xf32> -> vector<16x32xf32>
    %49 = arith.addf %17, %48 : vector<16x32xf32>
    %50 = vector.extract_strided_slice %15 {offsets = [0, 8], sizes = [8, 8], strides = [1, 1]} : vector<16x96xf32> to vector<8x8xf32>
    %51 = vector.extract_strided_slice %15 {offsets = [0, 40], sizes = [8, 8], strides = [1, 1]} : vector<16x96xf32> to vector<8x8xf32>
    %52 = vector.extract_strided_slice %15 {offsets = [0, 72], sizes = [8, 8], strides = [1, 1]} : vector<16x96xf32> to vector<8x8xf32>
    %cst_22 = arith.constant dense<0.000000e+00> : vector<8x8xf32>
    %53 = tpu.matmul %50, %51, %cst_22 {dimension_numbers = #tpu.dot_dimension_numbers<[1], [1], [0], [0], [0, 0, 1, 0], [], []>} : vector<8x8xf32>, vector<8x8xf32>, vector<8x8xf32> -> vector<8x8xf32>
    %cst_23 = arith.constant dense<0xFF800000> : vector<8xf32>
    %54 = vector.multi_reduction <maximumf>, %53, %cst_23 [1] : vector<8x8xf32> to vector<8xf32>
    %55 = vector.shape_cast %54 : vector<8xf32> to vector<8x1xf32>
    %56 = vector.broadcast %55 : vector<8x1xf32> to vector<8x8xf32>
    %57 = arith.subf %53, %56 : vector<8x8xf32>
    %58 = math.exp %57 : vector<8x8xf32>
    %cst_24 = arith.constant dense<0.000000e+00> : vector<8xf32>
    %59 = vector.multi_reduction <add>, %58, %cst_24 [1] : vector<8x8xf32> to vector<8xf32>
    %60 = vector.shape_cast %59 : vector<8xf32> to vector<8x1xf32>
    %61 = vector.broadcast %60 : vector<8x1xf32> to vector<8x8xf32>
    %62 = arith.divf %58, %61 : vector<8x8xf32>
    %cst_25 = arith.constant dense<0.000000e+00> : vector<8x8xf32>
    %63 = tpu.matmul %62, %52, %cst_25 {dimension_numbers = #tpu.dot_dimension_numbers<[1], [0], [0], [1], [0, 0, 1, 1], [], []>} : vector<8x8xf32>, vector<8x8xf32>, vector<8x8xf32> -> vector<8x8xf32>
    %64 = vector.extract_strided_slice %15 {offsets = [8, 8], sizes = [8, 8], strides = [1, 1]} : vector<16x96xf32> to vector<8x8xf32>
    %65 = vector.extract_strided_slice %15 {offsets = [8, 40], sizes = [8, 8], strides = [1, 1]} : vector<16x96xf32> to vector<8x8xf32>
    %66 = vector.extract_strided_slice %15 {offsets = [8, 72], sizes = [8, 8], strides = [1, 1]} : vector<16x96xf32> to vector<8x8xf32>
    %cst_26 = arith.constant dense<0.000000e+00> : vector<8x8xf32>
    %67 = tpu.matmul %64, %65, %cst_26 {dimension_numbers = #tpu.dot_dimension_numbers<[1], [1], [0], [0], [0, 0, 1, 0], [], []>} : vector<8x8xf32>, vector<8x8xf32>, vector<8x8xf32> -> vector<8x8xf32>
    %cst_27 = arith.constant dense<0xFF800000> : vector<8xf32>
    %68 = vector.multi_reduction <maximumf>, %67, %cst_27 [1] : vector<8x8xf32> to vector<8xf32>
    %69 = vector.shape_cast %68 : vector<8xf32> to vector<8x1xf32>
    %70 = vector.broadcast %69 : vector<8x1xf32> to vector<8x8xf32>
    %71 = arith.subf %67, %70 : vector<8x8xf32>
    %72 = math.exp %71 : vector<8x8xf32>
    %cst_28 = arith.constant dense<0.000000e+00> : vector<8xf32>
    %73 = vector.multi_reduction <add>, %72, %cst_28 [1] : vector<8x8xf32> to vector<8xf32>
    %74 = vector.shape_cast %73 : vector<8xf32> to vector<8x1xf32>
    %75 = vector.broadcast %74 : vector<8x1xf32> to vector<8x8xf32>
    %76 = arith.divf %72, %75 : vector<8x8xf32>
    %cst_29 = arith.constant dense<0.000000e+00> : vector<8x8xf32>
    %77 = tpu.matmul %76, %66, %cst_29 {dimension_numbers = #tpu.dot_dimension_numbers<[1], [0], [0], [1], [0, 0, 1, 1], [], []>} : vector<8x8xf32>, vector<8x8xf32>, vector<8x8xf32> -> vector<8x8xf32>
    %78 = tpu.concatenate %63, %77 in 0 : vector<8x8xf32>, vector<8x8xf32> -> vector<16x8xf32>
    %79 = vector.extract_strided_slice %4 {offsets = [8, 0], sizes = [8, 32], strides = [1, 1]} : vector<32x32xf32> to vector<8x32xf32>
    %cst_30 = arith.constant dense<0.000000e+00> : vector<16x32xf32>
    %80 = tpu.matmul %78, %79, %cst_30 {dimension_numbers = #tpu.dot_dimension_numbers<[1], [0], [0], [1], [0, 0, 1, 1], [], []>} : vector<16x8xf32>, vector<8x32xf32>, vector<16x32xf32> -> vector<16x32xf32>
    %81 = arith.addf %49, %80 : vector<16x32xf32>
    %82 = vector.extract_strided_slice %15 {offsets = [0, 16], sizes = [8, 8], strides = [1, 1]} : vector<16x96xf32> to vector<8x8xf32>
    %83 = vector.extract_strided_slice %15 {offsets = [0, 48], sizes = [8, 8], strides = [1, 1]} : vector<16x96xf32> to vector<8x8xf32>
    %84 = vector.extract_strided_slice %15 {offsets = [0, 80], sizes = [8, 8], strides = [1, 1]} : vector<16x96xf32> to vector<8x8xf32>
    %cst_31 = arith.constant dense<0.000000e+00> : vector<8x8xf32>
    %85 = tpu.matmul %82, %83, %cst_31 {dimension_numbers = #tpu.dot_dimension_numbers<[1], [1], [0], [0], [0, 0, 1, 0], [], []>} : vector<8x8xf32>, vector<8x8xf32>, vector<8x8xf32> -> vector<8x8xf32>
    %cst_32 = arith.constant dense<0xFF800000> : vector<8xf32>
    %86 = vector.multi_reduction <maximumf>, %85, %cst_32 [1] : vector<8x8xf32> to vector<8xf32>
    %87 = vector.shape_cast %86 : vector<8xf32> to vector<8x1xf32>
    %88 = vector.broadcast %87 : vector<8x1xf32> to vector<8x8xf32>
    %89 = arith.subf %85, %88 : vector<8x8xf32>
    %90 = math.exp %89 : vector<8x8xf32>
    %cst_33 = arith.constant dense<0.000000e+00> : vector<8xf32>
    %91 = vector.multi_reduction <add>, %90, %cst_33 [1] : vector<8x8xf32> to vector<8xf32>
    %92 = vector.shape_cast %91 : vector<8xf32> to vector<8x1xf32>
    %93 = vector.broadcast %92 : vector<8x1xf32> to vector<8x8xf32>
    %94 = arith.divf %90, %93 : vector<8x8xf32>
    %cst_34 = arith.constant dense<0.000000e+00> : vector<8x8xf32>
    %95 = tpu.matmul %94, %84, %cst_34 {dimension_numbers = #tpu.dot_dimension_numbers<[1], [0], [0], [1], [0, 0, 1, 1], [], []>} : vector<8x8xf32>, vector<8x8xf32>, vector<8x8xf32> -> vector<8x8xf32>
    %96 = vector.extract_strided_slice %15 {offsets = [8, 16], sizes = [8, 8], strides = [1, 1]} : vector<16x96xf32> to vector<8x8xf32>
    %97 = vector.extract_strided_slice %15 {offsets = [8, 48], sizes = [8, 8], strides = [1, 1]} : vector<16x96xf32> to vector<8x8xf32>
    %98 = vector.extract_strided_slice %15 {offsets = [8, 80], sizes = [8, 8], strides = [1, 1]} : vector<16x96xf32> to vector<8x8xf32>
    %cst_35 = arith.constant dense<0.000000e+00> : vector<8x8xf32>
    %99 = tpu.matmul %96, %97, %cst_35 {dimension_numbers = #tpu.dot_dimension_numbers<[1], [1], [0], [0], [0, 0, 1, 0], [], []>} : vector<8x8xf32>, vector<8x8xf32>, vector<8x8xf32> -> vector<8x8xf32>
    %cst_36 = arith.constant dense<0xFF800000> : vector<8xf32>
    %100 = vector.multi_reduction <maximumf>, %99, %cst_36 [1] : vector<8x8xf32> to vector<8xf32>
    %101 = vector.shape_cast %100 : vector<8xf32> to vector<8x1xf32>
    %102 = vector.broadcast %101 : vector<8x1xf32> to vector<8x8xf32>
    %103 = arith.subf %99, %102 : vector<8x8xf32>
    %104 = math.exp %103 : vector<8x8xf32>
    %cst_37 = arith.constant dense<0.000000e+00> : vector<8xf32>
    %105 = vector.multi_reduction <add>, %104, %cst_37 [1] : vector<8x8xf32> to vector<8xf32>
    %106 = vector.shape_cast %105 : vector<8xf32> to vector<8x1xf32>
    %107 = vector.broadcast %106 : vector<8x1xf32> to vector<8x8xf32>
    %108 = arith.divf %104, %107 : vector<8x8xf32>
    %cst_38 = arith.constant dense<0.000000e+00> : vector<8x8xf32>
    %109 = tpu.matmul %108, %98, %cst_38 {dimension_numbers = #tpu.dot_dimension_numbers<[1], [0], [0], [1], [0, 0, 1, 1], [], []>} : vector<8x8xf32>, vector<8x8xf32>, vector<8x8xf32> -> vector<8x8xf32>
    %110 = tpu.concatenate %95, %109 in 0 : vector<8x8xf32>, vector<8x8xf32> -> vector<16x8xf32>
    %111 = vector.extract_strided_slice %4 {offsets = [16, 0], sizes = [8, 32], strides = [1, 1]} : vector<32x32xf32> to vector<8x32xf32>
    %cst_39 = arith.constant dense<0.000000e+00> : vector<16x32xf32>
    %112 = tpu.matmul %110, %111, %cst_39 {dimension_numbers = #tpu.dot_dimension_numbers<[1], [0], [0], [1], [0, 0, 1, 1], [], []>} : vector<16x8xf32>, vector<8x32xf32>, vector<16x32xf32> -> vector<16x32xf32>
    %113 = arith.addf %81, %112 : vector<16x32xf32>
    %114 = vector.extract_strided_slice %15 {offsets = [0, 24], sizes = [8, 8], strides = [1, 1]} : vector<16x96xf32> to vector<8x8xf32>
    %115 = vector.extract_strided_slice %15 {offsets = [0, 56], sizes = [8, 8], strides = [1, 1]} : vector<16x96xf32> to vector<8x8xf32>
    %116 = vector.extract_strided_slice %15 {offsets = [0, 88], sizes = [8, 8], strides = [1, 1]} : vector<16x96xf32> to vector<8x8xf32>
    %cst_40 = arith.constant dense<0.000000e+00> : vector<8x8xf32>
    %117 = tpu.matmul %114, %115, %cst_40 {dimension_numbers = #tpu.dot_dimension_numbers<[1], [1], [0], [0], [0, 0, 1, 0], [], []>} : vector<8x8xf32>, vector<8x8xf32>, vector<8x8xf32> -> vector<8x8xf32>
    %cst_41 = arith.constant dense<0xFF800000> : vector<8xf32>
    %118 = vector.multi_reduction <maximumf>, %117, %cst_41 [1] : vector<8x8xf32> to vector<8xf32>
    %119 = vector.shape_cast %118 : vector<8xf32> to vector<8x1xf32>
    %120 = vector.broadcast %119 : vector<8x1xf32> to vector<8x8xf32>
    %121 = arith.subf %117, %120 : vector<8x8xf32>
    %122 = math.exp %121 : vector<8x8xf32>
    %cst_42 = arith.constant dense<0.000000e+00> : vector<8xf32>
    %123 = vector.multi_reduction <add>, %122, %cst_42 [1] : vector<8x8xf32> to vector<8xf32>
    %124 = vector.shape_cast %123 : vector<8xf32> to vector<8x1xf32>
    %125 = vector.broadcast %124 : vector<8x1xf32> to vector<8x8xf32>
    %126 = arith.divf %122, %125 : vector<8x8xf32>
    %cst_43 = arith.constant dense<0.000000e+00> : vector<8x8xf32>
    %127 = tpu.matmul %126, %116, %cst_43 {dimension_numbers = #tpu.dot_dimension_numbers<[1], [0], [0], [1], [0, 0, 1, 1], [], []>} : vector<8x8xf32>, vector<8x8xf32>, vector<8x8xf32> -> vector<8x8xf32>
    %128 = vector.extract_strided_slice %15 {offsets = [8, 24], sizes = [8, 8], strides = [1, 1]} : vector<16x96xf32> to vector<8x8xf32>
    %129 = vector.extract_strided_slice %15 {offsets = [8, 56], sizes = [8, 8], strides = [1, 1]} : vector<16x96xf32> to vector<8x8xf32>
    %130 = vector.extract_strided_slice %15 {offsets = [8, 88], sizes = [8, 8], strides = [1, 1]} : vector<16x96xf32> to vector<8x8xf32>
    %cst_44 = arith.constant dense<0.000000e+00> : vector<8x8xf32>
    %131 = tpu.matmul %128, %129, %cst_44 {dimension_numbers = #tpu.dot_dimension_numbers<[1], [1], [0], [0], [0, 0, 1, 0], [], []>} : vector<8x8xf32>, vector<8x8xf32>, vector<8x8xf32> -> vector<8x8xf32>
    %cst_45 = arith.constant dense<0xFF800000> : vector<8xf32>
    %132 = vector.multi_reduction <maximumf>, %131, %cst_45 [1] : vector<8x8xf32> to vector<8xf32>
    %133 = vector.shape_cast %132 : vector<8xf32> to vector<8x1xf32>
    %134 = vector.broadcast %133 : vector<8x1xf32> to vector<8x8xf32>
    %135 = arith.subf %131, %134 : vector<8x8xf32>
    %136 = math.exp %135 : vector<8x8xf32>
    %cst_46 = arith.constant dense<0.000000e+00> : vector<8xf32>
    %137 = vector.multi_reduction <add>, %136, %cst_46 [1] : vector<8x8xf32> to vector<8xf32>
    %138 = vector.shape_cast %137 : vector<8xf32> to vector<8x1xf32>
    %139 = vector.broadcast %138 : vector<8x1xf32> to vector<8x8xf32>
    %140 = arith.divf %136, %139 : vector<8x8xf32>
    %cst_47 = arith.constant dense<0.000000e+00> : vector<8x8xf32>
    %141 = tpu.matmul %140, %130, %cst_47 {dimension_numbers = #tpu.dot_dimension_numbers<[1], [0], [0], [1], [0, 0, 1, 1], [], []>} : vector<8x8xf32>, vector<8x8xf32>, vector<8x8xf32> -> vector<8x8xf32>
    %142 = tpu.concatenate %127, %141 in 0 : vector<8x8xf32>, vector<8x8xf32> -> vector<16x8xf32>
    %143 = vector.extract_strided_slice %4 {offsets = [24, 0], sizes = [8, 32], strides = [1, 1]} : vector<32x32xf32> to vector<8x32xf32>
    %cst_48 = arith.constant dense<0.000000e+00> : vector<16x32xf32>
    %144 = tpu.matmul %142, %143, %cst_48 {dimension_numbers = #tpu.dot_dimension_numbers<[1], [0], [0], [1], [0, 0, 1, 1], [], []>} : vector<16x8xf32>, vector<8x32xf32>, vector<16x32xf32> -> vector<16x32xf32>
    %145 = arith.addf %113, %144 : vector<16x32xf32>
    %cst_49 = arith.constant dense<0.000000e+00> : vector<16xf32>
    %146 = vector.multi_reduction <add>, %145, %cst_49 [1] : vector<16x32xf32> to vector<16xf32>
    %147 = vector.shape_cast %146 : vector<16xf32> to vector<16x1xf32>
    %cst_50 = arith.constant 3.200000e+01 : f32
    %148 = vector.broadcast %cst_50 : f32 to vector<16x1xf32>
    %149 = arith.divf %147, %148 : vector<16x1xf32>
    %150 = vector.broadcast %149 : vector<16x1xf32> to vector<16x32xf32>
    %151 = arith.subf %145, %150 : vector<16x32xf32>
    %152 = arith.mulf %151, %151 : vector<16x32xf32>
    %cst_51 = arith.constant dense<0.000000e+00> : vector<16xf32>
    %153 = vector.multi_reduction <add>, %152, %cst_51 [1] : vector<16x32xf32> to vector<16xf32>
    %154 = vector.shape_cast %153 : vector<16xf32> to vector<16x1xf32>
    %cst_52 = arith.constant 3.200000e+01 : f32
    %155 = vector.broadcast %cst_52 : f32 to vector<16x1xf32>
    %156 = arith.divf %154, %155 : vector<16x1xf32>
    %cst_53 = arith.constant 9.99999974E-6 : f32
    %157 = vector.broadcast %cst_53 : f32 to vector<16x1xf32>
    %158 = arith.addf %156, %157 : vector<16x1xf32>
    %159 = math.rsqrt %158 : vector<16x1xf32>
    %160 = vector.broadcast %149 : vector<16x1xf32> to vector<16x32xf32>
    %161 = arith.subf %145, %160 : vector<16x32xf32>
    %162 = vector.broadcast %159 : vector<16x1xf32> to vector<16x32xf32>
    %163 = arith.mulf %161, %162 : vector<16x32xf32>
    %164 = vector.broadcast %8 : vector<1x32xf32> to vector<16x32xf32>
    %165 = arith.mulf %163, %164 : vector<16x32xf32>
    %166 = vector.broadcast %9 : vector<1x32xf32> to vector<16x32xf32>
    %167 = arith.addf %165, %166 : vector<16x32xf32>
    %c0_54 = arith.constant 0 : index
    %c0_55 = arith.constant 0 : index
    %c0_56 = arith.constant 0 : index
    %168 = vector.load %arg4[%c0_54, %c0_55, %c0_56] : memref<2x32x128xf32, #tpu.memory_space<vmem>>, vector<1x32x128xf32>
    %169 = vector.shape_cast %168 : vector<1x32x128xf32> to vector<32x128xf32>
    %cst_57 = arith.constant dense<0.000000e+00> : vector<16x128xf32>
    %170 = tpu.matmul %167, %169, %cst_57 {dimension_numbers = #tpu.dot_dimension_numbers<[1], [0], [0], [1], [0, 0, 1, 1], [], []>} : vector<16x32xf32>, vector<32x128xf32>, vector<16x128xf32> -> vector<16x128xf32>
    %171 = vector.broadcast %14 : vector<1x128xf32> to vector<16x128xf32>
    %172 = arith.addf %170, %171 : vector<16x128xf32>
    %cst_58 = arith.constant 0.000000e+00 : f32
    %173 = vector.broadcast %cst_58 : f32 to vector<16x128xf32>
    %174 = arith.maximumf %172, %173 : vector<16x128xf32>
    %c0_59 = arith.constant 0 : index
    %c0_60 = arith.constant 0 : index
    %c0_61 = arith.constant 0 : index
    %175 = vector.load %arg5[%c0_59, %c0_60, %c0_61] : memref<2x128x32xf32, #tpu.memory_space<vmem>>, vector<1x128x32xf32>
    %176 = vector.shape_cast %175 : vector<1x128x32xf32> to vector<128x32xf32>
    %cst_62 = arith.constant dense<0.000000e+00> : vector<16x32xf32>
    %177 = tpu.matmul %174, %176, %cst_62 {dimension_numbers = #tpu.dot_dimension_numbers<[1], [0], [0], [1], [0, 0, 1, 1], [], []>} : vector<16x128xf32>, vector<128x32xf32>, vector<16x32xf32> -> vector<16x32xf32>
    %178 = vector.broadcast %10 : vector<1x32xf32> to vector<16x32xf32>
    %179 = arith.addf %177, %178 : vector<16x32xf32>
    %180 = arith.addf %179, %167 : vector<16x32xf32>
    %cst_63 = arith.constant dense<0.000000e+00> : vector<16xf32>
    %181 = vector.multi_reduction <add>, %180, %cst_63 [1] : vector<16x32xf32> to vector<16xf32>
    %182 = vector.shape_cast %181 : vector<16xf32> to vector<16x1xf32>
    %cst_64 = arith.constant 3.200000e+01 : f32
    %183 = vector.broadcast %cst_64 : f32 to vector<16x1xf32>
    %184 = arith.divf %182, %183 : vector<16x1xf32>
    %185 = vector.broadcast %184 : vector<16x1xf32> to vector<16x32xf32>
    %186 = arith.subf %180, %185 : vector<16x32xf32>
    %187 = arith.mulf %186, %186 : vector<16x32xf32>
    %cst_65 = arith.constant dense<0.000000e+00> : vector<16xf32>
    %188 = vector.multi_reduction <add>, %187, %cst_65 [1] : vector<16x32xf32> to vector<16xf32>
    %189 = vector.shape_cast %188 : vector<16xf32> to vector<16x1xf32>
    %cst_66 = arith.constant 3.200000e+01 : f32
    %190 = vector.broadcast %cst_66 : f32 to vector<16x1xf32>
    %191 = arith.divf %189, %190 : vector<16x1xf32>
    %cst_67 = arith.constant 9.99999974E-6 : f32
    %192 = vector.broadcast %cst_67 : f32 to vector<16x1xf32>
    %193 = arith.addf %191, %192 : vector<16x1xf32>
    %194 = math.rsqrt %193 : vector<16x1xf32>
    %195 = vector.broadcast %184 : vector<16x1xf32> to vector<16x32xf32>
    %196 = arith.subf %180, %195 : vector<16x32xf32>
    %197 = vector.broadcast %194 : vector<16x1xf32> to vector<16x32xf32>
    %198 = arith.mulf %196, %197 : vector<16x32xf32>
    %199 = vector.broadcast %11 : vector<1x32xf32> to vector<16x32xf32>
    %200 = arith.mulf %198, %199 : vector<16x32xf32>
    %201 = vector.broadcast %12 : vector<1x32xf32> to vector<16x32xf32>
    %202 = arith.addf %200, %201 : vector<16x32xf32>
    %c1 = arith.constant 1 : index
    %c0_68 = arith.constant 0 : index
    %c0_69 = arith.constant 0 : index
    %203 = vector.load %arg2[%c1, %c0_68, %c0_69] : memref<2x32x96xf32, #tpu.memory_space<vmem>>, vector<1x32x96xf32>
    %204 = vector.shape_cast %203 : vector<1x32x96xf32> to vector<32x96xf32>
    %c1_70 = arith.constant 1 : index
    %c0_71 = arith.constant 0 : index
    %c0_72 = arith.constant 0 : index
    %205 = vector.load %arg3[%c1_70, %c0_71, %c0_72] : memref<2x32x32xf32, #tpu.memory_space<vmem>>, vector<1x32x32xf32>
    %206 = vector.shape_cast %205 : vector<1x32x32xf32> to vector<32x32xf32>
    %c1_73 = arith.constant 1 : index
    %c0_74 = arith.constant 0 : index
    %c0_75 = arith.constant 0 : index
    %207 = vector.load %arg6[%c1_73, %c0_74, %c0_75] : memref<2x6x32xf32, #tpu.memory_space<vmem>>, vector<1x6x32xf32>
    %208 = vector.shape_cast %207 : vector<1x6x32xf32> to vector<6x32xf32>
    %209 = vector.extract_strided_slice %208 {offsets = [0, 0], sizes = [1, 32], strides = [1, 1]} : vector<6x32xf32> to vector<1x32xf32>
    %210 = vector.extract_strided_slice %208 {offsets = [1, 0], sizes = [1, 32], strides = [1, 1]} : vector<6x32xf32> to vector<1x32xf32>
    %211 = vector.extract_strided_slice %208 {offsets = [2, 0], sizes = [1, 32], strides = [1, 1]} : vector<6x32xf32> to vector<1x32xf32>
    %212 = vector.extract_strided_slice %208 {offsets = [3, 0], sizes = [1, 32], strides = [1, 1]} : vector<6x32xf32> to vector<1x32xf32>
    %213 = vector.extract_strided_slice %208 {offsets = [4, 0], sizes = [1, 32], strides = [1, 1]} : vector<6x32xf32> to vector<1x32xf32>
    %214 = vector.extract_strided_slice %208 {offsets = [5, 0], sizes = [1, 32], strides = [1, 1]} : vector<6x32xf32> to vector<1x32xf32>
    %c1_76 = arith.constant 1 : index
    %c0_77 = arith.constant 0 : index
    %c0_78 = arith.constant 0 : index
    %215 = vector.load %arg7[%c1_76, %c0_77, %c0_78] : memref<2x1x128xf32, #tpu.memory_space<vmem>>, vector<1x1x128xf32>
    %216 = vector.shape_cast %215 : vector<1x1x128xf32> to vector<1x128xf32>
    %cst_79 = arith.constant dense<0.000000e+00> : vector<16x96xf32>
    %217 = tpu.matmul %202, %204, %cst_79 {dimension_numbers = #tpu.dot_dimension_numbers<[1], [0], [0], [1], [0, 0, 1, 1], [], []>} : vector<16x32xf32>, vector<32x96xf32>, vector<16x96xf32> -> vector<16x96xf32>
    %218 = vector.broadcast %209 : vector<1x32xf32> to vector<16x32xf32>
    %219 = arith.addf %202, %218 : vector<16x32xf32>
    %220 = vector.extract_strided_slice %217 {offsets = [0, 0], sizes = [8, 8], strides = [1, 1]} : vector<16x96xf32> to vector<8x8xf32>
    %221 = vector.extract_strided_slice %217 {offsets = [0, 32], sizes = [8, 8], strides = [1, 1]} : vector<16x96xf32> to vector<8x8xf32>
    %222 = vector.extract_strided_slice %217 {offsets = [0, 64], sizes = [8, 8], strides = [1, 1]} : vector<16x96xf32> to vector<8x8xf32>
    %cst_80 = arith.constant dense<0.000000e+00> : vector<8x8xf32>
    %223 = tpu.matmul %220, %221, %cst_80 {dimension_numbers = #tpu.dot_dimension_numbers<[1], [1], [0], [0], [0, 0, 1, 0], [], []>} : vector<8x8xf32>, vector<8x8xf32>, vector<8x8xf32> -> vector<8x8xf32>
    %cst_81 = arith.constant dense<0xFF800000> : vector<8xf32>
    %224 = vector.multi_reduction <maximumf>, %223, %cst_81 [1] : vector<8x8xf32> to vector<8xf32>
    %225 = vector.shape_cast %224 : vector<8xf32> to vector<8x1xf32>
    %226 = vector.broadcast %225 : vector<8x1xf32> to vector<8x8xf32>
    %227 = arith.subf %223, %226 : vector<8x8xf32>
    %228 = math.exp %227 : vector<8x8xf32>
    %cst_82 = arith.constant dense<0.000000e+00> : vector<8xf32>
    %229 = vector.multi_reduction <add>, %228, %cst_82 [1] : vector<8x8xf32> to vector<8xf32>
    %230 = vector.shape_cast %229 : vector<8xf32> to vector<8x1xf32>
    %231 = vector.broadcast %230 : vector<8x1xf32> to vector<8x8xf32>
    %232 = arith.divf %228, %231 : vector<8x8xf32>
    %cst_83 = arith.constant dense<0.000000e+00> : vector<8x8xf32>
    %233 = tpu.matmul %232, %222, %cst_83 {dimension_numbers = #tpu.dot_dimension_numbers<[1], [0], [0], [1], [0, 0, 1, 1], [], []>} : vector<8x8xf32>, vector<8x8xf32>, vector<8x8xf32> -> vector<8x8xf32>
    %234 = vector.extract_strided_slice %217 {offsets = [8, 0], sizes = [8, 8], strides = [1, 1]} : vector<16x96xf32> to vector<8x8xf32>
    %235 = vector.extract_strided_slice %217 {offsets = [8, 32], sizes = [8, 8], strides = [1, 1]} : vector<16x96xf32> to vector<8x8xf32>
    %236 = vector.extract_strided_slice %217 {offsets = [8, 64], sizes = [8, 8], strides = [1, 1]} : vector<16x96xf32> to vector<8x8xf32>
    %cst_84 = arith.constant dense<0.000000e+00> : vector<8x8xf32>
    %237 = tpu.matmul %234, %235, %cst_84 {dimension_numbers = #tpu.dot_dimension_numbers<[1], [1], [0], [0], [0, 0, 1, 0], [], []>} : vector<8x8xf32>, vector<8x8xf32>, vector<8x8xf32> -> vector<8x8xf32>
    %cst_85 = arith.constant dense<0xFF800000> : vector<8xf32>
    %238 = vector.multi_reduction <maximumf>, %237, %cst_85 [1] : vector<8x8xf32> to vector<8xf32>
    %239 = vector.shape_cast %238 : vector<8xf32> to vector<8x1xf32>
    %240 = vector.broadcast %239 : vector<8x1xf32> to vector<8x8xf32>
    %241 = arith.subf %237, %240 : vector<8x8xf32>
    %242 = math.exp %241 : vector<8x8xf32>
    %cst_86 = arith.constant dense<0.000000e+00> : vector<8xf32>
    %243 = vector.multi_reduction <add>, %242, %cst_86 [1] : vector<8x8xf32> to vector<8xf32>
    %244 = vector.shape_cast %243 : vector<8xf32> to vector<8x1xf32>
    %245 = vector.broadcast %244 : vector<8x1xf32> to vector<8x8xf32>
    %246 = arith.divf %242, %245 : vector<8x8xf32>
    %cst_87 = arith.constant dense<0.000000e+00> : vector<8x8xf32>
    %247 = tpu.matmul %246, %236, %cst_87 {dimension_numbers = #tpu.dot_dimension_numbers<[1], [0], [0], [1], [0, 0, 1, 1], [], []>} : vector<8x8xf32>, vector<8x8xf32>, vector<8x8xf32> -> vector<8x8xf32>
    %248 = tpu.concatenate %233, %247 in 0 : vector<8x8xf32>, vector<8x8xf32> -> vector<16x8xf32>
    %249 = vector.extract_strided_slice %206 {offsets = [0, 0], sizes = [8, 32], strides = [1, 1]} : vector<32x32xf32> to vector<8x32xf32>
    %cst_88 = arith.constant dense<0.000000e+00> : vector<16x32xf32>
    %250 = tpu.matmul %248, %249, %cst_88 {dimension_numbers = #tpu.dot_dimension_numbers<[1], [0], [0], [1], [0, 0, 1, 1], [], []>} : vector<16x8xf32>, vector<8x32xf32>, vector<16x32xf32> -> vector<16x32xf32>
    %251 = arith.addf %219, %250 : vector<16x32xf32>
    %252 = vector.extract_strided_slice %217 {offsets = [0, 8], sizes = [8, 8], strides = [1, 1]} : vector<16x96xf32> to vector<8x8xf32>
    %253 = vector.extract_strided_slice %217 {offsets = [0, 40], sizes = [8, 8], strides = [1, 1]} : vector<16x96xf32> to vector<8x8xf32>
    %254 = vector.extract_strided_slice %217 {offsets = [0, 72], sizes = [8, 8], strides = [1, 1]} : vector<16x96xf32> to vector<8x8xf32>
    %cst_89 = arith.constant dense<0.000000e+00> : vector<8x8xf32>
    %255 = tpu.matmul %252, %253, %cst_89 {dimension_numbers = #tpu.dot_dimension_numbers<[1], [1], [0], [0], [0, 0, 1, 0], [], []>} : vector<8x8xf32>, vector<8x8xf32>, vector<8x8xf32> -> vector<8x8xf32>
    %cst_90 = arith.constant dense<0xFF800000> : vector<8xf32>
    %256 = vector.multi_reduction <maximumf>, %255, %cst_90 [1] : vector<8x8xf32> to vector<8xf32>
    %257 = vector.shape_cast %256 : vector<8xf32> to vector<8x1xf32>
    %258 = vector.broadcast %257 : vector<8x1xf32> to vector<8x8xf32>
    %259 = arith.subf %255, %258 : vector<8x8xf32>
    %260 = math.exp %259 : vector<8x8xf32>
    %cst_91 = arith.constant dense<0.000000e+00> : vector<8xf32>
    %261 = vector.multi_reduction <add>, %260, %cst_91 [1] : vector<8x8xf32> to vector<8xf32>
    %262 = vector.shape_cast %261 : vector<8xf32> to vector<8x1xf32>
    %263 = vector.broadcast %262 : vector<8x1xf32> to vector<8x8xf32>
    %264 = arith.divf %260, %263 : vector<8x8xf32>
    %cst_92 = arith.constant dense<0.000000e+00> : vector<8x8xf32>
    %265 = tpu.matmul %264, %254, %cst_92 {dimension_numbers = #tpu.dot_dimension_numbers<[1], [0], [0], [1], [0, 0, 1, 1], [], []>} : vector<8x8xf32>, vector<8x8xf32>, vector<8x8xf32> -> vector<8x8xf32>
    %266 = vector.extract_strided_slice %217 {offsets = [8, 8], sizes = [8, 8], strides = [1, 1]} : vector<16x96xf32> to vector<8x8xf32>
    %267 = vector.extract_strided_slice %217 {offsets = [8, 40], sizes = [8, 8], strides = [1, 1]} : vector<16x96xf32> to vector<8x8xf32>
    %268 = vector.extract_strided_slice %217 {offsets = [8, 72], sizes = [8, 8], strides = [1, 1]} : vector<16x96xf32> to vector<8x8xf32>
    %cst_93 = arith.constant dense<0.000000e+00> : vector<8x8xf32>
    %269 = tpu.matmul %266, %267, %cst_93 {dimension_numbers = #tpu.dot_dimension_numbers<[1], [1], [0], [0], [0, 0, 1, 0], [], []>} : vector<8x8xf32>, vector<8x8xf32>, vector<8x8xf32> -> vector<8x8xf32>
    %cst_94 = arith.constant dense<0xFF800000> : vector<8xf32>
    %270 = vector.multi_reduction <maximumf>, %269, %cst_94 [1] : vector<8x8xf32> to vector<8xf32>
    %271 = vector.shape_cast %270 : vector<8xf32> to vector<8x1xf32>
    %272 = vector.broadcast %271 : vector<8x1xf32> to vector<8x8xf32>
    %273 = arith.subf %269, %272 : vector<8x8xf32>
    %274 = math.exp %273 : vector<8x8xf32>
    %cst_95 = arith.constant dense<0.000000e+00> : vector<8xf32>
    %275 = vector.multi_reduction <add>, %274, %cst_95 [1] : vector<8x8xf32> to vector<8xf32>
    %276 = vector.shape_cast %275 : vector<8xf32> to vector<8x1xf32>
    %277 = vector.broadcast %276 : vector<8x1xf32> to vector<8x8xf32>
    %278 = arith.divf %274, %277 : vector<8x8xf32>
    %cst_96 = arith.constant dense<0.000000e+00> : vector<8x8xf32>
    %279 = tpu.matmul %278, %268, %cst_96 {dimension_numbers = #tpu.dot_dimension_numbers<[1], [0], [0], [1], [0, 0, 1, 1], [], []>} : vector<8x8xf32>, vector<8x8xf32>, vector<8x8xf32> -> vector<8x8xf32>
    %280 = tpu.concatenate %265, %279 in 0 : vector<8x8xf32>, vector<8x8xf32> -> vector<16x8xf32>
    %281 = vector.extract_strided_slice %206 {offsets = [8, 0], sizes = [8, 32], strides = [1, 1]} : vector<32x32xf32> to vector<8x32xf32>
    %cst_97 = arith.constant dense<0.000000e+00> : vector<16x32xf32>
    %282 = tpu.matmul %280, %281, %cst_97 {dimension_numbers = #tpu.dot_dimension_numbers<[1], [0], [0], [1], [0, 0, 1, 1], [], []>} : vector<16x8xf32>, vector<8x32xf32>, vector<16x32xf32> -> vector<16x32xf32>
    %283 = arith.addf %251, %282 : vector<16x32xf32>
    %284 = vector.extract_strided_slice %217 {offsets = [0, 16], sizes = [8, 8], strides = [1, 1]} : vector<16x96xf32> to vector<8x8xf32>
    %285 = vector.extract_strided_slice %217 {offsets = [0, 48], sizes = [8, 8], strides = [1, 1]} : vector<16x96xf32> to vector<8x8xf32>
    %286 = vector.extract_strided_slice %217 {offsets = [0, 80], sizes = [8, 8], strides = [1, 1]} : vector<16x96xf32> to vector<8x8xf32>
    %cst_98 = arith.constant dense<0.000000e+00> : vector<8x8xf32>
    %287 = tpu.matmul %284, %285, %cst_98 {dimension_numbers = #tpu.dot_dimension_numbers<[1], [1], [0], [0], [0, 0, 1, 0], [], []>} : vector<8x8xf32>, vector<8x8xf32>, vector<8x8xf32> -> vector<8x8xf32>
    %cst_99 = arith.constant dense<0xFF800000> : vector<8xf32>
    %288 = vector.multi_reduction <maximumf>, %287, %cst_99 [1] : vector<8x8xf32> to vector<8xf32>
    %289 = vector.shape_cast %288 : vector<8xf32> to vector<8x1xf32>
    %290 = vector.broadcast %289 : vector<8x1xf32> to vector<8x8xf32>
    %291 = arith.subf %287, %290 : vector<8x8xf32>
    %292 = math.exp %291 : vector<8x8xf32>
    %cst_100 = arith.constant dense<0.000000e+00> : vector<8xf32>
    %293 = vector.multi_reduction <add>, %292, %cst_100 [1] : vector<8x8xf32> to vector<8xf32>
    %294 = vector.shape_cast %293 : vector<8xf32> to vector<8x1xf32>
    %295 = vector.broadcast %294 : vector<8x1xf32> to vector<8x8xf32>
    %296 = arith.divf %292, %295 : vector<8x8xf32>
    %cst_101 = arith.constant dense<0.000000e+00> : vector<8x8xf32>
    %297 = tpu.matmul %296, %286, %cst_101 {dimension_numbers = #tpu.dot_dimension_numbers<[1], [0], [0], [1], [0, 0, 1, 1], [], []>} : vector<8x8xf32>, vector<8x8xf32>, vector<8x8xf32> -> vector<8x8xf32>
    %298 = vector.extract_strided_slice %217 {offsets = [8, 16], sizes = [8, 8], strides = [1, 1]} : vector<16x96xf32> to vector<8x8xf32>
    %299 = vector.extract_strided_slice %217 {offsets = [8, 48], sizes = [8, 8], strides = [1, 1]} : vector<16x96xf32> to vector<8x8xf32>
    %300 = vector.extract_strided_slice %217 {offsets = [8, 80], sizes = [8, 8], strides = [1, 1]} : vector<16x96xf32> to vector<8x8xf32>
    %cst_102 = arith.constant dense<0.000000e+00> : vector<8x8xf32>
    %301 = tpu.matmul %298, %299, %cst_102 {dimension_numbers = #tpu.dot_dimension_numbers<[1], [1], [0], [0], [0, 0, 1, 0], [], []>} : vector<8x8xf32>, vector<8x8xf32>, vector<8x8xf32> -> vector<8x8xf32>
    %cst_103 = arith.constant dense<0xFF800000> : vector<8xf32>
    %302 = vector.multi_reduction <maximumf>, %301, %cst_103 [1] : vector<8x8xf32> to vector<8xf32>
    %303 = vector.shape_cast %302 : vector<8xf32> to vector<8x1xf32>
    %304 = vector.broadcast %303 : vector<8x1xf32> to vector<8x8xf32>
    %305 = arith.subf %301, %304 : vector<8x8xf32>
    %306 = math.exp %305 : vector<8x8xf32>
    %cst_104 = arith.constant dense<0.000000e+00> : vector<8xf32>
    %307 = vector.multi_reduction <add>, %306, %cst_104 [1] : vector<8x8xf32> to vector<8xf32>
    %308 = vector.shape_cast %307 : vector<8xf32> to vector<8x1xf32>
    %309 = vector.broadcast %308 : vector<8x1xf32> to vector<8x8xf32>
    %310 = arith.divf %306, %309 : vector<8x8xf32>
    %cst_105 = arith.constant dense<0.000000e+00> : vector<8x8xf32>
    %311 = tpu.matmul %310, %300, %cst_105 {dimension_numbers = #tpu.dot_dimension_numbers<[1], [0], [0], [1], [0, 0, 1, 1], [], []>} : vector<8x8xf32>, vector<8x8xf32>, vector<8x8xf32> -> vector<8x8xf32>
    %312 = tpu.concatenate %297, %311 in 0 : vector<8x8xf32>, vector<8x8xf32> -> vector<16x8xf32>
    %313 = vector.extract_strided_slice %206 {offsets = [16, 0], sizes = [8, 32], strides = [1, 1]} : vector<32x32xf32> to vector<8x32xf32>
    %cst_106 = arith.constant dense<0.000000e+00> : vector<16x32xf32>
    %314 = tpu.matmul %312, %313, %cst_106 {dimension_numbers = #tpu.dot_dimension_numbers<[1], [0], [0], [1], [0, 0, 1, 1], [], []>} : vector<16x8xf32>, vector<8x32xf32>, vector<16x32xf32> -> vector<16x32xf32>
    %315 = arith.addf %283, %314 : vector<16x32xf32>
    %316 = vector.extract_strided_slice %217 {offsets = [0, 24], sizes = [8, 8], strides = [1, 1]} : vector<16x96xf32> to vector<8x8xf32>
    %317 = vector.extract_strided_slice %217 {offsets = [0, 56], sizes = [8, 8], strides = [1, 1]} : vector<16x96xf32> to vector<8x8xf32>
    %318 = vector.extract_strided_slice %217 {offsets = [0, 88], sizes = [8, 8], strides = [1, 1]} : vector<16x96xf32> to vector<8x8xf32>
    %cst_107 = arith.constant dense<0.000000e+00> : vector<8x8xf32>
    %319 = tpu.matmul %316, %317, %cst_107 {dimension_numbers = #tpu.dot_dimension_numbers<[1], [1], [0], [0], [0, 0, 1, 0], [], []>} : vector<8x8xf32>, vector<8x8xf32>, vector<8x8xf32> -> vector<8x8xf32>
    %cst_108 = arith.constant dense<0xFF800000> : vector<8xf32>
    %320 = vector.multi_reduction <maximumf>, %319, %cst_108 [1] : vector<8x8xf32> to vector<8xf32>
    %321 = vector.shape_cast %320 : vector<8xf32> to vector<8x1xf32>
    %322 = vector.broadcast %321 : vector<8x1xf32> to vector<8x8xf32>
    %323 = arith.subf %319, %322 : vector<8x8xf32>
    %324 = math.exp %323 : vector<8x8xf32>
    %cst_109 = arith.constant dense<0.000000e+00> : vector<8xf32>
    %325 = vector.multi_reduction <add>, %324, %cst_109 [1] : vector<8x8xf32> to vector<8xf32>
    %326 = vector.shape_cast %325 : vector<8xf32> to vector<8x1xf32>
    %327 = vector.broadcast %326 : vector<8x1xf32> to vector<8x8xf32>
    %328 = arith.divf %324, %327 : vector<8x8xf32>
    %cst_110 = arith.constant dense<0.000000e+00> : vector<8x8xf32>
    %329 = tpu.matmul %328, %318, %cst_110 {dimension_numbers = #tpu.dot_dimension_numbers<[1], [0], [0], [1], [0, 0, 1, 1], [], []>} : vector<8x8xf32>, vector<8x8xf32>, vector<8x8xf32> -> vector<8x8xf32>
    %330 = vector.extract_strided_slice %217 {offsets = [8, 24], sizes = [8, 8], strides = [1, 1]} : vector<16x96xf32> to vector<8x8xf32>
    %331 = vector.extract_strided_slice %217 {offsets = [8, 56], sizes = [8, 8], strides = [1, 1]} : vector<16x96xf32> to vector<8x8xf32>
    %332 = vector.extract_strided_slice %217 {offsets = [8, 88], sizes = [8, 8], strides = [1, 1]} : vector<16x96xf32> to vector<8x8xf32>
    %cst_111 = arith.constant dense<0.000000e+00> : vector<8x8xf32>
    %333 = tpu.matmul %330, %331, %cst_111 {dimension_numbers = #tpu.dot_dimension_numbers<[1], [1], [0], [0], [0, 0, 1, 0], [], []>} : vector<8x8xf32>, vector<8x8xf32>, vector<8x8xf32> -> vector<8x8xf32>
    %cst_112 = arith.constant dense<0xFF800000> : vector<8xf32>
    %334 = vector.multi_reduction <maximumf>, %333, %cst_112 [1] : vector<8x8xf32> to vector<8xf32>
    %335 = vector.shape_cast %334 : vector<8xf32> to vector<8x1xf32>
    %336 = vector.broadcast %335 : vector<8x1xf32> to vector<8x8xf32>
    %337 = arith.subf %333, %336 : vector<8x8xf32>
    %338 = math.exp %337 : vector<8x8xf32>
    %cst_113 = arith.constant dense<0.000000e+00> : vector<8xf32>
    %339 = vector.multi_reduction <add>, %338, %cst_113 [1] : vector<8x8xf32> to vector<8xf32>
    %340 = vector.shape_cast %339 : vector<8xf32> to vector<8x1xf32>
    %341 = vector.broadcast %340 : vector<8x1xf32> to vector<8x8xf32>
    %342 = arith.divf %338, %341 : vector<8x8xf32>
    %cst_114 = arith.constant dense<0.000000e+00> : vector<8x8xf32>
    %343 = tpu.matmul %342, %332, %cst_114 {dimension_numbers = #tpu.dot_dimension_numbers<[1], [0], [0], [1], [0, 0, 1, 1], [], []>} : vector<8x8xf32>, vector<8x8xf32>, vector<8x8xf32> -> vector<8x8xf32>
    %344 = tpu.concatenate %329, %343 in 0 : vector<8x8xf32>, vector<8x8xf32> -> vector<16x8xf32>
    %345 = vector.extract_strided_slice %206 {offsets = [24, 0], sizes = [8, 32], strides = [1, 1]} : vector<32x32xf32> to vector<8x32xf32>
    %cst_115 = arith.constant dense<0.000000e+00> : vector<16x32xf32>
    %346 = tpu.matmul %344, %345, %cst_115 {dimension_numbers = #tpu.dot_dimension_numbers<[1], [0], [0], [1], [0, 0, 1, 1], [], []>} : vector<16x8xf32>, vector<8x32xf32>, vector<16x32xf32> -> vector<16x32xf32>
    %347 = arith.addf %315, %346 : vector<16x32xf32>
    %cst_116 = arith.constant dense<0.000000e+00> : vector<16xf32>
    %348 = vector.multi_reduction <add>, %347, %cst_116 [1] : vector<16x32xf32> to vector<16xf32>
    %349 = vector.shape_cast %348 : vector<16xf32> to vector<16x1xf32>
    %cst_117 = arith.constant 3.200000e+01 : f32
    %350 = vector.broadcast %cst_117 : f32 to vector<16x1xf32>
    %351 = arith.divf %349, %350 : vector<16x1xf32>
    %352 = vector.broadcast %351 : vector<16x1xf32> to vector<16x32xf32>
    %353 = arith.subf %347, %352 : vector<16x32xf32>
    %354 = arith.mulf %353, %353 : vector<16x32xf32>
    %cst_118 = arith.constant dense<0.000000e+00> : vector<16xf32>
    %355 = vector.multi_reduction <add>, %354, %cst_118 [1] : vector<16x32xf32> to vector<16xf32>
    %356 = vector.shape_cast %355 : vector<16xf32> to vector<16x1xf32>
    %cst_119 = arith.constant 3.200000e+01 : f32
    %357 = vector.broadcast %cst_119 : f32 to vector<16x1xf32>
    %358 = arith.divf %356, %357 : vector<16x1xf32>
    %cst_120 = arith.constant 9.99999974E-6 : f32
    %359 = vector.broadcast %cst_120 : f32 to vector<16x1xf32>
    %360 = arith.addf %358, %359 : vector<16x1xf32>
    %361 = math.rsqrt %360 : vector<16x1xf32>
    %362 = vector.broadcast %351 : vector<16x1xf32> to vector<16x32xf32>
    %363 = arith.subf %347, %362 : vector<16x32xf32>
    %364 = vector.broadcast %361 : vector<16x1xf32> to vector<16x32xf32>
    %365 = arith.mulf %363, %364 : vector<16x32xf32>
    %366 = vector.broadcast %210 : vector<1x32xf32> to vector<16x32xf32>
    %367 = arith.mulf %365, %366 : vector<16x32xf32>
    %368 = vector.broadcast %211 : vector<1x32xf32> to vector<16x32xf32>
    %369 = arith.addf %367, %368 : vector<16x32xf32>
    %c1_121 = arith.constant 1 : index
    %c0_122 = arith.constant 0 : index
    %c0_123 = arith.constant 0 : index
    %370 = vector.load %arg4[%c1_121, %c0_122, %c0_123] : memref<2x32x128xf32, #tpu.memory_space<vmem>>, vector<1x32x128xf32>
    %371 = vector.shape_cast %370 : vector<1x32x128xf32> to vector<32x128xf32>
    %cst_124 = arith.constant dense<0.000000e+00> : vector<16x128xf32>
    %372 = tpu.matmul %369, %371, %cst_124 {dimension_numbers = #tpu.dot_dimension_numbers<[1], [0], [0], [1], [0, 0, 1, 1], [], []>} : vector<16x32xf32>, vector<32x128xf32>, vector<16x128xf32> -> vector<16x128xf32>
    %373 = vector.broadcast %216 : vector<1x128xf32> to vector<16x128xf32>
    %374 = arith.addf %372, %373 : vector<16x128xf32>
    %cst_125 = arith.constant 0.000000e+00 : f32
    %375 = vector.broadcast %cst_125 : f32 to vector<16x128xf32>
    %376 = arith.maximumf %374, %375 : vector<16x128xf32>
    %c1_126 = arith.constant 1 : index
    %c0_127 = arith.constant 0 : index
    %c0_128 = arith.constant 0 : index
    %377 = vector.load %arg5[%c1_126, %c0_127, %c0_128] : memref<2x128x32xf32, #tpu.memory_space<vmem>>, vector<1x128x32xf32>
    %378 = vector.shape_cast %377 : vector<1x128x32xf32> to vector<128x32xf32>
    %cst_129 = arith.constant dense<0.000000e+00> : vector<16x32xf32>
    %379 = tpu.matmul %376, %378, %cst_129 {dimension_numbers = #tpu.dot_dimension_numbers<[1], [0], [0], [1], [0, 0, 1, 1], [], []>} : vector<16x128xf32>, vector<128x32xf32>, vector<16x32xf32> -> vector<16x32xf32>
    %380 = vector.broadcast %212 : vector<1x32xf32> to vector<16x32xf32>
    %381 = arith.addf %379, %380 : vector<16x32xf32>
    %382 = arith.addf %381, %369 : vector<16x32xf32>
    %cst_130 = arith.constant dense<0.000000e+00> : vector<16xf32>
    %383 = vector.multi_reduction <add>, %382, %cst_130 [1] : vector<16x32xf32> to vector<16xf32>
    %384 = vector.shape_cast %383 : vector<16xf32> to vector<16x1xf32>
    %cst_131 = arith.constant 3.200000e+01 : f32
    %385 = vector.broadcast %cst_131 : f32 to vector<16x1xf32>
    %386 = arith.divf %384, %385 : vector<16x1xf32>
    %387 = vector.broadcast %386 : vector<16x1xf32> to vector<16x32xf32>
    %388 = arith.subf %382, %387 : vector<16x32xf32>
    %389 = arith.mulf %388, %388 : vector<16x32xf32>
    %cst_132 = arith.constant dense<0.000000e+00> : vector<16xf32>
    %390 = vector.multi_reduction <add>, %389, %cst_132 [1] : vector<16x32xf32> to vector<16xf32>
    %391 = vector.shape_cast %390 : vector<16xf32> to vector<16x1xf32>
    %cst_133 = arith.constant 3.200000e+01 : f32
    %392 = vector.broadcast %cst_133 : f32 to vector<16x1xf32>
    %393 = arith.divf %391, %392 : vector<16x1xf32>
    %cst_134 = arith.constant 9.99999974E-6 : f32
    %394 = vector.broadcast %cst_134 : f32 to vector<16x1xf32>
    %395 = arith.addf %393, %394 : vector<16x1xf32>
    %396 = math.rsqrt %395 : vector<16x1xf32>
    %397 = vector.broadcast %386 : vector<16x1xf32> to vector<16x32xf32>
    %398 = arith.subf %382, %397 : vector<16x32xf32>
    %399 = vector.broadcast %396 : vector<16x1xf32> to vector<16x32xf32>
    %400 = arith.mulf %398, %399 : vector<16x32xf32>
    %401 = vector.broadcast %213 : vector<1x32xf32> to vector<16x32xf32>
    %402 = arith.mulf %400, %401 : vector<16x32xf32>
    %403 = vector.broadcast %214 : vector<1x32xf32> to vector<16x32xf32>
    %404 = arith.addf %402, %403 : vector<16x32xf32>
    %c0_135 = arith.constant 0 : index
    %c0_136 = arith.constant 0 : index
    %405 = vector.load %arg8[%c0_135, %c0_136] : memref<16x32xf32, #tpu.memory_space<vmem>>, vector<16x32xf32>
    tpu.vector_store %arg8[%c0_135, %c0_136], %404 {strides = array<i32>} : memref<16x32xf32, #tpu.memory_space<vmem>>, vector<16x32xf32>,
    return
  }
  func.func @transform_0(%arg0: i32) -> (i32, i32) {
    %c0_i32 = arith.constant 0 : i32
    %c0_i32_0 = arith.constant 0 : i32
    return %arg0, %c0_i32 : i32, i32
  }
  func.func @transform_1(%arg0: i32) -> (i32, i32, i32) {
    %c0_i32 = arith.constant 0 : i32
    %c0_i32_0 = arith.constant 0 : i32
    %c0_i32_1 = arith.constant 0 : i32
    %c0_i32_2 = arith.constant 0 : i32
    return %c0_i32, %c0_i32_0, %c0_i32_1 : i32, i32, i32
  }
  func.func @transform_2(%arg0: i32) -> (i32, i32, i32) {
    %c0_i32 = arith.constant 0 : i32
    %c0_i32_0 = arith.constant 0 : i32
    %c0_i32_1 = arith.constant 0 : i32
    %c0_i32_2 = arith.constant 0 : i32
    return %c0_i32, %c0_i32_0, %c0_i32_1 : i32, i32, i32
  }
  func.func @transform_3(%arg0: i32) -> (i32, i32, i32) {
    %c0_i32 = arith.constant 0 : i32
    %c0_i32_0 = arith.constant 0 : i32
    %c0_i32_1 = arith.constant 0 : i32
    %c0_i32_2 = arith.constant 0 : i32
    return %c0_i32, %c0_i32_0, %c0_i32_1 : i32, i32, i32
  }
  func.func @transform_4(%arg0: i32) -> (i32, i32, i32) {
    %c0_i32 = arith.constant 0 : i32
    %c0_i32_0 = arith.constant 0 : i32
    %c0_i32_1 = arith.constant 0 : i32
    %c0_i32_2 = arith.constant 0 : i32
    return %c0_i32, %c0_i32_0, %c0_i32_1 : i32, i32, i32
  }
  func.func @transform_5(%arg0: i32) -> (i32, i32, i32) {
    %c0_i32 = arith.constant 0 : i32
    %c0_i32_0 = arith.constant 0 : i32
    %c0_i32_1 = arith.constant 0 : i32
    %c0_i32_2 = arith.constant 0 : i32
    return %c0_i32, %c0_i32_0, %c0_i32_1 : i32, i32, i32
  }
  func.func @transform_6(%arg0: i32) -> (i32, i32, i32) {
    %c0_i32 = arith.constant 0 : i32
    %c0_i32_0 = arith.constant 0 : i32
    %c0_i32_1 = arith.constant 0 : i32
    %c0_i32_2 = arith.constant 0 : i32
    return %c0_i32, %c0_i32_0, %c0_i32_1 : i32, i32, i32
  }
  func.func @transform_7(%arg0: i32) -> (i32, i32) {
    %c0_i32 = arith.constant 0 : i32
    %c0_i32_0 = arith.constant 0 : i32
    return %arg0, %c0_i32 : i32, i32
  }
}

</mosaic_0001>

<llo_original>
// kernel: tpu_custom_call.1
$region0: #{tpu_custom_call.1}
  #allocation0 [shape = 'u32[]', space=smem, size = 0x4, offset = 0x4, fixed_abs, tag = 'smem constant byte address 0x4 - core index']
  #allocation1 [shape = 'u32[144,128]{1,0:T(1,128)}', space=vmem, size = 0x12000, scoped, tag = 'internal scratch']
  %s0 = inlined_call_operand.vmem [shape: f32[16,32], index: 0, kind: input, shape index: {}]
  %s1 = inlined_call_operand.vmem [shape: f32[2,32,96], index: 1, kind: input, shape index: {}]
  %s2 = inlined_call_operand.vmem [shape: f32[2,32,32], index: 2, kind: input, shape index: {}]
  %s3 = inlined_call_operand.vmem [shape: f32[2,32,128], index: 3, kind: input, shape index: {}]
  %s4 = inlined_call_operand.vmem [shape: f32[2,128,32], index: 4, kind: input, shape index: {}]
  %s5 = inlined_call_operand.vmem [shape: f32[2,6,32], index: 5, kind: input, shape index: {}]
  %s6 = inlined_call_operand.vmem [shape: f32[2,1,128], index: 6, kind: input, shape index: {}]
  %s7 = inlined_call_operand.hbm [shape: f32[16,32], index: 7, kind: output, shape index: {}]
  %s8 = sld [smem:[#allocation0]]
  $region38: #{tpu_custom_call.1} parent=0
    _
  %s10 = ssub.s32 1, %s8
  %s11 = scalar_select 0, %s10, %s8
  $region1: #{tpu_custom_call.1} parent=0
    #allocation2 [shape = 'u8[8192]{0}', space=vmem, size = 0x2000, scoped, tag = 'output window, operand 0, single buffered']
    #allocation3 [shape = 's32[1]{0}', space=sflag, size = 0x4, scoped, tag = 'scoped memory for tpu_custom_call.1']
    %12 = vsyncpa [#allocation3], 0
    // Predicated region
    $region2: #{tpu_custom_call.1} parent=1 // pred_check
      _
    $region3: #{tpu_custom_call.1} parent=1 // pred_check_branch
      %14 = sbr.rel (0) target = $region5
    $region4: #{tpu_custom_call.1} parent=1 // pred_region
      _
    $region5: #{tpu_custom_call.1} parent=1 // pred_fallthru
      _
    // Predicated region
    $region6: #{tpu_custom_call.1} parent=1 // pred_check
      _
    $region7: #{tpu_custom_call.1} parent=1 // pred_check_branch
      %16 = sbr.rel (0) target = $region9
    $region8: #{tpu_custom_call.1} parent=1 // pred_region
      _
    $region9: #{tpu_custom_call.1} parent=1 // pred_fallthru
      _
    // Predicated region
    $region10: #{tpu_custom_call.1} parent=1 // pred_check
      _
    $region11: #{tpu_custom_call.1} parent=1 // pred_check_branch
      %18 = sbr.rel (0) target = $region13
    $region12: #{tpu_custom_call.1} parent=1 // pred_region
      _
    $region13: #{tpu_custom_call.1} parent=1 // pred_fallthru
      _
    // Predicated region
    $region14: #{tpu_custom_call.1} parent=1 // pred_check
      _
    $region15: #{tpu_custom_call.1} parent=1 // pred_check_branch
      %20 = sbr.rel (0) target = $region17
    $region16: #{tpu_custom_call.1} parent=1 // pred_region
      _
    $region17: #{tpu_custom_call.1} parent=1 // pred_fallthru
      _
    // Predicated region
    $region18: #{tpu_custom_call.1} parent=1 // pred_check
      _
    $region19: #{tpu_custom_call.1} parent=1 // pred_check_branch
      %22 = sbr.rel (0) target = $region21
    $region20: #{tpu_custom_call.1} parent=1 // pred_region
      _
    $region21: #{tpu_custom_call.1} parent=1 // pred_fallthru
      _
    // Predicated region
    $region22: #{tpu_custom_call.1} parent=1 // pred_check
      _
    $region23: #{tpu_custom_call.1} parent=1 // pred_check_branch
      %24 = sbr.rel (0) target = $region25
    $region24: #{tpu_custom_call.1} parent=1 // pred_region
      _
    $region25: #{tpu_custom_call.1} parent=1 // pred_fallthru
      _
    // Predicated region
    $region26: #{tpu_custom_call.1} parent=1 // pred_check
      _
    $region27: #{tpu_custom_call.1} parent=1 // pred_check_branch
      %26 = sbr.rel (0) target = $region29
    $region28: #{tpu_custom_call.1} parent=1 // pred_region
      _
    $region29: #{tpu_custom_call.1} parent=1 // pred_fallthru
      _
    %v27 = vld [vmem:[%s0] sm:$0xff]
    %v28 = vld [vmem:[%s0 + $0x8] sm:$0xff]
    %v29 = vld [vmem:[%s1] sm:$0xff]
    %v30 = vld [vmem:[%s1 + $0x8] sm:$0xff]
    %v31 = vld [vmem:[%s1 + $0x10] sm:$0xff]
    %v32 = vld [vmem:[%s1 + $0x18] sm:$0xff]
    %v33 = vld [vmem:[%s2] sm:$0xff]
    %v34 = vld [vmem:[%s2 + $0x8] sm:$0xff]
    %v35 = vld [vmem:[%s2 + $0x10] sm:$0xff]
    %v36 = vld [vmem:[%s2 + $0x18] sm:$0xff]
    %v37 = vld [vmem:[%s5] sm:$0x3f]
    %v38 = vld [vmem:[%s6] sm:$0x1]
    %vm39 = vcmask 261120
    %v41 = vsel %vm39, %v27, 0
    %v44 = vsel %vm39, %v28, 0
    %46 = vmatprep.subr.mxu0 0.0
    %47 = vmatpush1.msra.mxu0 %v29
    %48 = vmatprep.subr.mxu0 0.0
    %49 = vmatpush1.msra.mxu0 %v30
    %50 = vmatprep.subr.mxu0 0.0
    %51 = vmatpush1.msra.mxu0 %v31
    %52 = vmatprep.subr.mxu0 0.0
    %53 = vmatpush1.msra.mxu0 %v32
    %54 = vmatprep.subr.mxu0 0.0
    %55 = vmatpush1.msra.mxu0 0.0
    %56 = vmatprep.subr.mxu0 0.0
    %57 = vmatpush1.msra.mxu0 0.0
    %58 = vmatprep.subr.mxu0 0.0
    %59 = vmatpush1.msra.mxu0 0.0
    %60 = vmatprep.subr.mxu0 0.0
    %61 = vmatpush1.msra.mxu0 0.0
    %62 = vmatprep.subr.mxu0 0.0
    %63 = vmatpush1.msra.mxu0 0.0
    %64 = vmatprep.subr.mxu0 0.0
    %65 = vmatpush1.msra.mxu0 0.0
    %66 = vmatprep.subr.mxu0 0.0
    %67 = vmatpush1.msra.mxu0 0.0
    %68 = vmatprep.subr.mxu0 0.0
    %69 = vmatpush1.msra.mxu0 0.0
    %70 = vmatprep.subr.mxu0 0.0
    %71 = vmatpush1.msra.mxu0 0.0
    %72 = vmatprep.subr.mxu0 0.0
    %73 = vmatpush1.msra.mxu0 0.0
    %74 = vmatprep.subr.mxu0 0.0
    %75 = vmatpush1.msra.mxu0 0.0
    %76 = vmatprep.subr.mxu0 0.0
    %77 = vmatpush1.msra.mxu0 0.0
    %78 = vmatprep.subr.mxu0 0.0
    %79 = vmatpush1.msra.mxu0 0.0
    %80 = vmatprep.subr.mxu0 0.0
    %81 = vmatpush1.msra.mxu0 0.0
    %82 = vmatprep.subr.mxu0 0.0
    %83 = vmatpush1.msra.mxu0 0.0
    %84 = vmatprep.subr.mxu0 0.0
    %85 = vmatpush1.msra.mxu0 0.0
    %86 = vmatprep.subr.mxu0 0.0
    %87 = vmatpush1.msra.mxu0 0.0
    %88 = vmatprep.subr.mxu0 0.0
    %89 = vmatpush1.msra.mxu0 0.0
    %90 = vmatprep.subr.mxu0 0.0
    %91 = vmatpush1.msra.mxu0 0.0
    %92 = vmatprep.subr.mxu0 0.0
    %93 = vmatpush1.msra.mxu0 0.0
    %94 = vmatprep.subr.mxu0 0.0
    %95 = vmatpush1.msra.mxu0 0.0
    %96 = vmatprep.subr.mxu0 0.0
    %97 = vmatpush1.msra.mxu0 0.0
    %98 = vmatprep.subr.mxu0 0.0
    %99 = vmatpush1.msra.mxu0 0.0
    %100 = vmatprep.subr.mxu0 0.0
    %101 = vmatpush1.msra.mxu0 0.0
    %102 = vmatprep.subr.mxu0 0.0
    %103 = vmatpush1.msra.mxu0 0.0
    %104 = vmatprep.subr.mxu0 0.0
    %105 = vmatpush1.msra.mxu0 0.0
    %106 = vmatprep.subr.mxu0 0.0
    %107 = vmatpush1.msra.mxu0 0.0
    %108 = vmatprep.subr.mxu0 0.0
    %109 = vmatpush1.msra.mxu0 0.0
    %110 = vmatprep.mubr.f32.mxu0 0.0
    %111 = vmatmul.mubr.f32.gmra.mrb[0].mxu0 %v41
    %v112 = vpop.f32.mrb[0].mxu0
    %v113 = vadd.f32 0.0, %v112
    %v114 = vpop.f32.mrb[0].mxu0
    %115 = vmatprep.mubr.f32.mxu0 0.0
    %116 = vmatmul.mubr.f32.gmra.mrb[0].mxu0 %v44
    %v117 = vpop.f32.mrb[0].mxu0
    %v118 = vadd.f32 0.0, %v117
    %v119 = vpop.f32.mrb[0].mxu0
    %120 = vdwg.mxu0
    %v121 = vlaneseq
    %v122 = vshrl.u32 %v121, 7
    %v123 = vsub.s32 0, %v122
    %v124 = vrot.slane %v37, %v123
    %v125 = vadd.f32 %v27, %v124
    %v126 = vadd.f32 %v28, %v124
    %128 = vrot.lane.b32.xlu0 %v113, 96
    %v129 = vpop.permute.xlu0 %128
    %vm130 = vcmask 64512
    %v131 = vsel %vm130, %v113, 0
    %v133 = vsel %vm130, %v129, 0
    %135 = vmatprep.subr.mxu0 0.0
    %136 = vmatpush1.xpose.msra.mxu0 %v133
    %137 = vmatprep.subr.mxu0 0.0
    %138 = vmatpush1.xpose.msra.mxu0 0.0
    %139 = vmatprep.subr.mxu0 0.0
    %140 = vmatpush1.xpose.msra.mxu0 0.0
    %141 = vmatprep.subr.mxu0 0.0
    %142 = vmatpush1.xpose.msra.mxu0 0.0
    %143 = vmatprep.subr.mxu0 0.0
    %144 = vmatpush1.xpose.msra.mxu0 0.0
    %145 = vmatprep.subr.mxu0 0.0
    %146 = vmatpush1.xpose.msra.mxu0 0.0
    %147 = vmatprep.subr.mxu0 0.0
    %148 = vmatpush1.xpose.msra.mxu0 0.0
    %149 = vmatprep.subr.mxu0 0.0
    %150 = vmatpush1.xpose.msra.mxu0 0.0
    %151 = vmatprep.subr.mxu0 0.0
    %152 = vmatpush1.xpose.msra.mxu0 0.0
    %153 = vmatprep.subr.mxu0 0.0
    %154 = vmatpush1.xpose.msra.mxu0 0.0
    %155 = vmatprep.subr.mxu0 0.0
    %156 = vmatpush1.xpose.msra.mxu0 0.0
    %157 = vmatprep.subr.mxu0 0.0
    %158 = vmatpush1.xpose.msra.mxu0 0.0
    %159 = vmatprep.subr.mxu0 0.0
    %160 = vmatpush1.xpose.msra.mxu0 0.0
    %161 = vmatprep.subr.mxu0 0.0
    %162 = vmatpush1.xpose.msra.mxu0 0.0
    %163 = vmatprep.subr.mxu0 0.0
    %164 = vmatpush1.xpose.msra.mxu0 0.0
    %165 = vmatprep.subr.mxu0 0.0
    %166 = vmatpush1.xpose.msra.mxu0 0.0
    %167 = vmatprep.subr.mxu0 0.0
    %168 = vmatpush1.xpose.msra.mxu0 0.0
    %169 = vmatprep.subr.mxu0 0.0
    %170 = vmatpush1.xpose.msra.mxu0 0.0
    %171 = vmatprep.subr.mxu0 0.0
    %172 = vmatpush1.xpose.msra.mxu0 0.0
    %173 = vmatprep.subr.mxu0 0.0
    %174 = vmatpush1.xpose.msra.mxu0 0.0
    %175 = vmatprep.subr.mxu0 0.0
    %176 = vmatpush1.xpose.msra.mxu0 0.0
    %177 = vmatprep.subr.mxu0 0.0
    %178 = vmatpush1.xpose.msra.mxu0 0.0
    %179 = vmatprep.subr.mxu0 0.0
    %180 = vmatpush1.xpose.msra.mxu0 0.0
    %181 = vmatprep.subr.mxu0 0.0
    %182 = vmatpush1.xpose.msra.mxu0 0.0
    %183 = vmatprep.subr.mxu0 0.0
    %184 = vmatpush1.xpose.msra.mxu0 0.0
    %185 = vmatprep.subr.mxu0 0.0
    %186 = vmatpush1.xpose.msra.mxu0 0.0
    %187 = vmatprep.subr.mxu0 0.0
    %188 = vmatpush1.xpose.msra.mxu0 0.0
    %189 = vmatprep.subr.mxu0 0.0
    %190 = vmatpush1.xpose.msra.mxu0 0.0
    %191 = vmatprep.subr.mxu0 0.0
    %192 = vmatpush1.xpose.msra.mxu0 0.0
    %193 = vmatprep.subr.mxu0 0.0
    %194 = vmatpush1.xpose.msra.mxu0 0.0
    %195 = vmatprep.subr.mxu0 0.0
    %196 = vmatpush1.xpose.msra.mxu0 0.0
    %197 = vmatprep.subr.mxu0 0.0
    %198 = vmatpush1.xpose.msra.mxu0 0.0
    %199 = vmatprep.mubr.f32.mxu0 0.0
    %200 = vmatmul.mubr.f32.gmra.mrb[0].mxu0 %v131
    %v201 = vpop.f32.mrb[0].mxu0
    %v202 = vadd.f32 0.0, %v201
    %v203 = vpop.f32.mrb[0].mxu0
    %204 = vdwg.mxu0
    %v205 = vsel %vm130, %v202, -inf
    %206 = vmax.xlane.f32.xlu0 %v205
    %v207 = vpop.xlane.xlu0 %206
    %v208 = vsub.f32 %v202, %v207
    %v209 = vmul.f32 %v208, 1.442695
    %v210 = vpow.pop %v209
    %v211 = vsel %vm130, %v210, 0.0
    %212 = vadd.xlane.f32.xlu0 %v211
    %v213 = vpop.xlane.xlu0 %212
    %v214 = vrcp.pop %v213
    %v215 = vmul.f32 %v210, %v214
    %216 = vrot.lane.b32.xlu0 %v113, 64
    %v217 = vpop.permute.xlu0 %216
    %v220 = vsel %vm130, %v215, 0
    %222 = vmatprep.subr.mxu0 0.0
    %223 = vmatpush1.msra.mxu0 %v217
    %224 = vmatprep.subr.mxu0 0.0
    %225 = vmatpush1.msra.mxu0 0.0
    %226 = vmatprep.subr.mxu0 0.0
    %227 = vmatpush1.msra.mxu0 0.0
    %228 = vmatprep.subr.mxu0 0.0
    %229 = vmatpush1.msra.mxu0 0.0
    %230 = vmatprep.subr.mxu0 0.0
    %231 = vmatpush1.msra.mxu0 0.0
    %232 = vmatprep.subr.mxu0 0.0
    %233 = vmatpush1.msra.mxu0 0.0
    %234 = vmatprep.subr.mxu0 0.0
    %235 = vmatpush1.msra.mxu0 0.0
    %236 = vmatprep.subr.mxu0 0.0
    %237 = vmatpush1.msra.mxu0 0.0
    %238 = vmatprep.subr.mxu0 0.0
    %239 = vmatpush1.msra.mxu0 0.0
    %240 = vmatprep.subr.mxu0 0.0
    %241 = vmatpush1.msra.mxu0 0.0
    %242 = vmatprep.subr.mxu0 0.0
    %243 = vmatpush1.msra.mxu0 0.0
    %244 = vmatprep.subr.mxu0 0.0
    %245 = vmatpush1.msra.mxu0 0.0
    %246 = vmatprep.subr.mxu0 0.0
    %247 = vmatpush1.msra.mxu0 0.0
    %248 = vmatprep.subr.mxu0 0.0
    %249 = vmatpush1.msra.mxu0 0.0
    %250 = vmatprep.subr.mxu0 0.0
    %251 = vmatpush1.msra.mxu0 0.0
    %252 = vmatprep.subr.mxu0 0.0
    %253 = vmatpush1.msra.mxu0 0.0
    %254 = vmatprep.subr.mxu0 0.0
    %255 = vmatpush1.msra.mxu0 0.0
    %256 = vmatprep.subr.mxu0 0.0
    %257 = vmatpush1.msra.mxu0 0.0
    %258 = vmatprep.subr.mxu0 0.0
    %259 = vmatpush1.msra.mxu0 0.0
    %260 = vmatprep.subr.mxu0 0.0
    %261 = vmatpush1.msra.mxu0 0.0
    %262 = vmatprep.subr.mxu0 0.0
    %263 = vmatpush1.msra.mxu0 0.0
    %264 = vmatprep.subr.mxu0 0.0
    %265 = vmatpush1.msra.mxu0 0.0
    %266 = vmatprep.subr.mxu0 0.0
    %267 = vmatpush1.msra.mxu0 0.0
    %268 = vmatprep.subr.mxu0 0.0
    %269 = vmatpush1.msra.mxu0 0.0
    %270 = vmatprep.subr.mxu0 0.0
    %271 = vmatpush1.msra.mxu0 0.0
    %272 = vmatprep.subr.mxu0 0.0
    %273 = vmatpush1.msra.mxu0 0.0
    %274 = vmatprep.subr.mxu0 0.0
    %275 = vmatpush1.msra.mxu0 0.0
    %276 = vmatprep.subr.mxu0 0.0
    %277 = vmatpush1.msra.mxu0 0.0
    %278 = vmatprep.subr.mxu0 0.0
    %279 = vmatpush1.msra.mxu0 0.0
    %280 = vmatprep.subr.mxu0 0.0
    %281 = vmatpush1.msra.mxu0 0.0
    %282 = vmatprep.subr.mxu0 0.0
    %283 = vmatpush1.msra.mxu0 0.0
    %284 = vmatprep.subr.mxu0 0.0
    %285 = vmatpush1.msra.mxu0 0.0
    %286 = vmatprep.mubr.f32.mxu0 0.0
    %287 = vmatmul.mubr.f32.gmra.mrb[0].mxu0 %v220
    %v288 = vpop.f32.mrb[0].mxu0
    %v289 = vadd.f32 0.0, %v288
    %v290 = vpop.f32.mrb[0].mxu0
    %291 = vdwg.mxu0
    %293 = vrot.lane.b32.xlu0 %v118, 96
    %v294 = vpop.permute.xlu0 %293
    %v295 = vsel %vm130, %v118, 0
    %v297 = vsel %vm130, %v294, 0
    %299 = vmatprep.subr.mxu0 0.0
    %300 = vmatpush1.xpose.msra.mxu0 %v297
    %301 = vmatprep.subr.mxu0 0.0
    %302 = vmatpush1.xpose.msra.mxu0 0.0
    %303 = vmatprep.subr.mxu0 0.0
    %304 = vmatpush1.xpose.msra.mxu0 0.0
    %305 = vmatprep.subr.mxu0 0.0
    %306 = vmatpush1.xpose.msra.mxu0 0.0
    %307 = vmatprep.subr.mxu0 0.0
    %308 = vmatpush1.xpose.msra.mxu0 0.0
    %309 = vmatprep.subr.mxu0 0.0
    %310 = vmatpush1.xpose.msra.mxu0 0.0
    %311 = vmatprep.subr.mxu0 0.0
    %312 = vmatpush1.xpose.msra.mxu0 0.0
    %313 = vmatprep.subr.mxu0 0.0
    %314 = vmatpush1.xpose.msra.mxu0 0.0
    %315 = vmatprep.subr.mxu0 0.0
    %316 = vmatpush1.xpose.msra.mxu0 0.0
    %317 = vmatprep.subr.mxu0 0.0
    %318 = vmatpush1.xpose.msra.mxu0 0.0
    %319 = vmatprep.subr.mxu0 0.0
    %320 = vmatpush1.xpose.msra.mxu0 0.0
    %321 = vmatprep.subr.mxu0 0.0
    %322 = vmatpush1.xpose.msra.mxu0 0.0
    %323 = vmatprep.subr.mxu0 0.0
    %324 = vmatpush1.xpose.msra.mxu0 0.0
    %325 = vmatprep.subr.mxu0 0.0
    %326 = vmatpush1.xpose.msra.mxu0 0.0
    %327 = vmatprep.subr.mxu0 0.0
    %328 = vmatpush1.xpose.msra.mxu0 0.0
    %329 = vmatprep.subr.mxu0 0.0
    %330 = vmatpush1.xpose.msra.mxu0 0.0
    %331 = vmatprep.subr.mxu0 0.0
    %332 = vmatpush1.xpose.msra.mxu0 0.0
    %333 = vmatprep.subr.mxu0 0.0
    %334 = vmatpush1.xpose.msra.mxu0 0.0
    %335 = vmatprep.subr.mxu0 0.0
    %336 = vmatpush1.xpose.msra.mxu0 0.0
    %337 = vmatprep.subr.mxu0 0.0
    %338 = vmatpush1.xpose.msra.mxu0 0.0
    %339 = vmatprep.subr.mxu0 0.0
    %340 = vmatpush1.xpose.msra.mxu0 0.0
    %341 = vmatprep.subr.mxu0 0.0
    %342 = vmatpush1.xpose.msra.mxu0 0.0
    %343 = vmatprep.subr.mxu0 0.0
    %344 = vmatpush1.xpose.msra.mxu0 0.0
    %345 = vmatprep.subr.mxu0 0.0
    %346 = vmatpush1.xpose.msra.mxu0 0.0
    %347 = vmatprep.subr.mxu0 0.0
    %348 = vmatpush1.xpose.msra.mxu0 0.0
    %349 = vmatprep.subr.mxu0 0.0
    %350 = vmatpush1.xpose.msra.mxu0 0.0
    %351 = vmatprep.subr.mxu0 0.0
    %352 = vmatpush1.xpose.msra.mxu0 0.0
    %353 = vmatprep.subr.mxu0 0.0
    %354 = vmatpush1.xpose.msra.mxu0 0.0
    %355 = vmatprep.subr.mxu0 0.0
    %356 = vmatpush1.xpose.msra.mxu0 0.0
    %357 = vmatprep.subr.mxu0 0.0
    %358 = vmatpush1.xpose.msra.mxu0 0.0
    %359 = vmatprep.subr.mxu0 0.0
    %360 = vmatpush1.xpose.msra.mxu0 0.0
    %361 = vmatprep.subr.mxu0 0.0
    %362 = vmatpush1.xpose.msra.mxu0 0.0
    %363 = vmatprep.mubr.f32.mxu0 0.0
    %364 = vmatmul.mubr.f32.gmra.mrb[0].mxu0 %v295
    %v365 = vpop.f32.mrb[0].mxu0
    %v366 = vadd.f32 0.0, %v365
    %v367 = vpop.f32.mrb[0].mxu0
    %368 = vdwg.mxu0
    %v369 = vsel %vm130, %v366, -inf
    %370 = vmax.xlane.f32.xlu0 %v369
    %v371 = vpop.xlane.xlu0 %370
    %v372 = vsub.f32 %v366, %v371
    %v373 = vmul.f32 %v372, 1.442695
    %v374 = vpow.pop %v373
    %v375 = vsel %vm130, %v374, 0.0
    %376 = vadd.xlane.f32.xlu0 %v375
    %v377 = vpop.xlane.xlu0 %376
    %v378 = vrcp.pop %v377
    %v379 = vmul.f32 %v374, %v378
    %380 = vrot.lane.b32.xlu0 %v118, 64
    %v381 = vpop.permute.xlu0 %380
    %v384 = vsel %vm130, %v379, 0
    %386 = vmatprep.subr.mxu0 0.0
    %387 = vmatpush1.msra.mxu0 %v381
    %388 = vmatprep.subr.mxu0 0.0
    %389 = vmatpush1.msra.mxu0 0.0
    %390 = vmatprep.subr.mxu0 0.0
    %391 = vmatpush1.msra.mxu0 0.0
    %392 = vmatprep.subr.mxu0 0.0
    %393 = vmatpush1.msra.mxu0 0.0
    %394 = vmatprep.subr.mxu0 0.0
    %395 = vmatpush1.msra.mxu0 0.0
    %396 = vmatprep.subr.mxu0 0.0
    %397 = vmatpush1.msra.mxu0 0.0
    %398 = vmatprep.subr.mxu0 0.0
    %399 = vmatpush1.msra.mxu0 0.0
    %400 = vmatprep.subr.mxu0 0.0
    %401 = vmatpush1.msra.mxu0 0.0
    %402 = vmatprep.subr.mxu0 0.0
    %403 = vmatpush1.msra.mxu0 0.0
    %404 = vmatprep.subr.mxu0 0.0
    %405 = vmatpush1.msra.mxu0 0.0
    %406 = vmatprep.subr.mxu0 0.0
    %407 = vmatpush1.msra.mxu0 0.0
    %408 = vmatprep.subr.mxu0 0.0
    %409 = vmatpush1.msra.mxu0 0.0
    %410 = vmatprep.subr.mxu0 0.0
    %411 = vmatpush1.msra.mxu0 0.0
    %412 = vmatprep.subr.mxu0 0.0
    %413 = vmatpush1.msra.mxu0 0.0
    %414 = vmatprep.subr.mxu0 0.0
    %415 = vmatpush1.msra.mxu0 0.0
    %416 = vmatprep.subr.mxu0 0.0
    %417 = vmatpush1.msra.mxu0 0.0
    %418 = vmatprep.subr.mxu0 0.0
    %419 = vmatpush1.msra.mxu0 0.0
    %420 = vmatprep.subr.mxu0 0.0
    %421 = vmatpush1.msra.mxu0 0.0
    %422 = vmatprep.subr.mxu0 0.0
    %423 = vmatpush1.msra.mxu0 0.0
    %424 = vmatprep.subr.mxu0 0.0
    %425 = vmatpush1.msra.mxu0 0.0
    %426 = vmatprep.subr.mxu0 0.0
    %427 = vmatpush1.msra.mxu0 0.0
    %428 = vmatprep.subr.mxu0 0.0
    %429 = vmatpush1.msra.mxu0 0.0
    %430 = vmatprep.subr.mxu0 0.0
    %431 = vmatpush1.msra.mxu0 0.0
    %432 = vmatprep.subr.mxu0 0.0
    %433 = vmatpush1.msra.mxu0 0.0
    %434 = vmatprep.subr.mxu0 0.0
    %435 = vmatpush1.msra.mxu0 0.0
    %436 = vmatprep.subr.mxu0 0.0
    %437 = vmatpush1.msra.mxu0 0.0
    %438 = vmatprep.subr.mxu0 0.0
    %439 = vmatpush1.msra.mxu0 0.0
    %440 = vmatprep.subr.mxu0 0.0
    %441 = vmatpush1.msra.mxu0 0.0
    %442 = vmatprep.subr.mxu0 0.0
    %443 = vmatpush1.msra.mxu0 0.0
    %444 = vmatprep.subr.mxu0 0.0
    %445 = vmatpush1.msra.mxu0 0.0
    %446 = vmatprep.subr.mxu0 0.0
    %447 = vmatpush1.msra.mxu0 0.0
    %448 = vmatprep.subr.mxu0 0.0
    %449 = vmatpush1.msra.mxu0 0.0
    %450 = vmatprep.mubr.f32.mxu0 0.0
    %451 = vmatmul.mubr.f32.gmra.mrb[0].mxu0 %v384
    %v452 = vpop.f32.mrb[0].mxu0
    %v453 = vadd.f32 0.0, %v452
    %v454 = vpop.f32.mrb[0].mxu0
    %455 = vdwg.mxu0
    %v457 = vsel %vm130, %v289, 0
    %v460 = vsel %vm130, %v453, 0
    %462 = vmatprep.subr.mxu0 0.0
    %463 = vmatpush1.msra.mxu0 %v33
    %464 = vmatprep.subr.mxu0 0.0
    %465 = vmatpush1.msra.mxu0 0.0
    %466 = vmatprep.subr.mxu0 0.0
    %467 = vmatpush1.msra.mxu0 0.0
    %468 = vmatprep.subr.mxu0 0.0
    %469 = vmatpush1.msra.mxu0 0.0
    %470 = vmatprep.subr.mxu0 0.0
    %471 = vmatpush1.msra.mxu0 0.0
    %472 = vmatprep.subr.mxu0 0.0
    %473 = vmatpush1.msra.mxu0 0.0
    %474 = vmatprep.subr.mxu0 0.0
    %475 = vmatpush1.msra.mxu0 0.0
    %476 = vmatprep.subr.mxu0 0.0
    %477 = vmatpush1.msra.mxu0 0.0
    %478 = vmatprep.subr.mxu0 0.0
    %479 = vmatpush1.msra.mxu0 0.0
    %480 = vmatprep.subr.mxu0 0.0
    %481 = vmatpush1.msra.mxu0 0.0
    %482 = vmatprep.subr.mxu0 0.0
    %483 = vmatpush1.msra.mxu0 0.0
    %484 = vmatprep.subr.mxu0 0.0
    %485 = vmatpush1.msra.mxu0 0.0
    %486 = vmatprep.subr.mxu0 0.0
    %487 = vmatpush1.msra.mxu0 0.0
    %488 = vmatprep.subr.mxu0 0.0
    %489 = vmatpush1.msra.mxu0 0.0
    %490 = vmatprep.subr.mxu0 0.0
    %491 = vmatpush1.msra.mxu0 0.0
    %492 = vmatprep.subr.mxu0 0.0
    %493 = vmatpush1.msra.mxu0 0.0
    %494 = vmatprep.subr.mxu0 0.0
    %495 = vmatpush1.msra.mxu0 0.0
    %496 = vmatprep.subr.mxu0 0.0
    %497 = vmatpush1.msra.mxu0 0.0
    %498 = vmatprep.subr.mxu0 0.0
    %499 = vmatpush1.msra.mxu0 0.0
    %500 = vmatprep.subr.mxu0 0.0
    %501 = vmatpush1.msra.mxu0 0.0
    %502 = vmatprep.subr.mxu0 0.0
    %503 = vmatpush1.msra.mxu0 0.0
    %504 = vmatprep.subr.mxu0 0.0
    %505 = vmatpush1.msra.mxu0 0.0
    %506 = vmatprep.subr.mxu0 0.0
    %507 = vmatpush1.msra.mxu0 0.0
    %508 = vmatprep.subr.mxu0 0.0
    %509 = vmatpush1.msra.mxu0 0.0
    %510 = vmatprep.subr.mxu0 0.0
    %511 = vmatpush1.msra.mxu0 0.0
    %512 = vmatprep.subr.mxu0 0.0
    %513 = vmatpush1.msra.mxu0 0.0
    %514 = vmatprep.subr.mxu0 0.0
    %515 = vmatpush1.msra.mxu0 0.0
    %516 = vmatprep.subr.mxu0 0.0
    %517 = vmatpush1.msra.mxu0 0.0
    %518 = vmatprep.subr.mxu0 0.0
    %519 = vmatpush1.msra.mxu0 0.0
    %520 = vmatprep.subr.mxu0 0.0
    %521 = vmatpush1.msra.mxu0 0.0
    %522 = vmatprep.subr.mxu0 0.0
    %523 = vmatpush1.msra.mxu0 0.0
    %524 = vmatprep.subr.mxu0 0.0
    %525 = vmatpush1.msra.mxu0 0.0
    %526 = vmatprep.mubr.f32.mxu0 0.0
    %527 = vmatmul.mubr.f32.gmra.mrb[0].mxu0 %v457
    %v528 = vpop.f32.mrb[0].mxu0
    %v529 = vadd.f32 0.0, %v528
    %v530 = vpop.f32.mrb[0].mxu0
    %531 = vmatprep.mubr.f32.mxu0 0.0
    %532 = vmatmul.mubr.f32.gmra.mrb[0].mxu0 %v460
    %v533 = vpop.f32.mrb[0].mxu0
    %v534 = vadd.f32 0.0, %v533
    %v535 = vpop.f32.mrb[0].mxu0
    %536 = vdwg.mxu0
    %v537 = vadd.f32 %v125, %v529
    %v538 = vadd.f32 %v126, %v534
    %539 = vrot.lane.b32.xlu0 %v113, 120
    %v540 = vpop.permute.xlu0 %539
    %541 = vrot.lane.b32.xlu0 %v113, 88
    %v542 = vpop.permute.xlu0 %541
    %v543 = vsel %vm130, %v540, 0
    %v545 = vsel %vm130, %v542, 0
    %547 = vmatprep.subr.mxu0 0.0
    %548 = vmatpush1.xpose.msra.mxu0 %v545
    %549 = vmatprep.subr.mxu0 0.0
    %550 = vmatpush1.xpose.msra.mxu0 0.0
    %551 = vmatprep.subr.mxu0 0.0
    %552 = vmatpush1.xpose.msra.mxu0 0.0
    %553 = vmatprep.subr.mxu0 0.0
    %554 = vmatpush1.xpose.msra.mxu0 0.0
    %555 = vmatprep.subr.mxu0 0.0
    %556 = vmatpush1.xpose.msra.mxu0 0.0
    %557 = vmatprep.subr.mxu0 0.0
    %558 = vmatpush1.xpose.msra.mxu0 0.0
    %559 = vmatprep.subr.mxu0 0.0
    %560 = vmatpush1.xpose.msra.mxu0 0.0
    %561 = vmatprep.subr.mxu0 0.0
    %562 = vmatpush1.xpose.msra.mxu0 0.0
    %563 = vmatprep.subr.mxu0 0.0
    %564 = vmatpush1.xpose.msra.mxu0 0.0
    %565 = vmatprep.subr.mxu0 0.0
    %566 = vmatpush1.xpose.msra.mxu0 0.0
    %567 = vmatprep.subr.mxu0 0.0
    %568 = vmatpush1.xpose.msra.mxu0 0.0
    %569 = vmatprep.subr.mxu0 0.0
    %570 = vmatpush1.xpose.msra.mxu0 0.0
    %571 = vmatprep.subr.mxu0 0.0
    %572 = vmatpush1.xpose.msra.mxu0 0.0
    %573 = vmatprep.subr.mxu0 0.0
    %574 = vmatpush1.xpose.msra.mxu0 0.0
    %575 = vmatprep.subr.mxu0 0.0
    %576 = vmatpush1.xpose.msra.mxu0 0.0
    %577 = vmatprep.subr.mxu0 0.0
    %578 = vmatpush1.xpose.msra.mxu0 0.0
    %579 = vmatprep.subr.mxu0 0.0
    %580 = vmatpush1.xpose.msra.mxu0 0.0
    %581 = vmatprep.subr.mxu0 0.0
    %582 = vmatpush1.xpose.msra.mxu0 0.0
    %583 = vmatprep.subr.mxu0 0.0
    %584 = vmatpush1.xpose.msra.mxu0 0.0
    %585 = vmatprep.subr.mxu0 0.0
    %586 = vmatpush1.xpose.msra.mxu0 0.0
    %587 = vmatprep.subr.mxu0 0.0
    %588 = vmatpush1.xpose.msra.mxu0 0.0
    %589 = vmatprep.subr.mxu0 0.0
    %590 = vmatpush1.xpose.msra.mxu0 0.0
    %591 = vmatprep.subr.mxu0 0.0
    %592 = vmatpush1.xpose.msra.mxu0 0.0
    %593 = vmatprep.subr.mxu0 0.0
    %594 = vmatpush1.xpose.msra.mxu0 0.0
    %595 = vmatprep.subr.mxu0 0.0
    %596 = vmatpush1.xpose.msra.mxu0 0.0
    %597 = vmatprep.subr.mxu0 0.0
    %598 = vmatpush1.xpose.msra.mxu0 0.0
    %599 = vmatprep.subr.mxu0 0.0
    %600 = vmatpush1.xpose.msra.mxu0 0.0
    %601 = vmatprep.subr.mxu0 0.0
    %602 = vmatpush1.xpose.msra.mxu0 0.0
    %603 = vmatprep.subr.mxu0 0.0
    %604 = vmatpush1.xpose.msra.mxu0 0.0
    %605 = vmatprep.subr.mxu0 0.0
    %606 = vmatpush1.xpose.msra.mxu0 0.0
    %607 = vmatprep.subr.mxu0 0.0
    %608 = vmatpush1.xpose.msra.mxu0 0.0
    %609 = vmatprep.subr.mxu0 0.0
    %610 = vmatpush1.xpose.msra.mxu0 0.0
    %611 = vmatprep.mubr.f32.mxu0 0.0
    %612 = vmatmul.mubr.f32.gmra.mrb[0].mxu0 %v543
    %v613 = vpop.f32.mrb[0].mxu0
    %v614 = vadd.f32 0.0, %v613
    %v615 = vpop.f32.mrb[0].mxu0
    %616 = vdwg.mxu0
    %v617 = vsel %vm130, %v614, -inf
    %618 = vmax.xlane.f32.xlu0 %v617
    %v619 = vpop.xlane.xlu0 %618
    %v620 = vsub.f32 %v614, %v619
    %v621 = vmul.f32 %v620, 1.442695
    %v622 = vpow.pop %v621
    %v623 = vsel %vm130, %v622, 0.0
    %624 = vadd.xlane.f32.xlu0 %v623
    %v625 = vpop.xlane.xlu0 %624
    %v626 = vrcp.pop %v625
    %v627 = vmul.f32 %v622, %v626
    %628 = vrot.lane.b32.xlu0 %v113, 56
    %v629 = vpop.permute.xlu0 %628
    %v632 = vsel %vm130, %v627, 0
    %634 = vmatprep.subr.mxu0 0.0
    %635 = vmatpush1.msra.mxu0 %v629
    %636 = vmatprep.subr.mxu0 0.0
    %637 = vmatpush1.msra.mxu0 0.0
    %638 = vmatprep.subr.mxu0 0.0
    %639 = vmatpush1.msra.mxu0 0.0
    %640 = vmatprep.subr.mxu0 0.0
    %641 = vmatpush1.msra.mxu0 0.0
    %642 = vmatprep.subr.mxu0 0.0
    %643 = vmatpush1.msra.mxu0 0.0
    %644 = vmatprep.subr.mxu0 0.0
    %645 = vmatpush1.msra.mxu0 0.0
    %646 = vmatprep.subr.mxu0 0.0
    %647 = vmatpush1.msra.mxu0 0.0
    %648 = vmatprep.subr.mxu0 0.0
    %649 = vmatpush1.msra.mxu0 0.0
    %650 = vmatprep.subr.mxu0 0.0
    %651 = vmatpush1.msra.mxu0 0.0
    %652 = vmatprep.subr.mxu0 0.0
    %653 = vmatpush1.msra.mxu0 0.0
    %654 = vmatprep.subr.mxu0 0.0
    %655 = vmatpush1.msra.mxu0 0.0
    %656 = vmatprep.subr.mxu0 0.0
    %657 = vmatpush1.msra.mxu0 0.0
    %658 = vmatprep.subr.mxu0 0.0
    %659 = vmatpush1.msra.mxu0 0.0
    %660 = vmatprep.subr.mxu0 0.0
    %661 = vmatpush1.msra.mxu0 0.0
    %662 = vmatprep.subr.mxu0 0.0
    %663 = vmatpush1.msra.mxu0 0.0
    %664 = vmatprep.subr.mxu0 0.0
    %665 = vmatpush1.msra.mxu0 0.0
    %666 = vmatprep.subr.mxu0 0.0
    %667 = vmatpush1.msra.mxu0 0.0
    %668 = vmatprep.subr.mxu0 0.0
    %669 = vmatpush1.msra.mxu0 0.0
    %670 = vmatprep.subr.mxu0 0.0
    %671 = vmatpush1.msra.mxu0 0.0
    %672 = vmatprep.subr.mxu0 0.0
    %673 = vmatpush1.msra.mxu0 0.0
    %674 = vmatprep.subr.mxu0 0.0
    %675 = vmatpush1.msra.mxu0 0.0
    %676 = vmatprep.subr.mxu0 0.0
    %677 = vmatpush1.msra.mxu0 0.0
    %678 = vmatprep.subr.mxu0 0.0
    %679 = vmatpush1.msra.mxu0 0.0
    %680 = vmatprep.subr.mxu0 0.0
    %681 = vmatpush1.msra.mxu0 0.0
    %682 = vmatprep.subr.mxu0 0.0
    %683 = vmatpush1.msra.mxu0 0.0
    %684 = vmatprep.subr.mxu0 0.0
    %685 = vmatpush1.msra.mxu0 0.0
    %686 = vmatprep.subr.mxu0 0.0
    %687 = vmatpush1.msra.mxu0 0.0
    %688 = vmatprep.subr.mxu0 0.0
    %689 = vmatpush1.msra.mxu0 0.0
    %690 = vmatprep.subr.mxu0 0.0
    %691 = vmatpush1.msra.mxu0 0.0
    %692 = vmatprep.subr.mxu0 0.0
    %693 = vmatpush1.msra.mxu0 0.0
    %694 = vmatprep.subr.mxu0 0.0
    %695 = vmatpush1.msra.mxu0 0.0
    %696 = vmatprep.subr.mxu0 0.0
    %697 = vmatpush1.msra.mxu0 0.0
    %698 = vmatprep.mubr.f32.mxu0 0.0
    %699 = vmatmul.mubr.f32.gmra.mrb[0].mxu0 %v632
    %v700 = vpop.f32.mrb[0].mxu0
    %v701 = vadd.f32 0.0, %v700
    %v702 = vpop.f32.mrb[0].mxu0
    %703 = vdwg.mxu0
    %704 = vrot.lane.b32.xlu0 %v118, 120
    %v705 = vpop.permute.xlu0 %704
    %706 = vrot.lane.b32.xlu0 %v118, 88
    %v707 = vpop.permute.xlu0 %706
    %v708 = vsel %vm130, %v705, 0
    %v710 = vsel %vm130, %v707, 0
    %712 = vmatprep.subr.mxu0 0.0
    %713 = vmatpush1.xpose.msra.mxu0 %v710
    %714 = vmatprep.subr.mxu0 0.0
    %715 = vmatpush1.xpose.msra.mxu0 0.0
    %716 = vmatprep.subr.mxu0 0.0
    %717 = vmatpush1.xpose.msra.mxu0 0.0
    %718 = vmatprep.subr.mxu0 0.0
    %719 = vmatpush1.xpose.msra.mxu0 0.0
    %720 = vmatprep.subr.mxu0 0.0
    %721 = vmatpush1.xpose.msra.mxu0 0.0
    %722 = vmatprep.subr.mxu0 0.0
    %723 = vmatpush1.xpose.msra.mxu0 0.0
    %724 = vmatprep.subr.mxu0 0.0
    %725 = vmatpush1.xpose.msra.mxu0 0.0
    %726 = vmatprep.subr.mxu0 0.0
    %727 = vmatpush1.xpose.msra.mxu0 0.0
    %728 = vmatprep.subr.mxu0 0.0
    %729 = vmatpush1.xpose.msra.mxu0 0.0
    %730 = vmatprep.subr.mxu0 0.0
    %731 = vmatpush1.xpose.msra.mxu0 0.0
    %732 = vmatprep.subr.mxu0 0.0
    %733 = vmatpush1.xpose.msra.mxu0 0.0
    %734 = vmatprep.subr.mxu0 0.0
    %735 = vmatpush1.xpose.msra.mxu0 0.0
    %736 = vmatprep.subr.mxu0 0.0
    %737 = vmatpush1.xpose.msra.mxu0 0.0
    %738 = vmatprep.subr.mxu0 0.0
    %739 = vmatpush1.xpose.msra.mxu0 0.0
    %740 = vmatprep.subr.mxu0 0.0
    %741 = vmatpush1.xpose.msra.mxu0 0.0
    %742 = vmatprep.subr.mxu0 0.0
    %743 = vmatpush1.xpose.msra.mxu0 0.0
    %744 = vmatprep.subr.mxu0 0.0
    %745 = vmatpush1.xpose.msra.mxu0 0.0
    %746 = vmatprep.subr.mxu0 0.0
    %747 = vmatpush1.xpose.msra.mxu0 0.0
    %748 = vmatprep.subr.mxu0 0.0
    %749 = vmatpush1.xpose.msra.mxu0 0.0
    %750 = vmatprep.subr.mxu0 0.0
    %751 = vmatpush1.xpose.msra.mxu0 0.0
    %752 = vmatprep.subr.mxu0 0.0
    %753 = vmatpush1.xpose.msra.mxu0 0.0
    %754 = vmatprep.subr.mxu0 0.0
    %755 = vmatpush1.xpose.msra.mxu0 0.0
    %756 = vmatprep.subr.mxu0 0.0
    %757 = vmatpush1.xpose.msra.mxu0 0.0
    %758 = vmatprep.subr.mxu0 0.0
    %759 = vmatpush1.xpose.msra.mxu0 0.0
    %760 = vmatprep.subr.mxu0 0.0
    %761 = vmatpush1.xpose.msra.mxu0 0.0
    %762 = vmatprep.subr.mxu0 0.0
    %763 = vmatpush1.xpose.msra.mxu0 0.0
    %764 = vmatprep.subr.mxu0 0.0
    %765 = vmatpush1.xpose.msra.mxu0 0.0
    %766 = vmatprep.subr.mxu0 0.0
    %767 = vmatpush1.xpose.msra.mxu0 0.0
    %768 = vmatprep.subr.mxu0 0.0
    %769 = vmatpush1.xpose.msra.mxu0 0.0
    %770 = vmatprep.subr.mxu0 0.0
    %771 = vmatpush1.xpose.msra.mxu0 0.0
    %772 = vmatprep.subr.mxu0 0.0
    %773 = vmatpush1.xpose.msra.mxu0 0.0
    %774 = vmatprep.subr.mxu0 0.0
    %775 = vmatpush1.xpose.msra.mxu0 0.0
    %776 = vmatprep.mubr.f32.mxu0 0.0
    %777 = vmatmul.mubr.f32.gmra.mrb[0].mxu0 %v708
    %v778 = vpop.f32.mrb[0].mxu0
    %v779 = vadd.f32 0.0, %v778
    %v780 = vpop.f32.mrb[0].mxu0
    %781 = vdwg.mxu0
    %v782 = vsel %vm130, %v779, -inf
    %783 = vmax.xlane.f32.xlu0 %v782
    %v784 = vpop.xlane.xlu0 %783
    %v785 = vsub.f32 %v779, %v784
    %v786 = vmul.f32 %v785, 1.442695
    %v787 = vpow.pop %v786
    %v788 = vsel %vm130, %v787, 0.0
    %789 = vadd.xlane.f32.xlu0 %v788
    %v790 = vpop.xlane.xlu0 %789
    %v791 = vrcp.pop %v790
    %v792 = vmul.f32 %v787, %v791
    %793 = vrot.lane.b32.xlu0 %v118, 56
    %v794 = vpop.permute.xlu0 %793
    %v797 = vsel %vm130, %v792, 0
    %799 = vmatprep.subr.mxu0 0.0
    %800 = vmatpush1.msra.mxu0 %v794
    %801 = vmatprep.subr.mxu0 0.0
    %802 = vmatpush1.msra.mxu0 0.0
    %803 = vmatprep.subr.mxu0 0.0
    %804 = vmatpush1.msra.mxu0 0.0
    %805 = vmatprep.subr.mxu0 0.0
    %806 = vmatpush1.msra.mxu0 0.0
    %807 = vmatprep.subr.mxu0 0.0
    %808 = vmatpush1.msra.mxu0 0.0
    %809 = vmatprep.subr.mxu0 0.0
    %810 = vmatpush1.msra.mxu0 0.0
    %811 = vmatprep.subr.mxu0 0.0
    %812 = vmatpush1.msra.mxu0 0.0
    %813 = vmatprep.subr.mxu0 0.0
    %814 = vmatpush1.msra.mxu0 0.0
    %815 = vmatprep.subr.mxu0 0.0
    %816 = vmatpush1.msra.mxu0 0.0
    %817 = vmatprep.subr.mxu0 0.0
    %818 = vmatpush1.msra.mxu0 0.0
    %819 = vmatprep.subr.mxu0 0.0
    %820 = vmatpush1.msra.mxu0 0.0
    %821 = vmatprep.subr.mxu0 0.0
    %822 = vmatpush1.msra.mxu0 0.0
    %823 = vmatprep.subr.mxu0 0.0
    %824 = vmatpush1.msra.mxu0 0.0
    %825 = vmatprep.subr.mxu0 0.0
    %826 = vmatpush1.msra.mxu0 0.0
    %827 = vmatprep.subr.mxu0 0.0
    %828 = vmatpush1.msra.mxu0 0.0
    %829 = vmatprep.subr.mxu0 0.0
    %830 = vmatpush1.msra.mxu0 0.0
    %831 = vmatprep.subr.mxu0 0.0
    %832 = vmatpush1.msra.mxu0 0.0
    %833 = vmatprep.subr.mxu0 0.0
    %834 = vmatpush1.msra.mxu0 0.0
    %835 = vmatprep.subr.mxu0 0.0
    %836 = vmatpush1.msra.mxu0 0.0
    %837 = vmatprep.subr.mxu0 0.0
    %838 = vmatpush1.msra.mxu0 0.0
    %839 = vmatprep.subr.mxu0 0.0
    %840 = vmatpush1.msra.mxu0 0.0
    %841 = vmatprep.subr.mxu0 0.0
    %842 = vmatpush1.msra.mxu0 0.0
    %843 = vmatprep.subr.mxu0 0.0
    %844 = vmatpush1.msra.mxu0 0.0
    %845 = vmatprep.subr.mxu0 0.0
    %846 = vmatpush1.msra.mxu0 0.0
    %847 = vmatprep.subr.mxu0 0.0
    %848 = vmatpush1.msra.mxu0 0.0
    %849 = vmatprep.subr.mxu0 0.0
    %850 = vmatpush1.msra.mxu0 0.0
    %851 = vmatprep.subr.mxu0 0.0
    %852 = vmatpush1.msra.mxu0 0.0
    %853 = vmatprep.subr.mxu0 0.0
    %854 = vmatpush1.msra.mxu0 0.0
    %855 = vmatprep.subr.mxu0 0.0
    %856 = vmatpush1.msra.mxu0 0.0
    %857 = vmatprep.subr.mxu0 0.0
    %858 = vmatpush1.msra.mxu0 0.0
    %859 = vmatprep.subr.mxu0 0.0
    %860 = vmatpush1.msra.mxu0 0.0
    %861 = vmatprep.subr.mxu0 0.0
    %862 = vmatpush1.msra.mxu0 0.0
    %863 = vmatprep.mubr.f32.mxu0 0.0
    %864 = vmatmul.mubr.f32.gmra.mrb[0].mxu0 %v797
    %v865 = vpop.f32.mrb[0].mxu0
    %v866 = vadd.f32 0.0, %v865
    %v867 = vpop.f32.mrb[0].mxu0
    %868 = vdwg.mxu0
    %v870 = vsel %vm130, %v701, 0
    %v873 = vsel %vm130, %v866, 0
    %875 = vmatprep.subr.mxu0 0.0
    %876 = vmatpush1.msra.mxu0 %v34
    %877 = vmatprep.subr.mxu0 0.0
    %878 = vmatpush1.msra.mxu0 0.0
    %879 = vmatprep.subr.mxu0 0.0
    %880 = vmatpush1.msra.mxu0 0.0
    %881 = vmatprep.subr.mxu0 0.0
    %882 = vmatpush1.msra.mxu0 0.0
    %883 = vmatprep.subr.mxu0 0.0
    %884 = vmatpush1.msra.mxu0 0.0
    %885 = vmatprep.subr.mxu0 0.0
    %886 = vmatpush1.msra.mxu0 0.0
    %887 = vmatprep.subr.mxu0 0.0
    %888 = vmatpush1.msra.mxu0 0.0
    %889 = vmatprep.subr.mxu0 0.0
    %890 = vmatpush1.msra.mxu0 0.0
    %891 = vmatprep.subr.mxu0 0.0
    %892 = vmatpush1.msra.mxu0 0.0
    %893 = vmatprep.subr.mxu0 0.0
    %894 = vmatpush1.msra.mxu0 0.0
    %895 = vmatprep.subr.mxu0 0.0
    %896 = vmatpush1.msra.mxu0 0.0
    %897 = vmatprep.subr.mxu0 0.0
    %898 = vmatpush1.msra.mxu0 0.0
    %899 = vmatprep.subr.mxu0 0.0
    %900 = vmatpush1.msra.mxu0 0.0
    %901 = vmatprep.subr.mxu0 0.0
    %902 = vmatpush1.msra.mxu0 0.0
    %903 = vmatprep.subr.mxu0 0.0
    %904 = vmatpush1.msra.mxu0 0.0
    %905 = vmatprep.subr.mxu0 0.0
    %906 = vmatpush1.msra.mxu0 0.0
    %907 = vmatprep.subr.mxu0 0.0
    %908 = vmatpush1.msra.mxu0 0.0
    %909 = vmatprep.subr.mxu0 0.0
    %910 = vmatpush1.msra.mxu0 0.0
    %911 = vmatprep.subr.mxu0 0.0
    %912 = vmatpush1.msra.mxu0 0.0
    %913 = vmatprep.subr.mxu0 0.0
    %914 = vmatpush1.msra.mxu0 0.0
    %915 = vmatprep.subr.mxu0 0.0
    %916 = vmatpush1.msra.mxu0 0.0
    %917 = vmatprep.subr.mxu0 0.0
    %918 = vmatpush1.msra.mxu0 0.0
    %919 = vmatprep.subr.mxu0 0.0
    %920 = vmatpush1.msra.mxu0 0.0
    %921 = vmatprep.subr.mxu0 0.0
    %922 = vmatpush1.msra.mxu0 0.0
    %923 = vmatprep.subr.mxu0 0.0
    %924 = vmatpush1.msra.mxu0 0.0
    %925 = vmatprep.subr.mxu0 0.0
    %926 = vmatpush1.msra.mxu0 0.0
    %927 = vmatprep.subr.mxu0 0.0
    %928 = vmatpush1.msra.mxu0 0.0
    %929 = vmatprep.subr.mxu0 0.0
    %930 = vmatpush1.msra.mxu0 0.0
    %931 = vmatprep.subr.mxu0 0.0
    %932 = vmatpush1.msra.mxu0 0.0
    %933 = vmatprep.subr.mxu0 0.0
    %934 = vmatpush1.msra.mxu0 0.0
    %935 = vmatprep.subr.mxu0 0.0
    %936 = vmatpush1.msra.mxu0 0.0
    %937 = vmatprep.subr.mxu0 0.0
    %938 = vmatpush1.msra.mxu0 0.0
    %939 = vmatprep.mubr.f32.mxu0 0.0
    %940 = vmatmul.mubr.f32.gmra.mrb[0].mxu0 %v870
    %v941 = vpop.f32.mrb[0].mxu0
    %v942 = vadd.f32 0.0, %v941
    %v943 = vpop.f32.mrb[0].mxu0
    %944 = vmatprep.mubr.f32.mxu0 0.0
    %945 = vmatmul.mubr.f32.gmra.mrb[0].mxu0 %v873
    %v946 = vpop.f32.mrb[0].mxu0
    %v947 = vadd.f32 0.0, %v946
    %v948 = vpop.f32.mrb[0].mxu0
    %949 = vdwg.mxu0
    %v950 = vadd.f32 %v537, %v942
    %v951 = vadd.f32 %v538, %v947
    %952 = vrot.lane.b32.xlu0 %v113, 112
    %v953 = vpop.permute.xlu0 %952
    %954 = vrot.lane.b32.xlu0 %v113, 80
    %v955 = vpop.permute.xlu0 %954
    %v956 = vsel %vm130, %v953, 0
    %v958 = vsel %vm130, %v955, 0
    %960 = vmatprep.subr.mxu0 0.0
    %961 = vmatpush1.xpose.msra.mxu0 %v958
    %962 = vmatprep.subr.mxu0 0.0
    %963 = vmatpush1.xpose.msra.mxu0 0.0
    %964 = vmatprep.subr.mxu0 0.0
    %965 = vmatpush1.xpose.msra.mxu0 0.0
    %966 = vmatprep.subr.mxu0 0.0
    %967 = vmatpush1.xpose.msra.mxu0 0.0
    %968 = vmatprep.subr.mxu0 0.0
    %969 = vmatpush1.xpose.msra.mxu0 0.0
    %970 = vmatprep.subr.mxu0 0.0
    %971 = vmatpush1.xpose.msra.mxu0 0.0
    %972 = vmatprep.subr.mxu0 0.0
    %973 = vmatpush1.xpose.msra.mxu0 0.0
    %974 = vmatprep.subr.mxu0 0.0
    %975 = vmatpush1.xpose.msra.mxu0 0.0
    %976 = vmatprep.subr.mxu0 0.0
    %977 = vmatpush1.xpose.msra.mxu0 0.0
    %978 = vmatprep.subr.mxu0 0.0
    %979 = vmatpush1.xpose.msra.mxu0 0.0
    %980 = vmatprep.subr.mxu0 0.0
    %981 = vmatpush1.xpose.msra.mxu0 0.0
    %982 = vmatprep.subr.mxu0 0.0
    %983 = vmatpush1.xpose.msra.mxu0 0.0
    %984 = vmatprep.subr.mxu0 0.0
    %985 = vmatpush1.xpose.msra.mxu0 0.0
    %986 = vmatprep.subr.mxu0 0.0
    %987 = vmatpush1.xpose.msra.mxu0 0.0
    %988 = vmatprep.subr.mxu0 0.0
    %989 = vmatpush1.xpose.msra.mxu0 0.0
    %990 = vmatprep.subr.mxu0 0.0
    %991 = vmatpush1.xpose.msra.mxu0 0.0
    %992 = vmatprep.subr.mxu0 0.0
    %993 = vmatpush1.xpose.msra.mxu0 0.0
    %994 = vmatprep.subr.mxu0 0.0
    %995 = vmatpush1.xpose.msra.mxu0 0.0
    %996 = vmatprep.subr.mxu0 0.0
    %997 = vmatpush1.xpose.msra.mxu0 0.0
    %998 = vmatprep.subr.mxu0 0.0
    %999 = vmatpush1.xpose.msra.mxu0 0.0
    %1000 = vmatprep.subr.mxu0 0.0
    %1001 = vmatpush1.xpose.msra.mxu0 0.0
    %1002 = vmatprep.subr.mxu0 0.0
    %1003 = vmatpush1.xpose.msra.mxu0 0.0
    %1004 = vmatprep.subr.mxu0 0.0
    %1005 = vmatpush1.xpose.msra.mxu0 0.0
    %1006 = vmatprep.subr.mxu0 0.0
    %1007 = vmatpush1.xpose.msra.mxu0 0.0
    %1008 = vmatprep.subr.mxu0 0.0
    %1009 = vmatpush1.xpose.msra.mxu0 0.0
    %1010 = vmatprep.subr.mxu0 0.0
    %1011 = vmatpush1.xpose.msra.mxu0 0.0
    %1012 = vmatprep.subr.mxu0 0.0
    %1013 = vmatpush1.xpose.msra.mxu0 0.0
    %1014 = vmatprep.subr.mxu0 0.0
    %1015 = vmatpush1.xpose.msra.mxu0 0.0
    %1016 = vmatprep.subr.mxu0 0.0
    %1017 = vmatpush1.xpose.msra.mxu0 0.0
    %1018 = vmatprep.subr.mxu0 0.0
    %1019 = vmatpush1.xpose.msra.mxu0 0.0
    %1020 = vmatprep.subr.mxu0 0.0
    %1021 = vmatpush1.xpose.msra.mxu0 0.0
    %1022 = vmatprep.subr.mxu0 0.0
    %1023 = vmatpush1.xpose.msra.mxu0 0.0
    %1024 = vmatprep.mubr.f32.mxu0 0.0
    %1025 = vmatmul.mubr.f32.gmra.mrb[0].mxu0 %v956
    %v1026 = vpop.f32.mrb[0].mxu0
    %v1027 = vadd.f32 0.0, %v1026
    %v1028 = vpop.f32.mrb[0].mxu0
    %1029 = vdwg.mxu0
    %v1030 = vsel %vm130, %v1027, -inf
    %1031 = vmax.xlane.f32.xlu0 %v1030
    %v1032 = vpop.xlane.xlu0 %1031
    %v1033 = vsub.f32 %v1027, %v1032
    %v1034 = vmul.f32 %v1033, 1.442695
    %v1035 = vpow.pop %v1034
    %v1036 = vsel %vm130, %v1035, 0.0
    %1037 = vadd.xlane.f32.xlu0 %v1036
    %v1038 = vpop.xlane.xlu0 %1037
    %v1039 = vrcp.pop %v1038
    %v1040 = vmul.f32 %v1035, %v1039
    %1041 = vrot.lane.b32.xlu0 %v113, 48
    %v1042 = vpop.permute.xlu0 %1041
    %v1045 = vsel %vm130, %v1040, 0
    %1047 = vmatprep.subr.mxu0 0.0
    %1048 = vmatpush1.msra.mxu0 %v1042
    %1049 = vmatprep.subr.mxu0 0.0
    %1050 = vmatpush1.msra.mxu0 0.0
    %1051 = vmatprep.subr.mxu0 0.0
    %1052 = vmatpush1.msra.mxu0 0.0
    %1053 = vmatprep.subr.mxu0 0.0
    %1054 = vmatpush1.msra.mxu0 0.0
    %1055 = vmatprep.subr.mxu0 0.0
    %1056 = vmatpush1.msra.mxu0 0.0
    %1057 = vmatprep.subr.mxu0 0.0
    %1058 = vmatpush1.msra.mxu0 0.0
    %1059 = vmatprep.subr.mxu0 0.0
    %1060 = vmatpush1.msra.mxu0 0.0
    %1061 = vmatprep.subr.mxu0 0.0
    %1062 = vmatpush1.msra.mxu0 0.0
    %1063 = vmatprep.subr.mxu0 0.0
    %1064 = vmatpush1.msra.mxu0 0.0
    %1065 = vmatprep.subr.mxu0 0.0
    %1066 = vmatpush1.msra.mxu0 0.0
    %1067 = vmatprep.subr.mxu0 0.0
    %1068 = vmatpush1.msra.mxu0 0.0
    %1069 = vmatprep.subr.mxu0 0.0
    %1070 = vmatpush1.msra.mxu0 0.0
    %1071 = vmatprep.subr.mxu0 0.0
    %1072 = vmatpush1.msra.mxu0 0.0
    %1073 = vmatprep.subr.mxu0 0.0
    %1074 = vmatpush1.msra.mxu0 0.0
    %1075 = vmatprep.subr.mxu0 0.0
    %1076 = vmatpush1.msra.mxu0 0.0
    %1077 = vmatprep.subr.mxu0 0.0
    %1078 = vmatpush1.msra.mxu0 0.0
    %1079 = vmatprep.subr.mxu0 0.0
    %1080 = vmatpush1.msra.mxu0 0.0
    %1081 = vmatprep.subr.mxu0 0.0
    %1082 = vmatpush1.msra.mxu0 0.0
    %1083 = vmatprep.subr.mxu0 0.0
    %1084 = vmatpush1.msra.mxu0 0.0
    %1085 = vmatprep.subr.mxu0 0.0
    %1086 = vmatpush1.msra.mxu0 0.0
    %1087 = vmatprep.subr.mxu0 0.0
    %1088 = vmatpush1.msra.mxu0 0.0
    %1089 = vmatprep.subr.mxu0 0.0
    %1090 = vmatpush1.msra.mxu0 0.0
    %1091 = vmatprep.subr.mxu0 0.0
    %1092 = vmatpush1.msra.mxu0 0.0
    %1093 = vmatprep.subr.mxu0 0.0
    %1094 = vmatpush1.msra.mxu0 0.0
    %1095 = vmatprep.subr.mxu0 0.0
    %1096 = vmatpush1.msra.mxu0 0.0
    %1097 = vmatprep.subr.mxu0 0.0
    %1098 = vmatpush1.msra.mxu0 0.0
    %1099 = vmatprep.subr.mxu0 0.0
    %1100 = vmatpush1.msra.mxu0 0.0
    %1101 = vmatprep.subr.mxu0 0.0
    %1102 = vmatpush1.msra.mxu0 0.0
    %1103 = vmatprep.subr.mxu0 0.0
    %1104 = vmatpush1.msra.mxu0 0.0
    %1105 = vmatprep.subr.mxu0 0.0
    %1106 = vmatpush1.msra.mxu0 0.0
    %1107 = vmatprep.subr.mxu0 0.0
    %1108 = vmatpush1.msra.mxu0 0.0
    %1109 = vmatprep.subr.mxu0 0.0
    %1110 = vmatpush1.msra.mxu0 0.0
    %1111 = vmatprep.mubr.f32.mxu0 0.0
    %1112 = vmatmul.mubr.f32.gmra.mrb[0].mxu0 %v1045
    %v1113 = vpop.f32.mrb[0].mxu0
    %v1114 = vadd.f32 0.0, %v1113
    %v1115 = vpop.f32.mrb[0].mxu0
    %1116 = vdwg.mxu0
    %1117 = vrot.lane.b32.xlu0 %v118, 112
    %v1118 = vpop.permute.xlu0 %1117
    %1119 = vrot.lane.b32.xlu0 %v118, 80
    %v1120 = vpop.permute.xlu0 %1119
    %v1121 = vsel %vm130, %v1118, 0
    %v1123 = vsel %vm130, %v1120, 0
    %1125 = vmatprep.subr.mxu0 0.0
    %1126 = vmatpush1.xpose.msra.mxu0 %v1123
    %1127 = vmatprep.subr.mxu0 0.0
    %1128 = vmatpush1.xpose.msra.mxu0 0.0
    %1129 = vmatprep.subr.mxu0 0.0
    %1130 = vmatpush1.xpose.msra.mxu0 0.0
    %1131 = vmatprep.subr.mxu0 0.0
    %1132 = vmatpush1.xpose.msra.mxu0 0.0
    %1133 = vmatprep.subr.mxu0 0.0
    %1134 = vmatpush1.xpose.msra.mxu0 0.0
    %1135 = vmatprep.subr.mxu0 0.0
    %1136 = vmatpush1.xpose.msra.mxu0 0.0
    %1137 = vmatprep.subr.mxu0 0.0
    %1138 = vmatpush1.xpose.msra.mxu0 0.0
    %1139 = vmatprep.subr.mxu0 0.0
    %1140 = vmatpush1.xpose.msra.mxu0 0.0
    %1141 = vmatprep.subr.mxu0 0.0
    %1142 = vmatpush1.xpose.msra.mxu0 0.0
    %1143 = vmatprep.subr.mxu0 0.0
    %1144 = vmatpush1.xpose.msra.mxu0 0.0
    %1145 = vmatprep.subr.mxu0 0.0
    %1146 = vmatpush1.xpose.msra.mxu0 0.0
    %1147 = vmatprep.subr.mxu0 0.0
    %1148 = vmatpush1.xpose.msra.mxu0 0.0
    %1149 = vmatprep.subr.mxu0 0.0
    %1150 = vmatpush1.xpose.msra.mxu0 0.0
    %1151 = vmatprep.subr.mxu0 0.0
    %1152 = vmatpush1.xpose.msra.mxu0 0.0
    %1153 = vmatprep.subr.mxu0 0.0
    %1154 = vmatpush1.xpose.msra.mxu0 0.0
    %1155 = vmatprep.subr.mxu0 0.0
    %1156 = vmatpush1.xpose.msra.mxu0 0.0
    %1157 = vmatprep.subr.mxu0 0.0
    %1158 = vmatpush1.xpose.msra.mxu0 0.0
    %1159 = vmatprep.subr.mxu0 0.0
    %1160 = vmatpush1.xpose.msra.mxu0 0.0
    %1161 = vmatprep.subr.mxu0 0.0
    %1162 = vmatpush1.xpose.msra.mxu0 0.0
    %1163 = vmatprep.subr.mxu0 0.0
    %1164 = vmatpush1.xpose.msra.mxu0 0.0
    %1165 = vmatprep.subr.mxu0 0.0
    %1166 = vmatpush1.xpose.msra.mxu0 0.0
    %1167 = vmatprep.subr.mxu0 0.0
    %1168 = vmatpush1.xpose.msra.mxu0 0.0
    %1169 = vmatprep.subr.mxu0 0.0
    %1170 = vmatpush1.xpose.msra.mxu0 0.0
    %1171 = vmatprep.subr.mxu0 0.0
    %1172 = vmatpush1.xpose.msra.mxu0 0.0
    %1173 = vmatprep.subr.mxu0 0.0
    %1174 = vmatpush1.xpose.msra.mxu0 0.0
    %1175 = vmatprep.subr.mxu0 0.0
    %1176 = vmatpush1.xpose.msra.mxu0 0.0
    %1177 = vmatprep.subr.mxu0 0.0
    %1178 = vmatpush1.xpose.msra.mxu0 0.0
    %1179 = vmatprep.subr.mxu0 0.0
    %1180 = vmatpush1.xpose.msra.mxu0 0.0
    %1181 = vmatprep.subr.mxu0 0.0
    %1182 = vmatpush1.xpose.msra.mxu0 0.0
    %1183 = vmatprep.subr.mxu0 0.0
    %1184 = vmatpush1.xpose.msra.mxu0 0.0
    %1185 = vmatprep.subr.mxu0 0.0
    %1186 = vmatpush1.xpose.msra.mxu0 0.0
    %1187 = vmatprep.subr.mxu0 0.0
    %1188 = vmatpush1.xpose.msra.mxu0 0.0
    %1189 = vmatprep.mubr.f32.mxu0 0.0
    %1190 = vmatmul.mubr.f32.gmra.mrb[0].mxu0 %v1121
    %v1191 = vpop.f32.mrb[0].mxu0
    %v1192 = vadd.f32 0.0, %v1191
    %v1193 = vpop.f32.mrb[0].mxu0
    %1194 = vdwg.mxu0
    %v1195 = vsel %vm130, %v1192, -inf
    %1196 = vmax.xlane.f32.xlu0 %v1195
    %v1197 = vpop.xlane.xlu0 %1196
    %v1198 = vsub.f32 %v1192, %v1197
    %v1199 = vmul.f32 %v1198, 1.442695
    %v1200 = vpow.pop %v1199
    %v1201 = vsel %vm130, %v1200, 0.0
    %1202 = vadd.xlane.f32.xlu0 %v1201
    %v1203 = vpop.xlane.xlu0 %1202
    %v1204 = vrcp.pop %v1203
    %v1205 = vmul.f32 %v1200, %v1204
    %1206 = vrot.lane.b32.xlu0 %v118, 48
    %v1207 = vpop.permute.xlu0 %1206
    %v1210 = vsel %vm130, %v1205, 0
    %1212 = vmatprep.subr.mxu0 0.0
    %1213 = vmatpush1.msra.mxu0 %v1207
    %1214 = vmatprep.subr.mxu0 0.0
    %1215 = vmatpush1.msra.mxu0 0.0
    %1216 = vmatprep.subr.mxu0 0.0
    %1217 = vmatpush1.msra.mxu0 0.0
    %1218 = vmatprep.subr.mxu0 0.0
    %1219 = vmatpush1.msra.mxu0 0.0
    %1220 = vmatprep.subr.mxu0 0.0
    %1221 = vmatpush1.msra.mxu0 0.0
    %1222 = vmatprep.subr.mxu0 0.0
    %1223 = vmatpush1.msra.mxu0 0.0
    %1224 = vmatprep.subr.mxu0 0.0
    %1225 = vmatpush1.msra.mxu0 0.0
    %1226 = vmatprep.subr.mxu0 0.0
    %1227 = vmatpush1.msra.mxu0 0.0
    %1228 = vmatprep.subr.mxu0 0.0
    %1229 = vmatpush1.msra.mxu0 0.0
    %1230 = vmatprep.subr.mxu0 0.0
    %1231 = vmatpush1.msra.mxu0 0.0
    %1232 = vmatprep.subr.mxu0 0.0
    %1233 = vmatpush1.msra.mxu0 0.0
    %1234 = vmatprep.subr.mxu0 0.0
    %1235 = vmatpush1.msra.mxu0 0.0
    %1236 = vmatprep.subr.mxu0 0.0
    %1237 = vmatpush1.msra.mxu0 0.0
    %1238 = vmatprep.subr.mxu0 0.0
    %1239 = vmatpush1.msra.mxu0 0.0
    %1240 = vmatprep.subr.mxu0 0.0
    %1241 = vmatpush1.msra.mxu0 0.0
    %1242 = vmatprep.subr.mxu0 0.0
    %1243 = vmatpush1.msra.mxu0 0.0
    %1244 = vmatprep.subr.mxu0 0.0
    %1245 = vmatpush1.msra.mxu0 0.0
    %1246 = vmatprep.subr.mxu0 0.0
    %1247 = vmatpush1.msra.mxu0 0.0
    %1248 = vmatprep.subr.mxu0 0.0
    %1249 = vmatpush1.msra.mxu0 0.0
    %1250 = vmatprep.subr.mxu0 0.0
    %1251 = vmatpush1.msra.mxu0 0.0
    %1252 = vmatprep.subr.mxu0 0.0
    %1253 = vmatpush1.msra.mxu0 0.0
    %1254 = vmatprep.subr.mxu0 0.0
    %1255 = vmatpush1.msra.mxu0 0.0
    %1256 = vmatprep.subr.mxu0 0.0
    %1257 = vmatpush1.msra.mxu0 0.0
    %1258 = vmatprep.subr.mxu0 0.0
    %1259 = vmatpush1.msra.mxu0 0.0
    %1260 = vmatprep.subr.mxu0 0.0
    %1261 = vmatpush1.msra.mxu0 0.0
    %1262 = vmatprep.subr.mxu0 0.0
    %1263 = vmatpush1.msra.mxu0 0.0
    %1264 = vmatprep.subr.mxu0 0.0
    %1265 = vmatpush1.msra.mxu0 0.0
    %1266 = vmatprep.subr.mxu0 0.0
    %1267 = vmatpush1.msra.mxu0 0.0
    %1268 = vmatprep.subr.mxu0 0.0
    %1269 = vmatpush1.msra.mxu0 0.0
    %1270 = vmatprep.subr.mxu0 0.0
    %1271 = vmatpush1.msra.mxu0 0.0
    %1272 = vmatprep.subr.mxu0 0.0
    %1273 = vmatpush1.msra.mxu0 0.0
    %1274 = vmatprep.subr.mxu0 0.0
    %1275 = vmatpush1.msra.mxu0 0.0
    %1276 = vmatprep.mubr.f32.mxu0 0.0
    %1277 = vmatmul.mubr.f32.gmra.mrb[0].mxu0 %v1210
    %v1278 = vpop.f32.mrb[0].mxu0
    %v1279 = vadd.f32 0.0, %v1278
    %v1280 = vpop.f32.mrb[0].mxu0
    %1281 = vdwg.mxu0
    %v1283 = vsel %vm130, %v1114, 0
    %v1286 = vsel %vm130, %v1279, 0
    %1288 = vmatprep.subr.mxu0 0.0
    %1289 = vmatpush1.msra.mxu0 %v35
    %1290 = vmatprep.subr.mxu0 0.0
    %1291 = vmatpush1.msra.mxu0 0.0
    %1292 = vmatprep.subr.mxu0 0.0
    %1293 = vmatpush1.msra.mxu0 0.0
    %1294 = vmatprep.subr.mxu0 0.0
    %1295 = vmatpush1.msra.mxu0 0.0
    %1296 = vmatprep.subr.mxu0 0.0
    %1297 = vmatpush1.msra.mxu0 0.0
    %1298 = vmatprep.subr.mxu0 0.0
    %1299 = vmatpush1.msra.mxu0 0.0
    %1300 = vmatprep.subr.mxu0 0.0
    %1301 = vmatpush1.msra.mxu0 0.0
    %1302 = vmatprep.subr.mxu0 0.0
    %1303 = vmatpush1.msra.mxu0 0.0
    %1304 = vmatprep.subr.mxu0 0.0
    %1305 = vmatpush1.msra.mxu0 0.0
    %1306 = vmatprep.subr.mxu0 0.0
    %1307 = vmatpush1.msra.mxu0 0.0
    %1308 = vmatprep.subr.mxu0 0.0
    %1309 = vmatpush1.msra.mxu0 0.0
    %1310 = vmatprep.subr.mxu0 0.0
    %1311 = vmatpush1.msra.mxu0 0.0
    %1312 = vmatprep.subr.mxu0 0.0
    %1313 = vmatpush1.msra.mxu0 0.0
    %1314 = vmatprep.subr.mxu0 0.0
    %1315 = vmatpush1.msra.mxu0 0.0
    %1316 = vmatprep.subr.mxu0 0.0
    %1317 = vmatpush1.msra.mxu0 0.0
    %1318 = vmatprep.subr.mxu0 0.0
    %1319 = vmatpush1.msra.mxu0 0.0
    %1320 = vmatprep.subr.mxu0 0.0
    %1321 = vmatpush1.msra.mxu0 0.0
    %1322 = vmatprep.subr.mxu0 0.0
    %1323 = vmatpush1.msra.mxu0 0.0
    %1324 = vmatprep.subr.mxu0 0.0
    %1325 = vmatpush1.msra.mxu0 0.0
    %1326 = vmatprep.subr.mxu0 0.0
    %1327 = vmatpush1.msra.mxu0 0.0
    %1328 = vmatprep.subr.mxu0 0.0
    %1329 = vmatpush1.msra.mxu0 0.0
    %1330 = vmatprep.subr.mxu0 0.0
    %1331 = vmatpush1.msra.mxu0 0.0
    %1332 = vmatprep.subr.mxu0 0.0
    %1333 = vmatpush1.msra.mxu0 0.0
    %1334 = vmatprep.subr.mxu0 0.0
    %1335 = vmatpush1.msra.mxu0 0.0
    %1336 = vmatprep.subr.mxu0 0.0
    %1337 = vmatpush1.msra.mxu0 0.0
    %1338 = vmatprep.subr.mxu0 0.0
    %1339 = vmatpush1.msra.mxu0 0.0
    %1340 = vmatprep.subr.mxu0 0.0
    %1341 = vmatpush1.msra.mxu0 0.0
    %1342 = vmatprep.subr.mxu0 0.0
    %1343 = vmatpush1.msra.mxu0 0.0
    %1344 = vmatprep.subr.mxu0 0.0
    %1345 = vmatpush1.msra.mxu0 0.0
    %1346 = vmatprep.subr.mxu0 0.0
    %1347 = vmatpush1.msra.mxu0 0.0
    %1348 = vmatprep.subr.mxu0 0.0
    %1349 = vmatpush1.msra.mxu0 0.0
    %1350 = vmatprep.subr.mxu0 0.0
    %1351 = vmatpush1.msra.mxu0 0.0
    %1352 = vmatprep.mubr.f32.mxu0 0.0
    %1353 = vmatmul.mubr.f32.gmra.mrb[0].mxu0 %v1283
    %v1354 = vpop.f32.mrb[0].mxu0
    %v1355 = vadd.f32 0.0, %v1354
    %v1356 = vpop.f32.mrb[0].mxu0
    %1357 = vmatprep.mubr.f32.mxu0 0.0
    %1358 = vmatmul.mubr.f32.gmra.mrb[0].mxu0 %v1286
    %v1359 = vpop.f32.mrb[0].mxu0
    %v1360 = vadd.f32 0.0, %v1359
    %v1361 = vpop.f32.mrb[0].mxu0
    %1362 = vdwg.mxu0
    %v1363 = vadd.f32 %v950, %v1355
    %v1364 = vadd.f32 %v951, %v1360
    %1365 = vrot.lane.b32.xlu0 %v113, 104
    %v1366 = vpop.permute.xlu0 %1365
    %1367 = vrot.lane.b32.xlu0 %v113, 72
    %v1368 = vpop.permute.xlu0 %1367
    %v1369 = vsel %vm130, %v1366, 0
    %v1371 = vsel %vm130, %v1368, 0
    %1373 = vmatprep.subr.mxu0 0.0
    %1374 = vmatpush1.xpose.msra.mxu0 %v1371
    %1375 = vmatprep.subr.mxu0 0.0
    %1376 = vmatpush1.xpose.msra.mxu0 0.0
    %1377 = vmatprep.subr.mxu0 0.0
    %1378 = vmatpush1.xpose.msra.mxu0 0.0
    %1379 = vmatprep.subr.mxu0 0.0
    %1380 = vmatpush1.xpose.msra.mxu0 0.0
    %1381 = vmatprep.subr.mxu0 0.0
    %1382 = vmatpush1.xpose.msra.mxu0 0.0
    %1383 = vmatprep.subr.mxu0 0.0
    %1384 = vmatpush1.xpose.msra.mxu0 0.0
    %1385 = vmatprep.subr.mxu0 0.0
    %1386 = vmatpush1.xpose.msra.mxu0 0.0
    %1387 = vmatprep.subr.mxu0 0.0
    %1388 = vmatpush1.xpose.msra.mxu0 0.0
    %1389 = vmatprep.subr.mxu0 0.0
    %1390 = vmatpush1.xpose.msra.mxu0 0.0
    %1391 = vmatprep.subr.mxu0 0.0
    %1392 = vmatpush1.xpose.msra.mxu0 0.0
    %1393 = vmatprep.subr.mxu0 0.0
    %1394 = vmatpush1.xpose.msra.mxu0 0.0
    %1395 = vmatprep.subr.mxu0 0.0
    %1396 = vmatpush1.xpose.msra.mxu0 0.0
    %1397 = vmatprep.subr.mxu0 0.0
    %1398 = vmatpush1.xpose.msra.mxu0 0.0
    %1399 = vmatprep.subr.mxu0 0.0
    %1400 = vmatpush1.xpose.msra.mxu0 0.0
    %1401 = vmatprep.subr.mxu0 0.0
    %1402 = vmatpush1.xpose.msra.mxu0 0.0
    %1403 = vmatprep.subr.mxu0 0.0
    %1404 = vmatpush1.xpose.msra.mxu0 0.0
    %1405 = vmatprep.subr.mxu0 0.0
    %1406 = vmatpush1.xpose.msra.mxu0 0.0
    %1407 = vmatprep.subr.mxu0 0.0
    %1408 = vmatpush1.xpose.msra.mxu0 0.0
    %1409 = vmatprep.subr.mxu0 0.0
    %1410 = vmatpush1.xpose.msra.mxu0 0.0
    %1411 = vmatprep.subr.mxu0 0.0
    %1412 = vmatpush1.xpose.msra.mxu0 0.0
    %1413 = vmatprep.subr.mxu0 0.0
    %1414 = vmatpush1.xpose.msra.mxu0 0.0
    %1415 = vmatprep.subr.mxu0 0.0
    %1416 = vmatpush1.xpose.msra.mxu0 0.0
    %1417 = vmatprep.subr.mxu0 0.0
    %1418 = vmatpush1.xpose.msra.mxu0 0.0
    %1419 = vmatprep.subr.mxu0 0.0
    %1420 = vmatpush1.xpose.msra.mxu0 0.0
    %1421 = vmatprep.subr.mxu0 0.0
    %1422 = vmatpush1.xpose.msra.mxu0 0.0
    %1423 = vmatprep.subr.mxu0 0.0
    %1424 = vmatpush1.xpose.msra.mxu0 0.0
    %1425 = vmatprep.subr.mxu0 0.0
    %1426 = vmatpush1.xpose.msra.mxu0 0.0
    %1427 = vmatprep.subr.mxu0 0.0
    %1428 = vmatpush1.xpose.msra.mxu0 0.0
    %1429 = vmatprep.subr.mxu0 0.0
    %1430 = vmatpush1.xpose.msra.mxu0 0.0
    %1431 = vmatprep.subr.mxu0 0.0
    %1432 = vmatpush1.xpose.msra.mxu0 0.0
    %1433 = vmatprep.subr.mxu0 0.0
    %1434 = vmatpush1.xpose.msra.mxu0 0.0
    %1435 = vmatprep.subr.mxu0 0.0
    %1436 = vmatpush1.xpose.msra.mxu0 0.0
    %1437 = vmatprep.mubr.f32.mxu0 0.0
    %1438 = vmatmul.mubr.f32.gmra.mrb[0].mxu0 %v1369
    %v1439 = vpop.f32.mrb[0].mxu0
    %v1440 = vadd.f32 0.0, %v1439
    %v1441 = vpop.f32.mrb[0].mxu0
    %1442 = vdwg.mxu0
    %v1443 = vsel %vm130, %v1440, -inf
    %1444 = vmax.xlane.f32.xlu0 %v1443
    %v1445 = vpop.xlane.xlu0 %1444
    %v1446 = vsub.f32 %v1440, %v1445
    %v1447 = vmul.f32 %v1446, 1.442695
    %v1448 = vpow.pop %v1447
    %v1449 = vsel %vm130, %v1448, 0.0
    %1450 = vadd.xlane.f32.xlu0 %v1449
    %v1451 = vpop.xlane.xlu0 %1450
    %v1452 = vrcp.pop %v1451
    %v1453 = vmul.f32 %v1448, %v1452
    %1454 = vrot.lane.b32.xlu0 %v113, 40
    %v1455 = vpop.permute.xlu0 %1454
    %v1458 = vsel %vm130, %v1453, 0
    %1460 = vmatprep.subr.mxu0 0.0
    %1461 = vmatpush1.msra.mxu0 %v1455
    %1462 = vmatprep.subr.mxu0 0.0
    %1463 = vmatpush1.msra.mxu0 0.0
    %1464 = vmatprep.subr.mxu0 0.0
    %1465 = vmatpush1.msra.mxu0 0.0
    %1466 = vmatprep.subr.mxu0 0.0
    %1467 = vmatpush1.msra.mxu0 0.0
    %1468 = vmatprep.subr.mxu0 0.0
    %1469 = vmatpush1.msra.mxu0 0.0
    %1470 = vmatprep.subr.mxu0 0.0
    %1471 = vmatpush1.msra.mxu0 0.0
    %1472 = vmatprep.subr.mxu0 0.0
    %1473 = vmatpush1.msra.mxu0 0.0
    %1474 = vmatprep.subr.mxu0 0.0
    %1475 = vmatpush1.msra.mxu0 0.0
    %1476 = vmatprep.subr.mxu0 0.0
    %1477 = vmatpush1.msra.mxu0 0.0
    %1478 = vmatprep.subr.mxu0 0.0
    %1479 = vmatpush1.msra.mxu0 0.0
    %1480 = vmatprep.subr.mxu0 0.0
    %1481 = vmatpush1.msra.mxu0 0.0
    %1482 = vmatprep.subr.mxu0 0.0
    %1483 = vmatpush1.msra.mxu0 0.0
    %1484 = vmatprep.subr.mxu0 0.0
    %1485 = vmatpush1.msra.mxu0 0.0
    %1486 = vmatprep.subr.mxu0 0.0
    %1487 = vmatpush1.msra.mxu0 0.0
    %1488 = vmatprep.subr.mxu0 0.0
    %1489 = vmatpush1.msra.mxu0 0.0
    %1490 = vmatprep.subr.mxu0 0.0
    %1491 = vmatpush1.msra.mxu0 0.0
    %1492 = vmatprep.subr.mxu0 0.0
    %1493 = vmatpush1.msra.mxu0 0.0
    %1494 = vmatprep.subr.mxu0 0.0
    %1495 = vmatpush1.msra.mxu0 0.0
    %1496 = vmatprep.subr.mxu0 0.0
    %1497 = vmatpush1.msra.mxu0 0.0
    %1498 = vmatprep.subr.mxu0 0.0
    %1499 = vmatpush1.msra.mxu0 0.0
    %1500 = vmatprep.subr.mxu0 0.0
    %1501 = vmatpush1.msra.mxu0 0.0
    %1502 = vmatprep.subr.mxu0 0.0
    %1503 = vmatpush1.msra.mxu0 0.0
    %1504 = vmatprep.subr.mxu0 0.0
    %1505 = vmatpush1.msra.mxu0 0.0
    %1506 = vmatprep.subr.mxu0 0.0
    %1507 = vmatpush1.msra.mxu0 0.0
    %1508 = vmatprep.subr.mxu0 0.0
    %1509 = vmatpush1.msra.mxu0 0.0
    %1510 = vmatprep.subr.mxu0 0.0
    %1511 = vmatpush1.msra.mxu0 0.0
    %1512 = vmatprep.subr.mxu0 0.0
    %1513 = vmatpush1.msra.mxu0 0.0
    %1514 = vmatprep.subr.mxu0 0.0
    %1515 = vmatpush1.msra.mxu0 0.0
    %1516 = vmatprep.subr.mxu0 0.0
    %1517 = vmatpush1.msra.mxu0 0.0
    %1518 = vmatprep.subr.mxu0 0.0
    %1519 = vmatpush1.msra.mxu0 0.0
    %1520 = vmatprep.subr.mxu0 0.0
    %1521 = vmatpush1.msra.mxu0 0.0
    %1522 = vmatprep.subr.mxu0 0.0
    %1523 = vmatpush1.msra.mxu0 0.0
    %1524 = vmatprep.mubr.f32.mxu0 0.0
    %1525 = vmatmul.mubr.f32.gmra.mrb[0].mxu0 %v1458
    %v1526 = vpop.f32.mrb[0].mxu0
    %v1527 = vadd.f32 0.0, %v1526
    %v1528 = vpop.f32.mrb[0].mxu0
    %1529 = vdwg.mxu0
    %1530 = vrot.lane.b32.xlu0 %v118, 104
    %v1531 = vpop.permute.xlu0 %1530
    %1532 = vrot.lane.b32.xlu0 %v118, 72
    %v1533 = vpop.permute.xlu0 %1532
    %v1534 = vsel %vm130, %v1531, 0
    %v1536 = vsel %vm130, %v1533, 0
    %1538 = vmatprep.subr.mxu0 0.0
    %1539 = vmatpush1.xpose.msra.mxu0 %v1536
    %1540 = vmatprep.subr.mxu0 0.0
    %1541 = vmatpush1.xpose.msra.mxu0 0.0
    %1542 = vmatprep.subr.mxu0 0.0
    %1543 = vmatpush1.xpose.msra.mxu0 0.0
    %1544 = vmatprep.subr.mxu0 0.0
    %1545 = vmatpush1.xpose.msra.mxu0 0.0
    %1546 = vmatprep.subr.mxu0 0.0
    %1547 = vmatpush1.xpose.msra.mxu0 0.0
    %1548 = vmatprep.subr.mxu0 0.0
    %1549 = vmatpush1.xpose.msra.mxu0 0.0
    %1550 = vmatprep.subr.mxu0 0.0
    %1551 = vmatpush1.xpose.msra.mxu0 0.0
    %1552 = vmatprep.subr.mxu0 0.0
    %1553 = vmatpush1.xpose.msra.mxu0 0.0
    %1554 = vmatprep.subr.mxu0 0.0
    %1555 = vmatpush1.xpose.msra.mxu0 0.0
    %1556 = vmatprep.subr.mxu0 0.0
    %1557 = vmatpush1.xpose.msra.mxu0 0.0
    %1558 = vmatprep.subr.mxu0 0.0
    %1559 = vmatpush1.xpose.msra.mxu0 0.0
    %1560 = vmatprep.subr.mxu0 0.0
    %1561 = vmatpush1.xpose.msra.mxu0 0.0
    %1562 = vmatprep.subr.mxu0 0.0
    %1563 = vmatpush1.xpose.msra.mxu0 0.0
    %1564 = vmatprep.subr.mxu0 0.0
    %1565 = vmatpush1.xpose.msra.mxu0 0.0
    %1566 = vmatprep.subr.mxu0 0.0
    %1567 = vmatpush1.xpose.msra.mxu0 0.0
    %1568 = vmatprep.subr.mxu0 0.0
    %1569 = vmatpush1.xpose.msra.mxu0 0.0
    %1570 = vmatprep.subr.mxu0 0.0
    %1571 = vmatpush1.xpose.msra.mxu0 0.0
    %1572 = vmatprep.subr.mxu0 0.0
    %1573 = vmatpush1.xpose.msra.mxu0 0.0
    %1574 = vmatprep.subr.mxu0 0.0
    %1575 = vmatpush1.xpose.msra.mxu0 0.0
    %1576 = vmatprep.subr.mxu0 0.0
    %1577 = vmatpush1.xpose.msra.mxu0 0.0
    %1578 = vmatprep.subr.mxu0 0.0
    %1579 = vmatpush1.xpose.msra.mxu0 0.0
    %1580 = vmatprep.subr.mxu0 0.0
    %1581 = vmatpush1.xpose.msra.mxu0 0.0
    %1582 = vmatprep.subr.mxu0 0.0
    %1583 = vmatpush1.xpose.msra.mxu0 0.0
    %1584 = vmatprep.subr.mxu0 0.0
    %1585 = vmatpush1.xpose.msra.mxu0 0.0
    %1586 = vmatprep.subr.mxu0 0.0
    %1587 = vmatpush1.xpose.msra.mxu0 0.0
    %1588 = vmatprep.subr.mxu0 0.0
    %1589 = vmatpush1.xpose.msra.mxu0 0.0
    %1590 = vmatprep.subr.mxu0 0.0
    %1591 = vmatpush1.xpose.msra.mxu0 0.0
    %1592 = vmatprep.subr.mxu0 0.0
    %1593 = vmatpush1.xpose.msra.mxu0 0.0
    %1594 = vmatprep.subr.mxu0 0.0
    %1595 = vmatpush1.xpose.msra.mxu0 0.0
    %1596 = vmatprep.subr.mxu0 0.0
    %1597 = vmatpush1.xpose.msra.mxu0 0.0
    %1598 = vmatprep.subr.mxu0 0.0
    %1599 = vmatpush1.xpose.msra.mxu0 0.0
    %1600 = vmatprep.subr.mxu0 0.0
    %1601 = vmatpush1.xpose.msra.mxu0 0.0
    %1602 = vmatprep.mubr.f32.mxu0 0.0
    %1603 = vmatmul.mubr.f32.gmra.mrb[0].mxu0 %v1534
    %v1604 = vpop.f32.mrb[0].mxu0
    %v1605 = vadd.f32 0.0, %v1604
    %v1606 = vpop.f32.mrb[0].mxu0
    %1607 = vdwg.mxu0
    %v1608 = vsel %vm130, %v1605, -inf
    %1609 = vmax.xlane.f32.xlu0 %v1608
    %v1610 = vpop.xlane.xlu0 %1609
    %v1611 = vsub.f32 %v1605, %v1610
    %v1612 = vmul.f32 %v1611, 1.442695
    %v1613 = vpow.pop %v1612
    %v1614 = vsel %vm130, %v1613, 0.0
    %1615 = vadd.xlane.f32.xlu0 %v1614
    %v1616 = vpop.xlane.xlu0 %1615
    %v1617 = vrcp.pop %v1616
    %v1618 = vmul.f32 %v1613, %v1617
    %1619 = vrot.lane.b32.xlu0 %v118, 40
    %v1620 = vpop.permute.xlu0 %1619
    %v1623 = vsel %vm130, %v1618, 0
    %1625 = vmatprep.subr.mxu0 0.0
    %1626 = vmatpush1.msra.mxu0 %v1620
    %1627 = vmatprep.subr.mxu0 0.0
    %1628 = vmatpush1.msra.mxu0 0.0
    %1629 = vmatprep.subr.mxu0 0.0
    %1630 = vmatpush1.msra.mxu0 0.0
    %1631 = vmatprep.subr.mxu0 0.0
    %1632 = vmatpush1.msra.mxu0 0.0
    %1633 = vmatprep.subr.mxu0 0.0
    %1634 = vmatpush1.msra.mxu0 0.0
    %1635 = vmatprep.subr.mxu0 0.0
    %1636 = vmatpush1.msra.mxu0 0.0
    %1637 = vmatprep.subr.mxu0 0.0
    %1638 = vmatpush1.msra.mxu0 0.0
    %1639 = vmatprep.subr.mxu0 0.0
    %1640 = vmatpush1.msra.mxu0 0.0
    %1641 = vmatprep.subr.mxu0 0.0
    %1642 = vmatpush1.msra.mxu0 0.0
    %1643 = vmatprep.subr.mxu0 0.0
    %1644 = vmatpush1.msra.mxu0 0.0
    %1645 = vmatprep.subr.mxu0 0.0
    %1646 = vmatpush1.msra.mxu0 0.0
    %1647 = vmatprep.subr.mxu0 0.0
    %1648 = vmatpush1.msra.mxu0 0.0
    %1649 = vmatprep.subr.mxu0 0.0
    %1650 = vmatpush1.msra.mxu0 0.0
    %1651 = vmatprep.subr.mxu0 0.0
    %1652 = vmatpush1.msra.mxu0 0.0
    %1653 = vmatprep.subr.mxu0 0.0
    %1654 = vmatpush1.msra.mxu0 0.0
    %1655 = vmatprep.subr.mxu0 0.0
    %1656 = vmatpush1.msra.mxu0 0.0
    %1657 = vmatprep.subr.mxu0 0.0
    %1658 = vmatpush1.msra.mxu0 0.0
    %1659 = vmatprep.subr.mxu0 0.0
    %1660 = vmatpush1.msra.mxu0 0.0
    %1661 = vmatprep.subr.mxu0 0.0
    %1662 = vmatpush1.msra.mxu0 0.0
    %1663 = vmatprep.subr.mxu0 0.0
    %1664 = vmatpush1.msra.mxu0 0.0
    %1665 = vmatprep.subr.mxu0 0.0
    %1666 = vmatpush1.msra.mxu0 0.0
    %1667 = vmatprep.subr.mxu0 0.0
    %1668 = vmatpush1.msra.mxu0 0.0
    %1669 = vmatprep.subr.mxu0 0.0
    %1670 = vmatpush1.msra.mxu0 0.0
    %1671 = vmatprep.subr.mxu0 0.0
    %1672 = vmatpush1.msra.mxu0 0.0
    %1673 = vmatprep.subr.mxu0 0.0
    %1674 = vmatpush1.msra.mxu0 0.0
    %1675 = vmatprep.subr.mxu0 0.0
    %1676 = vmatpush1.msra.mxu0 0.0
    %1677 = vmatprep.subr.mxu0 0.0
    %1678 = vmatpush1.msra.mxu0 0.0
    %1679 = vmatprep.subr.mxu0 0.0
    %1680 = vmatpush1.msra.mxu0 0.0
    %1681 = vmatprep.subr.mxu0 0.0
    %1682 = vmatpush1.msra.mxu0 0.0
    %1683 = vmatprep.subr.mxu0 0.0
    %1684 = vmatpush1.msra.mxu0 0.0
    %1685 = vmatprep.subr.mxu0 0.0
    %1686 = vmatpush1.msra.mxu0 0.0
    %1687 = vmatprep.subr.mxu0 0.0
    %1688 = vmatpush1.msra.mxu0 0.0
    %1689 = vmatprep.mubr.f32.mxu0 0.0
    %1690 = vmatmul.mubr.f32.gmra.mrb[0].mxu0 %v1623
    %v1691 = vpop.f32.mrb[0].mxu0
    %v1692 = vadd.f32 0.0, %v1691
    %v1693 = vpop.f32.mrb[0].mxu0
    %1694 = vdwg.mxu0
    %v1696 = vsel %vm130, %v1527, 0
    %v1699 = vsel %vm130, %v1692, 0
    %1701 = vmatprep.subr.mxu0 0.0
    %1702 = vmatpush1.msra.mxu0 %v36
    %1703 = vmatprep.subr.mxu0 0.0
    %1704 = vmatpush1.msra.mxu0 0.0
    %1705 = vmatprep.subr.mxu0 0.0
    %1706 = vmatpush1.msra.mxu0 0.0
    %1707 = vmatprep.subr.mxu0 0.0
    %1708 = vmatpush1.msra.mxu0 0.0
    %1709 = vmatprep.subr.mxu0 0.0
    %1710 = vmatpush1.msra.mxu0 0.0
    %1711 = vmatprep.subr.mxu0 0.0
    %1712 = vmatpush1.msra.mxu0 0.0
    %1713 = vmatprep.subr.mxu0 0.0
    %1714 = vmatpush1.msra.mxu0 0.0
    %1715 = vmatprep.subr.mxu0 0.0
    %1716 = vmatpush1.msra.mxu0 0.0
    %1717 = vmatprep.subr.mxu0 0.0
    %1718 = vmatpush1.msra.mxu0 0.0
    %1719 = vmatprep.subr.mxu0 0.0
    %1720 = vmatpush1.msra.mxu0 0.0
    %1721 = vmatprep.subr.mxu0 0.0
    %1722 = vmatpush1.msra.mxu0 0.0
    %1723 = vmatprep.subr.mxu0 0.0
    %1724 = vmatpush1.msra.mxu0 0.0
    %1725 = vmatprep.subr.mxu0 0.0
    %1726 = vmatpush1.msra.mxu0 0.0
    %1727 = vmatprep.subr.mxu0 0.0
    %1728 = vmatpush1.msra.mxu0 0.0
    %1729 = vmatprep.subr.mxu0 0.0
    %1730 = vmatpush1.msra.mxu0 0.0
    %1731 = vmatprep.subr.mxu0 0.0
    %1732 = vmatpush1.msra.mxu0 0.0
    %1733 = vmatprep.subr.mxu0 0.0
    %1734 = vmatpush1.msra.mxu0 0.0
    %1735 = vmatprep.subr.mxu0 0.0
    %1736 = vmatpush1.msra.mxu0 0.0
    %1737 = vmatprep.subr.mxu0 0.0
    %1738 = vmatpush1.msra.mxu0 0.0
    %1739 = vmatprep.subr.mxu0 0.0
    %1740 = vmatpush1.msra.mxu0 0.0
    %1741 = vmatprep.subr.mxu0 0.0
    %1742 = vmatpush1.msra.mxu0 0.0
    %1743 = vmatprep.subr.mxu0 0.0
    %1744 = vmatpush1.msra.mxu0 0.0
    %1745 = vmatprep.subr.mxu0 0.0
    %1746 = vmatpush1.msra.mxu0 0.0
    %1747 = vmatprep.subr.mxu0 0.0
    %1748 = vmatpush1.msra.mxu0 0.0
    %1749 = vmatprep.subr.mxu0 0.0
    %1750 = vmatpush1.msra.mxu0 0.0
    %1751 = vmatprep.subr.mxu0 0.0
    %1752 = vmatpush1.msra.mxu0 0.0
    %1753 = vmatprep.subr.mxu0 0.0
    %1754 = vmatpush1.msra.mxu0 0.0
    %1755 = vmatprep.subr.mxu0 0.0
    %1756 = vmatpush1.msra.mxu0 0.0
    %1757 = vmatprep.subr.mxu0 0.0
    %1758 = vmatpush1.msra.mxu0 0.0
    %1759 = vmatprep.subr.mxu0 0.0
    %1760 = vmatpush1.msra.mxu0 0.0
    %1761 = vmatprep.subr.mxu0 0.0
    %1762 = vmatpush1.msra.mxu0 0.0
    %1763 = vmatprep.subr.mxu0 0.0
    %1764 = vmatpush1.msra.mxu0 0.0
    %1765 = vmatprep.mubr.f32.mxu0 0.0
    %1766 = vmatmul.mubr.f32.gmra.mrb[0].mxu0 %v1696
    %v1767 = vpop.f32.mrb[0].mxu0
    %v1768 = vadd.f32 0.0, %v1767
    %v1769 = vpop.f32.mrb[0].mxu0
    %1770 = vmatprep.mubr.f32.mxu0 0.0
    %1771 = vmatmul.mubr.f32.gmra.mrb[0].mxu0 %v1699
    %v1772 = vpop.f32.mrb[0].mxu0
    %v1773 = vadd.f32 0.0, %v1772
    %v1774 = vpop.f32.mrb[0].mxu0
    %1775 = vdwg.mxu0
    %v1776 = vadd.f32 %v1363, %v1768
    %v1777 = vadd.f32 %v1364, %v1773
    %v1778 = vsel %vm39, %v1776, 0.0
    %1779 = vadd.xlane.f32.xlu0 %v1778
    %v1780 = vpop.xlane.xlu0 %1779
    %v1781 = vsel %vm39, %v1777, 0.0
    %1782 = vadd.xlane.f32.xlu0 %v1781
    %v1783 = vpop.xlane.xlu0 %1782
    %v1784 = vrcp.pop 32.0
    %v1785 = vmul.f32 %v1780, %v1784
    %v1786 = vmul.f32 %v1783, %v1784
    %v1787 = vsub.f32 %v1776, %v1785
    %v1788 = vsub.f32 %v1777, %v1786
    %v1789 = vmul.f32 %v1787, %v1787
    %v1790 = vmul.f32 %v1788, %v1788
    %v1791 = vsel %vm39, %v1789, 0.0
    %1792 = vadd.xlane.f32.xlu0 %v1791
    %v1793 = vpop.xlane.xlu0 %1792
    %v1794 = vsel %vm39, %v1790, 0.0
    %1795 = vadd.xlane.f32.xlu0 %v1794
    %v1796 = vpop.xlane.xlu0 %1795
    %v1797 = vmul.f32 %v1793, %v1784
    %v1798 = vmul.f32 %v1796, %v1784
    %v1799 = vadd.f32 %v1797, 1e-05
    %v1800 = vadd.f32 %v1798, 1e-05
    %v1801 = vrsqrt.pop %v1799
    %v1802 = vrsqrt.pop %v1800
    %v1803 = vmul.f32 %v1787, %v1801
    %v1804 = vmul.f32 %v1788, %v1802
    %v1805 = vlaneseq
    %v1806 = vshrl.u32 %v1805, 7
    %v1807 = vsub.s32 1, %v1806
    %v1808 = vrot.slane %v37, %v1807
    %v1809 = vmul.f32 %v1803, %v1808
    %v1810 = vmul.f32 %v1804, %v1808
    %v1811 = vlaneseq
    %v1812 = vshrl.u32 %v1811, 7
    %v1813 = vsub.s32 2, %v1812
    %v1814 = vrot.slane %v37, %v1813
    %v1815 = vadd.f32 %v1809, %v1814
    %v1816 = vadd.f32 %v1810, %v1814
    %v1817 = vld [vmem:[%s3] sm:$0xff]
    %v1818 = vld [vmem:[%s3 + $0x8] sm:$0xff]
    %v1819 = vld [vmem:[%s3 + $0x10] sm:$0xff]
    %v1820 = vld [vmem:[%s3 + $0x18] sm:$0xff]
    %v1822 = vlaneseq
    %v1823 = vshrl.u32 %v1822, 7
    %v1824 = vsub.s32 0, %v1823
    %v1825 = vrot.slane %v38, %v1824
    %v1828 = vsel %vm39, %v1815, 0
    %v1831 = vsel %vm39, %v1816, 0
    %1833 = vmatprep.subr.mxu0 0.0
    %1834 = vmatpush1.msra.mxu0 %v1817
    %1835 = vmatprep.subr.mxu0 0.0
    %1836 = vmatpush1.msra.mxu0 %v1818
    %1837 = vmatprep.subr.mxu0 0.0
    %1838 = vmatpush1.msra.mxu0 %v1819
    %1839 = vmatprep.subr.mxu0 0.0
    %1840 = vmatpush1.msra.mxu0 %v1820
    %1841 = vmatprep.subr.mxu0 0.0
    %1842 = vmatpush1.msra.mxu0 0.0
    %1843 = vmatprep.subr.mxu0 0.0
    %1844 = vmatpush1.msra.mxu0 0.0
    %1845 = vmatprep.subr.mxu0 0.0
    %1846 = vmatpush1.msra.mxu0 0.0
    %1847 = vmatprep.subr.mxu0 0.0
    %1848 = vmatpush1.msra.mxu0 0.0
    %1849 = vmatprep.subr.mxu0 0.0
    %1850 = vmatpush1.msra.mxu0 0.0
    %1851 = vmatprep.subr.mxu0 0.0
    %1852 = vmatpush1.msra.mxu0 0.0
    %1853 = vmatprep.subr.mxu0 0.0
    %1854 = vmatpush1.msra.mxu0 0.0
    %1855 = vmatprep.subr.mxu0 0.0
    %1856 = vmatpush1.msra.mxu0 0.0
    %1857 = vmatprep.subr.mxu0 0.0
    %1858 = vmatpush1.msra.mxu0 0.0
    %1859 = vmatprep.subr.mxu0 0.0
    %1860 = vmatpush1.msra.mxu0 0.0
    %1861 = vmatprep.subr.mxu0 0.0
    %1862 = vmatpush1.msra.mxu0 0.0
    %1863 = vmatprep.subr.mxu0 0.0
    %1864 = vmatpush1.msra.mxu0 0.0
    %1865 = vmatprep.subr.mxu0 0.0
    %1866 = vmatpush1.msra.mxu0 0.0
    %1867 = vmatprep.subr.mxu0 0.0
    %1868 = vmatpush1.msra.mxu0 0.0
    %1869 = vmatprep.subr.mxu0 0.0
    %1870 = vmatpush1.msra.mxu0 0.0
    %1871 = vmatprep.subr.mxu0 0.0
    %1872 = vmatpush1.msra.mxu0 0.0
    %1873 = vmatprep.subr.mxu0 0.0
    %1874 = vmatpush1.msra.mxu0 0.0
    %1875 = vmatprep.subr.mxu0 0.0
    %1876 = vmatpush1.msra.mxu0 0.0
    %1877 = vmatprep.subr.mxu0 0.0
    %1878 = vmatpush1.msra.mxu0 0.0
    %1879 = vmatprep.subr.mxu0 0.0
    %1880 = vmatpush1.msra.mxu0 0.0
    %1881 = vmatprep.subr.mxu0 0.0
    %1882 = vmatpush1.msra.mxu0 0.0
    %1883 = vmatprep.subr.mxu0 0.0
    %1884 = vmatpush1.msra.mxu0 0.0
    %1885 = vmatprep.subr.mxu0 0.0
    %1886 = vmatpush1.msra.mxu0 0.0
    %1887 = vmatprep.subr.mxu0 0.0
    %1888 = vmatpush1.msra.mxu0 0.0
    %1889 = vmatprep.subr.mxu0 0.0
    %1890 = vmatpush1.msra.mxu0 0.0
    %1891 = vmatprep.subr.mxu0 0.0
    %1892 = vmatpush1.msra.mxu0 0.0
    %1893 = vmatprep.subr.mxu0 0.0
    %1894 = vmatpush1.msra.mxu0 0.0
    %1895 = vmatprep.subr.mxu0 0.0
    %1896 = vmatpush1.msra.mxu0 0.0
    %1897 = vmatprep.mubr.f32.mxu0 0.0
    %1898 = vmatmul.mubr.f32.gmra.mrb[0].mxu0 %v1828
    %v1899 = vpop.f32.mrb[0].mxu0
    %v1900 = vadd.f32 %v1825, %v1899
    %v1901 = vpop.f32.mrb[0].mxu0
    %1902 = vmatprep.mubr.f32.mxu0 0.0
    %1903 = vmatmul.mubr.f32.gmra.mrb[0].mxu0 %v1831
    %v1904 = vpop.f32.mrb[0].mxu0
    %v1905 = vadd.f32 %v1825, %v1904
    %v1906 = vpop.f32.mrb[0].mxu0
    %1907 = vdwg.mxu0
    %v1908 = vmax.f32 %v1900, 0.0
    %v1909 = vmax.f32 %v1905, 0.0
    %v1910 = vld [vmem:[%s4] sm:$0xff]
    %v1911 = vld [vmem:[%s4 + $0x8] sm:$0xff]
    %v1912 = vld [vmem:[%s4 + $0x10] sm:$0xff]
    %v1913 = vld [vmem:[%s4 + $0x18] sm:$0xff]
    %v1914 = vld [vmem:[%s4 + $0x20] sm:$0xff]
    %v1915 = vld [vmem:[%s4 + $0x28] sm:$0xff]
    %v1916 = vld [vmem:[%s4 + $0x30] sm:$0xff]
    %v1917 = vld [vmem:[%s4 + $0x38] sm:$0xff]
    %v1918 = vld [vmem:[%s4 + $0x40] sm:$0xff]
    %v1919 = vld [vmem:[%s4 + $0x48] sm:$0xff]
    %v1920 = vld [vmem:[%s4 + $0x50] sm:$0xff]
    %v1921 = vld [vmem:[%s4 + $0x58] sm:$0xff]
    %v1922 = vld [vmem:[%s4 + $0x60] sm:$0xff]
    %v1923 = vld [vmem:[%s4 + $0x68] sm:$0xff]
    %v1924 = vld [vmem:[%s4 + $0x70] sm:$0xff]
    %v1925 = vld [vmem:[%s4 + $0x78] sm:$0xff]
    %v1926 = vlaneseq
    %v1927 = vshrl.u32 %v1926, 7
    %v1928 = vsub.s32 3, %v1927
    %v1929 = vrot.slane %v37, %v1928
    %1930 = vmatprep.subr.mxu0 0.0
    %1931 = vmatpush1.msra.mxu0 %v1910
    %1932 = vmatprep.subr.mxu0 0.0
    %1933 = vmatpush1.msra.mxu0 %v1911
    %1934 = vmatprep.subr.mxu0 0.0
    %1935 = vmatpush1.msra.mxu0 %v1912
    %1936 = vmatprep.subr.mxu0 0.0
    %1937 = vmatpush1.msra.mxu0 %v1913
    %1938 = vmatprep.subr.mxu0 0.0
    %1939 = vmatpush1.msra.mxu0 %v1914
    %1940 = vmatprep.subr.mxu0 0.0
    %1941 = vmatpush1.msra.mxu0 %v1915
    %1942 = vmatprep.subr.mxu0 0.0
    %1943 = vmatpush1.msra.mxu0 %v1916
    %1944 = vmatprep.subr.mxu0 0.0
    %1945 = vmatpush1.msra.mxu0 %v1917
    %1946 = vmatprep.subr.mxu0 0.0
    %1947 = vmatpush1.msra.mxu0 %v1918
    %1948 = vmatprep.subr.mxu0 0.0
    %1949 = vmatpush1.msra.mxu0 %v1919
    %1950 = vmatprep.subr.mxu0 0.0
    %1951 = vmatpush1.msra.mxu0 %v1920
    %1952 = vmatprep.subr.mxu0 0.0
    %1953 = vmatpush1.msra.mxu0 %v1921
    %1954 = vmatprep.subr.mxu0 0.0
    %1955 = vmatpush1.msra.mxu0 %v1922
    %1956 = vmatprep.subr.mxu0 0.0
    %1957 = vmatpush1.msra.mxu0 %v1923
    %1958 = vmatprep.subr.mxu0 0.0
    %1959 = vmatpush1.msra.mxu0 %v1924
    %1960 = vmatprep.subr.mxu0 0.0
    %1961 = vmatpush1.msra.mxu0 %v1925
    %1962 = vmatprep.subr.mxu0 0.0
    %1963 = vmatpush1.msra.mxu0 0.0
    %1964 = vmatprep.subr.mxu0 0.0
    %1965 = vmatpush1.msra.mxu0 0.0
    %1966 = vmatprep.subr.mxu0 0.0
    %1967 = vmatpush1.msra.mxu0 0.0
    %1968 = vmatprep.subr.mxu0 0.0
    %1969 = vmatpush1.msra.mxu0 0.0
    %1970 = vmatprep.subr.mxu0 0.0
    %1971 = vmatpush1.msra.mxu0 0.0
    %1972 = vmatprep.subr.mxu0 0.0
    %1973 = vmatpush1.msra.mxu0 0.0
    %1974 = vmatprep.subr.mxu0 0.0
    %1975 = vmatpush1.msra.mxu0 0.0
    %1976 = vmatprep.subr.mxu0 0.0
    %1977 = vmatpush1.msra.mxu0 0.0
    %1978 = vmatprep.subr.mxu0 0.0
    %1979 = vmatpush1.msra.mxu0 0.0
    %1980 = vmatprep.subr.mxu0 0.0
    %1981 = vmatpush1.msra.mxu0 0.0
    %1982 = vmatprep.subr.mxu0 0.0
    %1983 = vmatpush1.msra.mxu0 0.0
    %1984 = vmatprep.subr.mxu0 0.0
    %1985 = vmatpush1.msra.mxu0 0.0
    %1986 = vmatprep.subr.mxu0 0.0
    %1987 = vmatpush1.msra.mxu0 0.0
    %1988 = vmatprep.subr.mxu0 0.0
    %1989 = vmatpush1.msra.mxu0 0.0
    %1990 = vmatprep.subr.mxu0 0.0
    %1991 = vmatpush1.msra.mxu0 0.0
    %1992 = vmatprep.subr.mxu0 0.0
    %1993 = vmatpush1.msra.mxu0 0.0
    %1994 = vmatprep.mubr.f32.mxu0 0.0
    %1995 = vmatmul.mubr.f32.gmra.mrb[0].mxu0 %v1908
    %v1996 = vpop.f32.mrb[0].mxu0
    %v1997 = vadd.f32 %v1929, %v1996
    %v1998 = vpop.f32.mrb[0].mxu0
    %1999 = vmatprep.mubr.f32.mxu0 0.0
    %2000 = vmatmul.mubr.f32.gmra.mrb[0].mxu0 %v1909
    %v2001 = vpop.f32.mrb[0].mxu0
    %v2002 = vadd.f32 %v1929, %v2001
    %v2003 = vpop.f32.mrb[0].mxu0
    %2004 = vdwg.mxu0
    %v2005 = vadd.f32 %v1997, %v1815
    %v2006 = vadd.f32 %v2002, %v1816
    %v2007 = vsel %vm39, %v2005, 0.0
    %2008 = vadd.xlane.f32.xlu0 %v2007
    %v2009 = vpop.xlane.xlu0 %2008
    %v2010 = vsel %vm39, %v2006, 0.0
    %2011 = vadd.xlane.f32.xlu0 %v2010
    %v2012 = vpop.xlane.xlu0 %2011
    %v2013 = vmul.f32 %v2009, %v1784
    %v2014 = vmul.f32 %v2012, %v1784
    %v2015 = vsub.f32 %v2005, %v2013
    %v2016 = vsub.f32 %v2006, %v2014
    %v2017 = vmul.f32 %v2015, %v2015
    %v2018 = vmul.f32 %v2016, %v2016
    %v2019 = vsel %vm39, %v2017, 0.0
    %2020 = vadd.xlane.f32.xlu0 %v2019
    %v2021 = vpop.xlane.xlu0 %2020
    %v2022 = vsel %vm39, %v2018, 0.0
    %2023 = vadd.xlane.f32.xlu0 %v2022
    %v2024 = vpop.xlane.xlu0 %2023
    %v2025 = vmul.f32 %v2021, %v1784
    %v2026 = vmul.f32 %v2024, %v1784
    %v2027 = vadd.f32 %v2025, 1e-05
    %v2028 = vadd.f32 %v2026, 1e-05
    %v2029 = vrsqrt.pop %v2027
    %v2030 = vrsqrt.pop %v2028
    %v2031 = vmul.f32 %v2015, %v2029
    %v2032 = vmul.f32 %v2016, %v2030
    %v2033 = vlaneseq
    %v2034 = vshrl.u32 %v2033, 7
    %v2035 = vsub.s32 4, %v2034
    %v2036 = vrot.slane %v37, %v2035
    %v2037 = vmul.f32 %v2031, %v2036
    %v2038 = vmul.f32 %v2032, %v2036
    %v2039 = vlaneseq
    %v2040 = vshrl.u32 %v2039, 7
    %v2041 = vsub.s32 5, %v2040
    %v2042 = vrot.slane %v37, %v2041
    %v2043 = vadd.f32 %v2037, %v2042
    %v2044 = vadd.f32 %v2038, %v2042
    %s2045 = scalar_lea.vmem %s1, 32
    %v2046 = vld [vmem:[%s2045] sm:$0xff]
    %v2047 = vld [vmem:[%s2045 + $0x8] sm:$0xff]
    %v2048 = vld [vmem:[%s2045 + $0x10] sm:$0xff]
    %v2049 = vld [vmem:[%s2045 + $0x18] sm:$0xff]
    %s2050 = scalar_lea.vmem %s2, 32
    %v2051 = vld [vmem:[%s2050] sm:$0xff]
    %v2052 = vld [vmem:[%s2050 + $0x8] sm:$0xff]
    %v2053 = vld [vmem:[%s2050 + $0x10] sm:$0xff]
    %v2054 = vld [vmem:[%s2050 + $0x18] sm:$0xff]
    %s2055 = scalar_lea.vmem %s5, 8
    %v2056 = vld [vmem:[%s2055] sm:$0x3f]
    %s2057 = scalar_lea.vmem %s6, 1
    %v2058 = vld [vmem:[%s2057] sm:$0x1]
    %v2060 = vsel %vm39, %v2043, 0
    %v2063 = vsel %vm39, %v2044, 0
    %2065 = vmatprep.subr.mxu0 0.0
    %2066 = vmatpush1.msra.mxu0 %v2046
    %2067 = vmatprep.subr.mxu0 0.0
    %2068 = vmatpush1.msra.mxu0 %v2047
    %2069 = vmatprep.subr.mxu0 0.0
    %2070 = vmatpush1.msra.mxu0 %v2048
    %2071 = vmatprep.subr.mxu0 0.0
    %2072 = vmatpush1.msra.mxu0 %v2049
    %2073 = vmatprep.subr.mxu0 0.0
    %2074 = vmatpush1.msra.mxu0 0.0
    %2075 = vmatprep.subr.mxu0 0.0
    %2076 = vmatpush1.msra.mxu0 0.0
    %2077 = vmatprep.subr.mxu0 0.0
    %2078 = vmatpush1.msra.mxu0 0.0
    %2079 = vmatprep.subr.mxu0 0.0
    %2080 = vmatpush1.msra.mxu0 0.0
    %2081 = vmatprep.subr.mxu0 0.0
    %2082 = vmatpush1.msra.mxu0 0.0
    %2083 = vmatprep.subr.mxu0 0.0
    %2084 = vmatpush1.msra.mxu0 0.0
    %2085 = vmatprep.subr.mxu0 0.0
    %2086 = vmatpush1.msra.mxu0 0.0
    %2087 = vmatprep.subr.mxu0 0.0
    %2088 = vmatpush1.msra.mxu0 0.0
    %2089 = vmatprep.subr.mxu0 0.0
    %2090 = vmatpush1.msra.mxu0 0.0
    %2091 = vmatprep.subr.mxu0 0.0
    %2092 = vmatpush1.msra.mxu0 0.0
    %2093 = vmatprep.subr.mxu0 0.0
    %2094 = vmatpush1.msra.mxu0 0.0
    %2095 = vmatprep.subr.mxu0 0.0
    %2096 = vmatpush1.msra.mxu0 0.0
    %2097 = vmatprep.subr.mxu0 0.0
    %2098 = vmatpush1.msra.mxu0 0.0
    %2099 = vmatprep.subr.mxu0 0.0
    %2100 = vmatpush1.msra.mxu0 0.0
    %2101 = vmatprep.subr.mxu0 0.0
    %2102 = vmatpush1.msra.mxu0 0.0
    %2103 = vmatprep.subr.mxu0 0.0
    %2104 = vmatpush1.msra.mxu0 0.0
    %2105 = vmatprep.subr.mxu0 0.0
    %2106 = vmatpush1.msra.mxu0 0.0
    %2107 = vmatprep.subr.mxu0 0.0
    %2108 = vmatpush1.msra.mxu0 0.0
    %2109 = vmatprep.subr.mxu0 0.0
    %2110 = vmatpush1.msra.mxu0 0.0
    %2111 = vmatprep.subr.mxu0 0.0
    %2112 = vmatpush1.msra.mxu0 0.0
    %2113 = vmatprep.subr.mxu0 0.0
    %2114 = vmatpush1.msra.mxu0 0.0
    %2115 = vmatprep.subr.mxu0 0.0
    %2116 = vmatpush1.msra.mxu0 0.0
    %2117 = vmatprep.subr.mxu0 0.0
    %2118 = vmatpush1.msra.mxu0 0.0
    %2119 = vmatprep.subr.mxu0 0.0
    %2120 = vmatpush1.msra.mxu0 0.0
    %2121 = vmatprep.subr.mxu0 0.0
    %2122 = vmatpush1.msra.mxu0 0.0
    %2123 = vmatprep.subr.mxu0 0.0
    %2124 = vmatpush1.msra.mxu0 0.0
    %2125 = vmatprep.subr.mxu0 0.0
    %2126 = vmatpush1.msra.mxu0 0.0
    %2127 = vmatprep.subr.mxu0 0.0
    %2128 = vmatpush1.msra.mxu0 0.0
    %2129 = vmatprep.mubr.f32.mxu0 0.0
    %2130 = vmatmul.mubr.f32.gmra.mrb[0].mxu0 %v2060
    %v2131 = vpop.f32.mrb[0].mxu0
    %v2132 = vadd.f32 0.0, %v2131
    %v2133 = vpop.f32.mrb[0].mxu0
    %2134 = vmatprep.mubr.f32.mxu0 0.0
    %2135 = vmatmul.mubr.f32.gmra.mrb[0].mxu0 %v2063
    %v2136 = vpop.f32.mrb[0].mxu0
    %v2137 = vadd.f32 0.0, %v2136
    %v2138 = vpop.f32.mrb[0].mxu0
    %2139 = vdwg.mxu0
    %v2140 = vlaneseq
    %v2141 = vshrl.u32 %v2140, 7
    %v2142 = vsub.s32 0, %v2141
    %v2143 = vrot.slane %v2056, %v2142
    %v2144 = vadd.f32 %v2043, %v2143
    %v2145 = vadd.f32 %v2044, %v2143
    %2147 = vrot.lane.b32.xlu0 %v2132, 96
    %v2148 = vpop.permute.xlu0 %2147
    %v2149 = vsel %vm130, %v2132, 0
    %v2151 = vsel %vm130, %v2148, 0
    %2153 = vmatprep.subr.mxu0 0.0
    %2154 = vmatpush1.xpose.msra.mxu0 %v2151
    %2155 = vmatprep.subr.mxu0 0.0
    %2156 = vmatpush1.xpose.msra.mxu0 0.0
    %2157 = vmatprep.subr.mxu0 0.0
    %2158 = vmatpush1.xpose.msra.mxu0 0.0
    %2159 = vmatprep.subr.mxu0 0.0
    %2160 = vmatpush1.xpose.msra.mxu0 0.0
    %2161 = vmatprep.subr.mxu0 0.0
    %2162 = vmatpush1.xpose.msra.mxu0 0.0
    %2163 = vmatprep.subr.mxu0 0.0
    %2164 = vmatpush1.xpose.msra.mxu0 0.0
    %2165 = vmatprep.subr.mxu0 0.0
    %2166 = vmatpush1.xpose.msra.mxu0 0.0
    %2167 = vmatprep.subr.mxu0 0.0
    %2168 = vmatpush1.xpose.msra.mxu0 0.0
    %2169 = vmatprep.subr.mxu0 0.0
    %2170 = vmatpush1.xpose.msra.mxu0 0.0
    %2171 = vmatprep.subr.mxu0 0.0
    %2172 = vmatpush1.xpose.msra.mxu0 0.0
    %2173 = vmatprep.subr.mxu0 0.0
    %2174 = vmatpush1.xpose.msra.mxu0 0.0
    %2175 = vmatprep.subr.mxu0 0.0
    %2176 = vmatpush1.xpose.msra.mxu0 0.0
    %2177 = vmatprep.subr.mxu0 0.0
    %2178 = vmatpush1.xpose.msra.mxu0 0.0
    %2179 = vmatprep.subr.mxu0 0.0
    %2180 = vmatpush1.xpose.msra.mxu0 0.0
    %2181 = vmatprep.subr.mxu0 0.0
    %2182 = vmatpush1.xpose.msra.mxu0 0.0
    %2183 = vmatprep.subr.mxu0 0.0
    %2184 = vmatpush1.xpose.msra.mxu0 0.0
    %2185 = vmatprep.subr.mxu0 0.0
    %2186 = vmatpush1.xpose.msra.mxu0 0.0
    %2187 = vmatprep.subr.mxu0 0.0
    %2188 = vmatpush1.xpose.msra.mxu0 0.0
    %2189 = vmatprep.subr.mxu0 0.0
    %2190 = vmatpush1.xpose.msra.mxu0 0.0
    %2191 = vmatprep.subr.mxu0 0.0
    %2192 = vmatpush1.xpose.msra.mxu0 0.0
    %2193 = vmatprep.subr.mxu0 0.0
    %2194 = vmatpush1.xpose.msra.mxu0 0.0
    %2195 = vmatprep.subr.mxu0 0.0
    %2196 = vmatpush1.xpose.msra.mxu0 0.0
    %2197 = vmatprep.subr.mxu0 0.0
    %2198 = vmatpush1.xpose.msra.mxu0 0.0
    %2199 = vmatprep.subr.mxu0 0.0
    %2200 = vmatpush1.xpose.msra.mxu0 0.0
    %2201 = vmatprep.subr.mxu0 0.0
    %2202 = vmatpush1.xpose.msra.mxu0 0.0
    %2203 = vmatprep.subr.mxu0 0.0
    %2204 = vmatpush1.xpose.msra.mxu0 0.0
    %2205 = vmatprep.subr.mxu0 0.0
    %2206 = vmatpush1.xpose.msra.mxu0 0.0
    %2207 = vmatprep.subr.mxu0 0.0
    %2208 = vmatpush1.xpose.msra.mxu0 0.0
    %2209 = vmatprep.subr.mxu0 0.0
    %2210 = vmatpush1.xpose.msra.mxu0 0.0
    %2211 = vmatprep.subr.mxu0 0.0
    %2212 = vmatpush1.xpose.msra.mxu0 0.0
    %2213 = vmatprep.subr.mxu0 0.0
    %2214 = vmatpush1.xpose.msra.mxu0 0.0
    %2215 = vmatprep.subr.mxu0 0.0
    %2216 = vmatpush1.xpose.msra.mxu0 0.0
    %2217 = vmatprep.mubr.f32.mxu0 0.0
    %2218 = vmatmul.mubr.f32.gmra.mrb[0].mxu0 %v2149
    %v2219 = vpop.f32.mrb[0].mxu0
    %v2220 = vadd.f32 0.0, %v2219
    %v2221 = vpop.f32.mrb[0].mxu0
    %2222 = vdwg.mxu0
    %v2223 = vsel %vm130, %v2220, -inf
    %2224 = vmax.xlane.f32.xlu0 %v2223
    %v2225 = vpop.xlane.xlu0 %2224
    %v2226 = vsub.f32 %v2220, %v2225
    %v2227 = vmul.f32 %v2226, 1.442695
    %v2228 = vpow.pop %v2227
    %v2229 = vsel %vm130, %v2228, 0.0
    %2230 = vadd.xlane.f32.xlu0 %v2229
    %v2231 = vpop.xlane.xlu0 %2230
    %v2232 = vrcp.pop %v2231
    %v2233 = vmul.f32 %v2228, %v2232
    %2234 = vrot.lane.b32.xlu0 %v2132, 64
    %v2235 = vpop.permute.xlu0 %2234
    %v2238 = vsel %vm130, %v2233, 0
    %2240 = vmatprep.subr.mxu0 0.0
    %2241 = vmatpush1.msra.mxu0 %v2235
    %2242 = vmatprep.subr.mxu0 0.0
    %2243 = vmatpush1.msra.mxu0 0.0
    %2244 = vmatprep.subr.mxu0 0.0
    %2245 = vmatpush1.msra.mxu0 0.0
    %2246 = vmatprep.subr.mxu0 0.0
    %2247 = vmatpush1.msra.mxu0 0.0
    %2248 = vmatprep.subr.mxu0 0.0
    %2249 = vmatpush1.msra.mxu0 0.0
    %2250 = vmatprep.subr.mxu0 0.0
    %2251 = vmatpush1.msra.mxu0 0.0
    %2252 = vmatprep.subr.mxu0 0.0
    %2253 = vmatpush1.msra.mxu0 0.0
    %2254 = vmatprep.subr.mxu0 0.0
    %2255 = vmatpush1.msra.mxu0 0.0
    %2256 = vmatprep.subr.mxu0 0.0
    %2257 = vmatpush1.msra.mxu0 0.0
    %2258 = vmatprep.subr.mxu0 0.0
    %2259 = vmatpush1.msra.mxu0 0.0
    %2260 = vmatprep.subr.mxu0 0.0
    %2261 = vmatpush1.msra.mxu0 0.0
    %2262 = vmatprep.subr.mxu0 0.0
    %2263 = vmatpush1.msra.mxu0 0.0
    %2264 = vmatprep.subr.mxu0 0.0
    %2265 = vmatpush1.msra.mxu0 0.0
    %2266 = vmatprep.subr.mxu0 0.0
    %2267 = vmatpush1.msra.mxu0 0.0
    %2268 = vmatprep.subr.mxu0 0.0
    %2269 = vmatpush1.msra.mxu0 0.0
    %2270 = vmatprep.subr.mxu0 0.0
    %2271 = vmatpush1.msra.mxu0 0.0
    %2272 = vmatprep.subr.mxu0 0.0
    %2273 = vmatpush1.msra.mxu0 0.0
    %2274 = vmatprep.subr.mxu0 0.0
    %2275 = vmatpush1.msra.mxu0 0.0
    %2276 = vmatprep.subr.mxu0 0.0
    %2277 = vmatpush1.msra.mxu0 0.0
    %2278 = vmatprep.subr.mxu0 0.0
    %2279 = vmatpush1.msra.mxu0 0.0
    %2280 = vmatprep.subr.mxu0 0.0
    %2281 = vmatpush1.msra.mxu0 0.0
    %2282 = vmatprep.subr.mxu0 0.0
    %2283 = vmatpush1.msra.mxu0 0.0
    %2284 = vmatprep.subr.mxu0 0.0
    %2285 = vmatpush1.msra.mxu0 0.0
    %2286 = vmatprep.subr.mxu0 0.0
    %2287 = vmatpush1.msra.mxu0 0.0
    %2288 = vmatprep.subr.mxu0 0.0
    %2289 = vmatpush1.msra.mxu0 0.0
    %2290 = vmatprep.subr.mxu0 0.0
    %2291 = vmatpush1.msra.mxu0 0.0
    %2292 = vmatprep.subr.mxu0 0.0
    %2293 = vmatpush1.msra.mxu0 0.0
    %2294 = vmatprep.subr.mxu0 0.0
    %2295 = vmatpush1.msra.mxu0 0.0
    %2296 = vmatprep.subr.mxu0 0.0
    %2297 = vmatpush1.msra.mxu0 0.0
    %2298 = vmatprep.subr.mxu0 0.0
    %2299 = vmatpush1.msra.mxu0 0.0
    %2300 = vmatprep.subr.mxu0 0.0
    %2301 = vmatpush1.msra.mxu0 0.0
    %2302 = vmatprep.subr.mxu0 0.0
    %2303 = vmatpush1.msra.mxu0 0.0
    %2304 = vmatprep.mubr.f32.mxu0 0.0
    %2305 = vmatmul.mubr.f32.gmra.mrb[0].mxu0 %v2238
    %v2306 = vpop.f32.mrb[0].mxu0
    %v2307 = vadd.f32 0.0, %v2306
    %v2308 = vpop.f32.mrb[0].mxu0
    %2309 = vdwg.mxu0
    %2311 = vrot.lane.b32.xlu0 %v2137, 96
    %v2312 = vpop.permute.xlu0 %2311
    %v2313 = vsel %vm130, %v2137, 0
    %v2315 = vsel %vm130, %v2312, 0
    %2317 = vmatprep.subr.mxu0 0.0
    %2318 = vmatpush1.xpose.msra.mxu0 %v2315
    %2319 = vmatprep.subr.mxu0 0.0
    %2320 = vmatpush1.xpose.msra.mxu0 0.0
    %2321 = vmatprep.subr.mxu0 0.0
    %2322 = vmatpush1.xpose.msra.mxu0 0.0
    %2323 = vmatprep.subr.mxu0 0.0
    %2324 = vmatpush1.xpose.msra.mxu0 0.0
    %2325 = vmatprep.subr.mxu0 0.0
    %2326 = vmatpush1.xpose.msra.mxu0 0.0
    %2327 = vmatprep.subr.mxu0 0.0
    %2328 = vmatpush1.xpose.msra.mxu0 0.0
    %2329 = vmatprep.subr.mxu0 0.0
    %2330 = vmatpush1.xpose.msra.mxu0 0.0
    %2331 = vmatprep.subr.mxu0 0.0
    %2332 = vmatpush1.xpose.msra.mxu0 0.0
    %2333 = vmatprep.subr.mxu0 0.0
    %2334 = vmatpush1.xpose.msra.mxu0 0.0
    %2335 = vmatprep.subr.mxu0 0.0
    %2336 = vmatpush1.xpose.msra.mxu0 0.0
    %2337 = vmatprep.subr.mxu0 0.0
    %2338 = vmatpush1.xpose.msra.mxu0 0.0
    %2339 = vmatprep.subr.mxu0 0.0
    %2340 = vmatpush1.xpose.msra.mxu0 0.0
    %2341 = vmatprep.subr.mxu0 0.0
    %2342 = vmatpush1.xpose.msra.mxu0 0.0
    %2343 = vmatprep.subr.mxu0 0.0
    %2344 = vmatpush1.xpose.msra.mxu0 0.0
    %2345 = vmatprep.subr.mxu0 0.0
    %2346 = vmatpush1.xpose.msra.mxu0 0.0
    %2347 = vmatprep.subr.mxu0 0.0
    %2348 = vmatpush1.xpose.msra.mxu0 0.0
    %2349 = vmatprep.subr.mxu0 0.0
    %2350 = vmatpush1.xpose.msra.mxu0 0.0
    %2351 = vmatprep.subr.mxu0 0.0
    %2352 = vmatpush1.xpose.msra.mxu0 0.0
    %2353 = vmatprep.subr.mxu0 0.0
    %2354 = vmatpush1.xpose.msra.mxu0 0.0
    %2355 = vmatprep.subr.mxu0 0.0
    %2356 = vmatpush1.xpose.msra.mxu0 0.0
    %2357 = vmatprep.subr.mxu0 0.0
    %2358 = vmatpush1.xpose.msra.mxu0 0.0
    %2359 = vmatprep.subr.mxu0 0.0
    %2360 = vmatpush1.xpose.msra.mxu0 0.0
    %2361 = vmatprep.subr.mxu0 0.0
    %2362 = vmatpush1.xpose.msra.mxu0 0.0
    %2363 = vmatprep.subr.mxu0 0.0
    %2364 = vmatpush1.xpose.msra.mxu0 0.0
    %2365 = vmatprep.subr.mxu0 0.0
    %2366 = vmatpush1.xpose.msra.mxu0 0.0
    %2367 = vmatprep.subr.mxu0 0.0
    %2368 = vmatpush1.xpose.msra.mxu0 0.0
    %2369 = vmatprep.subr.mxu0 0.0
    %2370 = vmatpush1.xpose.msra.mxu0 0.0
    %2371 = vmatprep.subr.mxu0 0.0
    %2372 = vmatpush1.xpose.msra.mxu0 0.0
    %2373 = vmatprep.subr.mxu0 0.0
    %2374 = vmatpush1.xpose.msra.mxu0 0.0
    %2375 = vmatprep.subr.mxu0 0.0
    %2376 = vmatpush1.xpose.msra.mxu0 0.0
    %2377 = vmatprep.subr.mxu0 0.0
    %2378 = vmatpush1.xpose.msra.mxu0 0.0
    %2379 = vmatprep.subr.mxu0 0.0
    %2380 = vmatpush1.xpose.msra.mxu0 0.0
    %2381 = vmatprep.mubr.f32.mxu0 0.0
    %2382 = vmatmul.mubr.f32.gmra.mrb[0].mxu0 %v2313
    %v2383 = vpop.f32.mrb[0].mxu0
    %v2384 = vadd.f32 0.0, %v2383
    %v2385 = vpop.f32.mrb[0].mxu0
    %2386 = vdwg.mxu0
    %v2387 = vsel %vm130, %v2384, -inf
    %2388 = vmax.xlane.f32.xlu0 %v2387
    %v2389 = vpop.xlane.xlu0 %2388
    %v2390 = vsub.f32 %v2384, %v2389
    %v2391 = vmul.f32 %v2390, 1.442695
    %v2392 = vpow.pop %v2391
    %v2393 = vsel %vm130, %v2392, 0.0
    %2394 = vadd.xlane.f32.xlu0 %v2393
    %v2395 = vpop.xlane.xlu0 %2394
    %v2396 = vrcp.pop %v2395
    %v2397 = vmul.f32 %v2392, %v2396
    %2398 = vrot.lane.b32.xlu0 %v2137, 64
    %v2399 = vpop.permute.xlu0 %2398
    %v2402 = vsel %vm130, %v2397, 0
    %2404 = vmatprep.subr.mxu0 0.0
    %2405 = vmatpush1.msra.mxu0 %v2399
    %2406 = vmatprep.subr.mxu0 0.0
    %2407 = vmatpush1.msra.mxu0 0.0
    %2408 = vmatprep.subr.mxu0 0.0
    %2409 = vmatpush1.msra.mxu0 0.0
    %2410 = vmatprep.subr.mxu0 0.0
    %2411 = vmatpush1.msra.mxu0 0.0
    %2412 = vmatprep.subr.mxu0 0.0
    %2413 = vmatpush1.msra.mxu0 0.0
    %2414 = vmatprep.subr.mxu0 0.0
    %2415 = vmatpush1.msra.mxu0 0.0
    %2416 = vmatprep.subr.mxu0 0.0
    %2417 = vmatpush1.msra.mxu0 0.0
    %2418 = vmatprep.subr.mxu0 0.0
    %2419 = vmatpush1.msra.mxu0 0.0
    %2420 = vmatprep.subr.mxu0 0.0
    %2421 = vmatpush1.msra.mxu0 0.0
    %2422 = vmatprep.subr.mxu0 0.0
    %2423 = vmatpush1.msra.mxu0 0.0
    %2424 = vmatprep.subr.mxu0 0.0
    %2425 = vmatpush1.msra.mxu0 0.0
    %2426 = vmatprep.subr.mxu0 0.0
    %2427 = vmatpush1.msra.mxu0 0.0
    %2428 = vmatprep.subr.mxu0 0.0
    %2429 = vmatpush1.msra.mxu0 0.0
    %2430 = vmatprep.subr.mxu0 0.0
    %2431 = vmatpush1.msra.mxu0 0.0
    %2432 = vmatprep.subr.mxu0 0.0
    %2433 = vmatpush1.msra.mxu0 0.0
    %2434 = vmatprep.subr.mxu0 0.0
    %2435 = vmatpush1.msra.mxu0 0.0
    %2436 = vmatprep.subr.mxu0 0.0
    %2437 = vmatpush1.msra.mxu0 0.0
    %2438 = vmatprep.subr.mxu0 0.0
    %2439 = vmatpush1.msra.mxu0 0.0
    %2440 = vmatprep.subr.mxu0 0.0
    %2441 = vmatpush1.msra.mxu0 0.0
    %2442 = vmatprep.subr.mxu0 0.0
    %2443 = vmatpush1.msra.mxu0 0.0
    %2444 = vmatprep.subr.mxu0 0.0
    %2445 = vmatpush1.msra.mxu0 0.0
    %2446 = vmatprep.subr.mxu0 0.0
    %2447 = vmatpush1.msra.mxu0 0.0
    %2448 = vmatprep.subr.mxu0 0.0
    %2449 = vmatpush1.msra.mxu0 0.0
    %2450 = vmatprep.subr.mxu0 0.0
    %2451 = vmatpush1.msra.mxu0 0.0
    %2452 = vmatprep.subr.mxu0 0.0
    %2453 = vmatpush1.msra.mxu0 0.0
    %2454 = vmatprep.subr.mxu0 0.0
    %2455 = vmatpush1.msra.mxu0 0.0
    %2456 = vmatprep.subr.mxu0 0.0
    %2457 = vmatpush1.msra.mxu0 0.0
    %2458 = vmatprep.subr.mxu0 0.0
    %2459 = vmatpush1.msra.mxu0 0.0
    %2460 = vmatprep.subr.mxu0 0.0
    %2461 = vmatpush1.msra.mxu0 0.0
    %2462 = vmatprep.subr.mxu0 0.0
    %2463 = vmatpush1.msra.mxu0 0.0
    %2464 = vmatprep.subr.mxu0 0.0
    %2465 = vmatpush1.msra.mxu0 0.0
    %2466 = vmatprep.subr.mxu0 0.0
    %2467 = vmatpush1.msra.mxu0 0.0
    %2468 = vmatprep.mubr.f32.mxu0 0.0
    %2469 = vmatmul.mubr.f32.gmra.mrb[0].mxu0 %v2402
    %v2470 = vpop.f32.mrb[0].mxu0
    %v2471 = vadd.f32 0.0, %v2470
    %v2472 = vpop.f32.mrb[0].mxu0
    %2473 = vdwg.mxu0
    %v2475 = vsel %vm130, %v2307, 0
    %v2478 = vsel %vm130, %v2471, 0
    %2480 = vmatprep.subr.mxu0 0.0
    %2481 = vmatpush1.msra.mxu0 %v2051
    %2482 = vmatprep.subr.mxu0 0.0
    %2483 = vmatpush1.msra.mxu0 0.0
    %2484 = vmatprep.subr.mxu0 0.0
    %2485 = vmatpush1.msra.mxu0 0.0
    %2486 = vmatprep.subr.mxu0 0.0
    %2487 = vmatpush1.msra.mxu0 0.0
    %2488 = vmatprep.subr.mxu0 0.0
    %2489 = vmatpush1.msra.mxu0 0.0
    %2490 = vmatprep.subr.mxu0 0.0
    %2491 = vmatpush1.msra.mxu0 0.0
    %2492 = vmatprep.subr.mxu0 0.0
    %2493 = vmatpush1.msra.mxu0 0.0
    %2494 = vmatprep.subr.mxu0 0.0
    %2495 = vmatpush1.msra.mxu0 0.0
    %2496 = vmatprep.subr.mxu0 0.0
    %2497 = vmatpush1.msra.mxu0 0.0
    %2498 = vmatprep.subr.mxu0 0.0
    %2499 = vmatpush1.msra.mxu0 0.0
    %2500 = vmatprep.subr.mxu0 0.0
    %2501 = vmatpush1.msra.mxu0 0.0
    %2502 = vmatprep.subr.mxu0 0.0
    %2503 = vmatpush1.msra.mxu0 0.0
    %2504 = vmatprep.subr.mxu0 0.0
    %2505 = vmatpush1.msra.mxu0 0.0
    %2506 = vmatprep.subr.mxu0 0.0
    %2507 = vmatpush1.msra.mxu0 0.0
    %2508 = vmatprep.subr.mxu0 0.0
    %2509 = vmatpush1.msra.mxu0 0.0
    %2510 = vmatprep.subr.mxu0 0.0
    %2511 = vmatpush1.msra.mxu0 0.0
    %2512 = vmatprep.subr.mxu0 0.0
    %2513 = vmatpush1.msra.mxu0 0.0
    %2514 = vmatprep.subr.mxu0 0.0
    %2515 = vmatpush1.msra.mxu0 0.0
    %2516 = vmatprep.subr.mxu0 0.0
    %2517 = vmatpush1.msra.mxu0 0.0
    %2518 = vmatprep.subr.mxu0 0.0
    %2519 = vmatpush1.msra.mxu0 0.0
    %2520 = vmatprep.subr.mxu0 0.0
    %2521 = vmatpush1.msra.mxu0 0.0
    %2522 = vmatprep.subr.mxu0 0.0
    %2523 = vmatpush1.msra.mxu0 0.0
    %2524 = vmatprep.subr.mxu0 0.0
    %2525 = vmatpush1.msra.mxu0 0.0
    %2526 = vmatprep.subr.mxu0 0.0
    %2527 = vmatpush1.msra.mxu0 0.0
    %2528 = vmatprep.subr.mxu0 0.0
    %2529 = vmatpush1.msra.mxu0 0.0
    %2530 = vmatprep.subr.mxu0 0.0
    %2531 = vmatpush1.msra.mxu0 0.0
    %2532 = vmatprep.subr.mxu0 0.0
    %2533 = vmatpush1.msra.mxu0 0.0
    %2534 = vmatprep.subr.mxu0 0.0
    %2535 = vmatpush1.msra.mxu0 0.0
    %2536 = vmatprep.subr.mxu0 0.0
    %2537 = vmatpush1.msra.mxu0 0.0
    %2538 = vmatprep.subr.mxu0 0.0
    %2539 = vmatpush1.msra.mxu0 0.0
    %2540 = vmatprep.subr.mxu0 0.0
    %2541 = vmatpush1.msra.mxu0 0.0
    %2542 = vmatprep.subr.mxu0 0.0
    %2543 = vmatpush1.msra.mxu0 0.0
    %2544 = vmatprep.mubr.f32.mxu0 0.0
    %2545 = vmatmul.mubr.f32.gmra.mrb[0].mxu0 %v2475
    %v2546 = vpop.f32.mrb[0].mxu0
    %v2547 = vadd.f32 0.0, %v2546
    %v2548 = vpop.f32.mrb[0].mxu0
    %2549 = vmatprep.mubr.f32.mxu0 0.0
    %2550 = vmatmul.mubr.f32.gmra.mrb[0].mxu0 %v2478
    %v2551 = vpop.f32.mrb[0].mxu0
    %v2552 = vadd.f32 0.0, %v2551
    %v2553 = vpop.f32.mrb[0].mxu0
    %2554 = vdwg.mxu0
    %v2555 = vadd.f32 %v2144, %v2547
    %v2556 = vadd.f32 %v2145, %v2552
    %2557 = vrot.lane.b32.xlu0 %v2132, 120
    %v2558 = vpop.permute.xlu0 %2557
    %2559 = vrot.lane.b32.xlu0 %v2132, 88
    %v2560 = vpop.permute.xlu0 %2559
    %v2561 = vsel %vm130, %v2558, 0
    %v2563 = vsel %vm130, %v2560, 0
    %2565 = vmatprep.subr.mxu0 0.0
    %2566 = vmatpush1.xpose.msra.mxu0 %v2563
    %2567 = vmatprep.subr.mxu0 0.0
    %2568 = vmatpush1.xpose.msra.mxu0 0.0
    %2569 = vmatprep.subr.mxu0 0.0
    %2570 = vmatpush1.xpose.msra.mxu0 0.0
    %2571 = vmatprep.subr.mxu0 0.0
    %2572 = vmatpush1.xpose.msra.mxu0 0.0
    %2573 = vmatprep.subr.mxu0 0.0
    %2574 = vmatpush1.xpose.msra.mxu0 0.0
    %2575 = vmatprep.subr.mxu0 0.0
    %2576 = vmatpush1.xpose.msra.mxu0 0.0
    %2577 = vmatprep.subr.mxu0 0.0
    %2578 = vmatpush1.xpose.msra.mxu0 0.0
    %2579 = vmatprep.subr.mxu0 0.0
    %2580 = vmatpush1.xpose.msra.mxu0 0.0
    %2581 = vmatprep.subr.mxu0 0.0
    %2582 = vmatpush1.xpose.msra.mxu0 0.0
    %2583 = vmatprep.subr.mxu0 0.0
    %2584 = vmatpush1.xpose.msra.mxu0 0.0
    %2585 = vmatprep.subr.mxu0 0.0
    %2586 = vmatpush1.xpose.msra.mxu0 0.0
    %2587 = vmatprep.subr.mxu0 0.0
    %2588 = vmatpush1.xpose.msra.mxu0 0.0
    %2589 = vmatprep.subr.mxu0 0.0
    %2590 = vmatpush1.xpose.msra.mxu0 0.0
    %2591 = vmatprep.subr.mxu0 0.0
    %2592 = vmatpush1.xpose.msra.mxu0 0.0
    %2593 = vmatprep.subr.mxu0 0.0
    %2594 = vmatpush1.xpose.msra.mxu0 0.0
    %2595 = vmatprep.subr.mxu0 0.0
    %2596 = vmatpush1.xpose.msra.mxu0 0.0
    %2597 = vmatprep.subr.mxu0 0.0
    %2598 = vmatpush1.xpose.msra.mxu0 0.0
    %2599 = vmatprep.subr.mxu0 0.0
    %2600 = vmatpush1.xpose.msra.mxu0 0.0
    %2601 = vmatprep.subr.mxu0 0.0
    %2602 = vmatpush1.xpose.msra.mxu0 0.0
    %2603 = vmatprep.subr.mxu0 0.0
    %2604 = vmatpush1.xpose.msra.mxu0 0.0
    %2605 = vmatprep.subr.mxu0 0.0
    %2606 = vmatpush1.xpose.msra.mxu0 0.0
    %2607 = vmatprep.subr.mxu0 0.0
    %2608 = vmatpush1.xpose.msra.mxu0 0.0
    %2609 = vmatprep.subr.mxu0 0.0
    %2610 = vmatpush1.xpose.msra.mxu0 0.0
    %2611 = vmatprep.subr.mxu0 0.0
    %2612 = vmatpush1.xpose.msra.mxu0 0.0
    %2613 = vmatprep.subr.mxu0 0.0
    %2614 = vmatpush1.xpose.msra.mxu0 0.0
    %2615 = vmatprep.subr.mxu0 0.0
    %2616 = vmatpush1.xpose.msra.mxu0 0.0
    %2617 = vmatprep.subr.mxu0 0.0
    %2618 = vmatpush1.xpose.msra.mxu0 0.0
    %2619 = vmatprep.subr.mxu0 0.0
    %2620 = vmatpush1.xpose.msra.mxu0 0.0
    %2621 = vmatprep.subr.mxu0 0.0
    %2622 = vmatpush1.xpose.msra.mxu0 0.0
    %2623 = vmatprep.subr.mxu0 0.0
    %2624 = vmatpush1.xpose.msra.mxu0 0.0
    %2625 = vmatprep.subr.mxu0 0.0
    %2626 = vmatpush1.xpose.msra.mxu0 0.0
    %2627 = vmatprep.subr.mxu0 0.0
    %2628 = vmatpush1.xpose.msra.mxu0 0.0
    %2629 = vmatprep.mubr.f32.mxu0 0.0
    %2630 = vmatmul.mubr.f32.gmra.mrb[0].mxu0 %v2561
    %v2631 = vpop.f32.mrb[0].mxu0
    %v2632 = vadd.f32 0.0, %v2631
    %v2633 = vpop.f32.mrb[0].mxu0
    %2634 = vdwg.mxu0
    %v2635 = vsel %vm130, %v2632, -inf
    %2636 = vmax.xlane.f32.xlu0 %v2635
    %v2637 = vpop.xlane.xlu0 %2636
    %v2638 = vsub.f32 %v2632, %v2637
    %v2639 = vmul.f32 %v2638, 1.442695
    %v2640 = vpow.pop %v2639
    %v2641 = vsel %vm130, %v2640, 0.0
    %2642 = vadd.xlane.f32.xlu0 %v2641
    %v2643 = vpop.xlane.xlu0 %2642
    %v2644 = vrcp.pop %v2643
    %v2645 = vmul.f32 %v2640, %v2644
    %2646 = vrot.lane.b32.xlu0 %v2132, 56
    %v2647 = vpop.permute.xlu0 %2646
    %v2650 = vsel %vm130, %v2645, 0
    %2652 = vmatprep.subr.mxu0 0.0
    %2653 = vmatpush1.msra.mxu0 %v2647
    %2654 = vmatprep.subr.mxu0 0.0
    %2655 = vmatpush1.msra.mxu0 0.0
    %2656 = vmatprep.subr.mxu0 0.0
    %2657 = vmatpush1.msra.mxu0 0.0
    %2658 = vmatprep.subr.mxu0 0.0
    %2659 = vmatpush1.msra.mxu0 0.0
    %2660 = vmatprep.subr.mxu0 0.0
    %2661 = vmatpush1.msra.mxu0 0.0
    %2662 = vmatprep.subr.mxu0 0.0
    %2663 = vmatpush1.msra.mxu0 0.0
    %2664 = vmatprep.subr.mxu0 0.0
    %2665 = vmatpush1.msra.mxu0 0.0
    %2666 = vmatprep.subr.mxu0 0.0
    %2667 = vmatpush1.msra.mxu0 0.0
    %2668 = vmatprep.subr.mxu0 0.0
    %2669 = vmatpush1.msra.mxu0 0.0
    %2670 = vmatprep.subr.mxu0 0.0
    %2671 = vmatpush1.msra.mxu0 0.0
    %2672 = vmatprep.subr.mxu0 0.0
    %2673 = vmatpush1.msra.mxu0 0.0
    %2674 = vmatprep.subr.mxu0 0.0
    %2675 = vmatpush1.msra.mxu0 0.0
    %2676 = vmatprep.subr.mxu0 0.0
    %2677 = vmatpush1.msra.mxu0 0.0
    %2678 = vmatprep.subr.mxu0 0.0
    %2679 = vmatpush1.msra.mxu0 0.0
    %2680 = vmatprep.subr.mxu0 0.0
    %2681 = vmatpush1.msra.mxu0 0.0
    %2682 = vmatprep.subr.mxu0 0.0
    %2683 = vmatpush1.msra.mxu0 0.0
    %2684 = vmatprep.subr.mxu0 0.0
    %2685 = vmatpush1.msra.mxu0 0.0
    %2686 = vmatprep.subr.mxu0 0.0
    %2687 = vmatpush1.msra.mxu0 0.0
    %2688 = vmatprep.subr.mxu0 0.0
    %2689 = vmatpush1.msra.mxu0 0.0
    %2690 = vmatprep.subr.mxu0 0.0
    %2691 = vmatpush1.msra.mxu0 0.0
    %2692 = vmatprep.subr.mxu0 0.0
    %2693 = vmatpush1.msra.mxu0 0.0
    %2694 = vmatprep.subr.mxu0 0.0
    %2695 = vmatpush1.msra.mxu0 0.0
    %2696 = vmatprep.subr.mxu0 0.0
    %2697 = vmatpush1.msra.mxu0 0.0
    %2698 = vmatprep.subr.mxu0 0.0
    %2699 = vmatpush1.msra.mxu0 0.0
    %2700 = vmatprep.subr.mxu0 0.0
    %2701 = vmatpush1.msra.mxu0 0.0
    %2702 = vmatprep.subr.mxu0 0.0
    %2703 = vmatpush1.msra.mxu0 0.0
    %2704 = vmatprep.subr.mxu0 0.0
    %2705 = vmatpush1.msra.mxu0 0.0
    %2706 = vmatprep.subr.mxu0 0.0
    %2707 = vmatpush1.msra.mxu0 0.0
    %2708 = vmatprep.subr.mxu0 0.0
    %2709 = vmatpush1.msra.mxu0 0.0
    %2710 = vmatprep.subr.mxu0 0.0
    %2711 = vmatpush1.msra.mxu0 0.0
    %2712 = vmatprep.subr.mxu0 0.0
    %2713 = vmatpush1.msra.mxu0 0.0
    %2714 = vmatprep.subr.mxu0 0.0
    %2715 = vmatpush1.msra.mxu0 0.0
    %2716 = vmatprep.mubr.f32.mxu0 0.0
    %2717 = vmatmul.mubr.f32.gmra.mrb[0].mxu0 %v2650
    %v2718 = vpop.f32.mrb[0].mxu0
    %v2719 = vadd.f32 0.0, %v2718
    %v2720 = vpop.f32.mrb[0].mxu0
    %2721 = vdwg.mxu0
    %2722 = vrot.lane.b32.xlu0 %v2137, 120
    %v2723 = vpop.permute.xlu0 %2722
    %2724 = vrot.lane.b32.xlu0 %v2137, 88
    %v2725 = vpop.permute.xlu0 %2724
    %v2726 = vsel %vm130, %v2723, 0
    %v2728 = vsel %vm130, %v2725, 0
    %2730 = vmatprep.subr.mxu0 0.0
    %2731 = vmatpush1.xpose.msra.mxu0 %v2728
    %2732 = vmatprep.subr.mxu0 0.0
    %2733 = vmatpush1.xpose.msra.mxu0 0.0
    %2734 = vmatprep.subr.mxu0 0.0
    %2735 = vmatpush1.xpose.msra.mxu0 0.0
    %2736 = vmatprep.subr.mxu0 0.0
    %2737 = vmatpush1.xpose.msra.mxu0 0.0
    %2738 = vmatprep.subr.mxu0 0.0
    %2739 = vmatpush1.xpose.msra.mxu0 0.0
    %2740 = vmatprep.subr.mxu0 0.0
    %2741 = vmatpush1.xpose.msra.mxu0 0.0
    %2742 = vmatprep.subr.mxu0 0.0
    %2743 = vmatpush1.xpose.msra.mxu0 0.0
    %2744 = vmatprep.subr.mxu0 0.0
    %2745 = vmatpush1.xpose.msra.mxu0 0.0
    %2746 = vmatprep.subr.mxu0 0.0
    %2747 = vmatpush1.xpose.msra.mxu0 0.0
    %2748 = vmatprep.subr.mxu0 0.0
    %2749 = vmatpush1.xpose.msra.mxu0 0.0
    %2750 = vmatprep.subr.mxu0 0.0
    %2751 = vmatpush1.xpose.msra.mxu0 0.0
    %2752 = vmatprep.subr.mxu0 0.0
    %2753 = vmatpush1.xpose.msra.mxu0 0.0
    %2754 = vmatprep.subr.mxu0 0.0
    %2755 = vmatpush1.xpose.msra.mxu0 0.0
    %2756 = vmatprep.subr.mxu0 0.0
    %2757 = vmatpush1.xpose.msra.mxu0 0.0
    %2758 = vmatprep.subr.mxu0 0.0
    %2759 = vmatpush1.xpose.msra.mxu0 0.0
    %2760 = vmatprep.subr.mxu0 0.0
    %2761 = vmatpush1.xpose.msra.mxu0 0.0
    %2762 = vmatprep.subr.mxu0 0.0
    %2763 = vmatpush1.xpose.msra.mxu0 0.0
    %2764 = vmatprep.subr.mxu0 0.0
    %2765 = vmatpush1.xpose.msra.mxu0 0.0
    %2766 = vmatprep.subr.mxu0 0.0
    %2767 = vmatpush1.xpose.msra.mxu0 0.0
    %2768 = vmatprep.subr.mxu0 0.0
    %2769 = vmatpush1.xpose.msra.mxu0 0.0
    %2770 = vmatprep.subr.mxu0 0.0
    %2771 = vmatpush1.xpose.msra.mxu0 0.0
    %2772 = vmatprep.subr.mxu0 0.0
    %2773 = vmatpush1.xpose.msra.mxu0 0.0
    %2774 = vmatprep.subr.mxu0 0.0
    %2775 = vmatpush1.xpose.msra.mxu0 0.0
    %2776 = vmatprep.subr.mxu0 0.0
    %2777 = vmatpush1.xpose.msra.mxu0 0.0
    %2778 = vmatprep.subr.mxu0 0.0
    %2779 = vmatpush1.xpose.msra.mxu0 0.0
    %2780 = vmatprep.subr.mxu0 0.0
    %2781 = vmatpush1.xpose.msra.mxu0 0.0
    %2782 = vmatprep.subr.mxu0 0.0
    %2783 = vmatpush1.xpose.msra.mxu0 0.0
    %2784 = vmatprep.subr.mxu0 0.0
    %2785 = vmatpush1.xpose.msra.mxu0 0.0
    %2786 = vmatprep.subr.mxu0 0.0
    %2787 = vmatpush1.xpose.msra.mxu0 0.0
    %2788 = vmatprep.subr.mxu0 0.0
    %2789 = vmatpush1.xpose.msra.mxu0 0.0
    %2790 = vmatprep.subr.mxu0 0.0
    %2791 = vmatpush1.xpose.msra.mxu0 0.0
    %2792 = vmatprep.subr.mxu0 0.0
    %2793 = vmatpush1.xpose.msra.mxu0 0.0
    %2794 = vmatprep.mubr.f32.mxu0 0.0
    %2795 = vmatmul.mubr.f32.gmra.mrb[0].mxu0 %v2726
    %v2796 = vpop.f32.mrb[0].mxu0
    %v2797 = vadd.f32 0.0, %v2796
    %v2798 = vpop.f32.mrb[0].mxu0
    %2799 = vdwg.mxu0
    %v2800 = vsel %vm130, %v2797, -inf
    %2801 = vmax.xlane.f32.xlu0 %v2800
    %v2802 = vpop.xlane.xlu0 %2801
    %v2803 = vsub.f32 %v2797, %v2802
    %v2804 = vmul.f32 %v2803, 1.442695
    %v2805 = vpow.pop %v2804
    %v2806 = vsel %vm130, %v2805, 0.0
    %2807 = vadd.xlane.f32.xlu0 %v2806
    %v2808 = vpop.xlane.xlu0 %2807
    %v2809 = vrcp.pop %v2808
    %v2810 = vmul.f32 %v2805, %v2809
    %2811 = vrot.lane.b32.xlu0 %v2137, 56
    %v2812 = vpop.permute.xlu0 %2811
    %v2815 = vsel %vm130, %v2810, 0
    %2817 = vmatprep.subr.mxu0 0.0
    %2818 = vmatpush1.msra.mxu0 %v2812
    %2819 = vmatprep.subr.mxu0 0.0
    %2820 = vmatpush1.msra.mxu0 0.0
    %2821 = vmatprep.subr.mxu0 0.0
    %2822 = vmatpush1.msra.mxu0 0.0
    %2823 = vmatprep.subr.mxu0 0.0
    %2824 = vmatpush1.msra.mxu0 0.0
    %2825 = vmatprep.subr.mxu0 0.0
    %2826 = vmatpush1.msra.mxu0 0.0
    %2827 = vmatprep.subr.mxu0 0.0
    %2828 = vmatpush1.msra.mxu0 0.0
    %2829 = vmatprep.subr.mxu0 0.0
    %2830 = vmatpush1.msra.mxu0 0.0
    %2831 = vmatprep.subr.mxu0 0.0
    %2832 = vmatpush1.msra.mxu0 0.0
    %2833 = vmatprep.subr.mxu0 0.0
    %2834 = vmatpush1.msra.mxu0 0.0
    %2835 = vmatprep.subr.mxu0 0.0
    %2836 = vmatpush1.msra.mxu0 0.0
    %2837 = vmatprep.subr.mxu0 0.0
    %2838 = vmatpush1.msra.mxu0 0.0
    %2839 = vmatprep.subr.mxu0 0.0
    %2840 = vmatpush1.msra.mxu0 0.0
    %2841 = vmatprep.subr.mxu0 0.0
    %2842 = vmatpush1.msra.mxu0 0.0
    %2843 = vmatprep.subr.mxu0 0.0
    %2844 = vmatpush1.msra.mxu0 0.0
    %2845 = vmatprep.subr.mxu0 0.0
    %2846 = vmatpush1.msra.mxu0 0.0
    %2847 = vmatprep.subr.mxu0 0.0
    %2848 = vmatpush1.msra.mxu0 0.0
    %2849 = vmatprep.subr.mxu0 0.0
    %2850 = vmatpush1.msra.mxu0 0.0
    %2851 = vmatprep.subr.mxu0 0.0
    %2852 = vmatpush1.msra.mxu0 0.0
    %2853 = vmatprep.subr.mxu0 0.0
    %2854 = vmatpush1.msra.mxu0 0.0
    %2855 = vmatprep.subr.mxu0 0.0
    %2856 = vmatpush1.msra.mxu0 0.0
    %2857 = vmatprep.subr.mxu0 0.0
    %2858 = vmatpush1.msra.mxu0 0.0
    %2859 = vmatprep.subr.mxu0 0.0
    %2860 = vmatpush1.msra.mxu0 0.0
    %2861 = vmatprep.subr.mxu0 0.0
    %2862 = vmatpush1.msra.mxu0 0.0
    %2863 = vmatprep.subr.mxu0 0.0
    %2864 = vmatpush1.msra.mxu0 0.0
    %2865 = vmatprep.subr.mxu0 0.0
    %2866 = vmatpush1.msra.mxu0 0.0
    %2867 = vmatprep.subr.mxu0 0.0
    %2868 = vmatpush1.msra.mxu0 0.0
    %2869 = vmatprep.subr.mxu0 0.0
    %2870 = vmatpush1.msra.mxu0 0.0
    %2871 = vmatprep.subr.mxu0 0.0
    %2872 = vmatpush1.msra.mxu0 0.0
    %2873 = vmatprep.subr.mxu0 0.0
    %2874 = vmatpush1.msra.mxu0 0.0
    %2875 = vmatprep.subr.mxu0 0.0
    %2876 = vmatpush1.msra.mxu0 0.0
    %2877 = vmatprep.subr.mxu0 0.0
    %2878 = vmatpush1.msra.mxu0 0.0
    %2879 = vmatprep.subr.mxu0 0.0
    %2880 = vmatpush1.msra.mxu0 0.0
    %2881 = vmatprep.mubr.f32.mxu0 0.0
    %2882 = vmatmul.mubr.f32.gmra.mrb[0].mxu0 %v2815
    %v2883 = vpop.f32.mrb[0].mxu0
    %v2884 = vadd.f32 0.0, %v2883
    %v2885 = vpop.f32.mrb[0].mxu0
    %2886 = vdwg.mxu0
    %v2888 = vsel %vm130, %v2719, 0
    %v2891 = vsel %vm130, %v2884, 0
    %2893 = vmatprep.subr.mxu0 0.0
    %2894 = vmatpush1.msra.mxu0 %v2052
    %2895 = vmatprep.subr.mxu0 0.0
    %2896 = vmatpush1.msra.mxu0 0.0
    %2897 = vmatprep.subr.mxu0 0.0
    %2898 = vmatpush1.msra.mxu0 0.0
    %2899 = vmatprep.subr.mxu0 0.0
    %2900 = vmatpush1.msra.mxu0 0.0
    %2901 = vmatprep.subr.mxu0 0.0
    %2902 = vmatpush1.msra.mxu0 0.0
    %2903 = vmatprep.subr.mxu0 0.0
    %2904 = vmatpush1.msra.mxu0 0.0
    %2905 = vmatprep.subr.mxu0 0.0
    %2906 = vmatpush1.msra.mxu0 0.0
    %2907 = vmatprep.subr.mxu0 0.0
    %2908 = vmatpush1.msra.mxu0 0.0
    %2909 = vmatprep.subr.mxu0 0.0
    %2910 = vmatpush1.msra.mxu0 0.0
    %2911 = vmatprep.subr.mxu0 0.0
    %2912 = vmatpush1.msra.mxu0 0.0
    %2913 = vmatprep.subr.mxu0 0.0
    %2914 = vmatpush1.msra.mxu0 0.0
    %2915 = vmatprep.subr.mxu0 0.0
    %2916 = vmatpush1.msra.mxu0 0.0
    %2917 = vmatprep.subr.mxu0 0.0
    %2918 = vmatpush1.msra.mxu0 0.0
    %2919 = vmatprep.subr.mxu0 0.0
    %2920 = vmatpush1.msra.mxu0 0.0
    %2921 = vmatprep.subr.mxu0 0.0
    %2922 = vmatpush1.msra.mxu0 0.0
    %2923 = vmatprep.subr.mxu0 0.0
    %2924 = vmatpush1.msra.mxu0 0.0
    %2925 = vmatprep.subr.mxu0 0.0
    %2926 = vmatpush1.msra.mxu0 0.0
    %2927 = vmatprep.subr.mxu0 0.0
    %2928 = vmatpush1.msra.mxu0 0.0
    %2929 = vmatprep.subr.mxu0 0.0
    %2930 = vmatpush1.msra.mxu0 0.0
    %2931 = vmatprep.subr.mxu0 0.0
    %2932 = vmatpush1.msra.mxu0 0.0
    %2933 = vmatprep.subr.mxu0 0.0
    %2934 = vmatpush1.msra.mxu0 0.0
    %2935 = vmatprep.subr.mxu0 0.0
    %2936 = vmatpush1.msra.mxu0 0.0
    %2937 = vmatprep.subr.mxu0 0.0
    %2938 = vmatpush1.msra.mxu0 0.0
    %2939 = vmatprep.subr.mxu0 0.0
    %2940 = vmatpush1.msra.mxu0 0.0
    %2941 = vmatprep.subr.mxu0 0.0
    %2942 = vmatpush1.msra.mxu0 0.0
    %2943 = vmatprep.subr.mxu0 0.0
    %2944 = vmatpush1.msra.mxu0 0.0
    %2945 = vmatprep.subr.mxu0 0.0
    %2946 = vmatpush1.msra.mxu0 0.0
    %2947 = vmatprep.subr.mxu0 0.0
    %2948 = vmatpush1.msra.mxu0 0.0
    %2949 = vmatprep.subr.mxu0 0.0
    %2950 = vmatpush1.msra.mxu0 0.0
    %2951 = vmatprep.subr.mxu0 0.0
    %2952 = vmatpush1.msra.mxu0 0.0
    %2953 = vmatprep.subr.mxu0 0.0
    %2954 = vmatpush1.msra.mxu0 0.0
    %2955 = vmatprep.subr.mxu0 0.0
    %2956 = vmatpush1.msra.mxu0 0.0
    %2957 = vmatprep.mubr.f32.mxu0 0.0
    %2958 = vmatmul.mubr.f32.gmra.mrb[0].mxu0 %v2888
    %v2959 = vpop.f32.mrb[0].mxu0
    %v2960 = vadd.f32 0.0, %v2959
    %v2961 = vpop.f32.mrb[0].mxu0
    %2962 = vmatprep.mubr.f32.mxu0 0.0
    %2963 = vmatmul.mubr.f32.gmra.mrb[0].mxu0 %v2891
    %v2964 = vpop.f32.mrb[0].mxu0
    %v2965 = vadd.f32 0.0, %v2964
    %v2966 = vpop.f32.mrb[0].mxu0
    %2967 = vdwg.mxu0
    %v2968 = vadd.f32 %v2555, %v2960
    %v2969 = vadd.f32 %v2556, %v2965
    %2970 = vrot.lane.b32.xlu0 %v2132, 112
    %v2971 = vpop.permute.xlu0 %2970
    %2972 = vrot.lane.b32.xlu0 %v2132, 80
    %v2973 = vpop.permute.xlu0 %2972
    %v2974 = vsel %vm130, %v2971, 0
    %v2976 = vsel %vm130, %v2973, 0
    %2978 = vmatprep.subr.mxu0 0.0
    %2979 = vmatpush1.xpose.msra.mxu0 %v2976
    %2980 = vmatprep.subr.mxu0 0.0
    %2981 = vmatpush1.xpose.msra.mxu0 0.0
    %2982 = vmatprep.subr.mxu0 0.0
    %2983 = vmatpush1.xpose.msra.mxu0 0.0
    %2984 = vmatprep.subr.mxu0 0.0
    %2985 = vmatpush1.xpose.msra.mxu0 0.0
    %2986 = vmatprep.subr.mxu0 0.0
    %2987 = vmatpush1.xpose.msra.mxu0 0.0
    %2988 = vmatprep.subr.mxu0 0.0
    %2989 = vmatpush1.xpose.msra.mxu0 0.0
    %2990 = vmatprep.subr.mxu0 0.0
    %2991 = vmatpush1.xpose.msra.mxu0 0.0
    %2992 = vmatprep.subr.mxu0 0.0
    %2993 = vmatpush1.xpose.msra.mxu0 0.0
    %2994 = vmatprep.subr.mxu0 0.0
    %2995 = vmatpush1.xpose.msra.mxu0 0.0
    %2996 = vmatprep.subr.mxu0 0.0
    %2997 = vmatpush1.xpose.msra.mxu0 0.0
    %2998 = vmatprep.subr.mxu0 0.0
    %2999 = vmatpush1.xpose.msra.mxu0 0.0
    %3000 = vmatprep.subr.mxu0 0.0
    %3001 = vmatpush1.xpose.msra.mxu0 0.0
    %3002 = vmatprep.subr.mxu0 0.0
    %3003 = vmatpush1.xpose.msra.mxu0 0.0
    %3004 = vmatprep.subr.mxu0 0.0
    %3005 = vmatpush1.xpose.msra.mxu0 0.0
    %3006 = vmatprep.subr.mxu0 0.0
    %3007 = vmatpush1.xpose.msra.mxu0 0.0
    %3008 = vmatprep.subr.mxu0 0.0
    %3009 = vmatpush1.xpose.msra.mxu0 0.0
    %3010 = vmatprep.subr.mxu0 0.0
    %3011 = vmatpush1.xpose.msra.mxu0 0.0
    %3012 = vmatprep.subr.mxu0 0.0
    %3013 = vmatpush1.xpose.msra.mxu0 0.0
    %3014 = vmatprep.subr.mxu0 0.0
    %3015 = vmatpush1.xpose.msra.mxu0 0.0
    %3016 = vmatprep.subr.mxu0 0.0
    %3017 = vmatpush1.xpose.msra.mxu0 0.0
    %3018 = vmatprep.subr.mxu0 0.0
    %3019 = vmatpush1.xpose.msra.mxu0 0.0
    %3020 = vmatprep.subr.mxu0 0.0
    %3021 = vmatpush1.xpose.msra.mxu0 0.0
    %3022 = vmatprep.subr.mxu0 0.0
    %3023 = vmatpush1.xpose.msra.mxu0 0.0
    %3024 = vmatprep.subr.mxu0 0.0
    %3025 = vmatpush1.xpose.msra.mxu0 0.0
    %3026 = vmatprep.subr.mxu0 0.0
    %3027 = vmatpush1.xpose.msra.mxu0 0.0
    %3028 = vmatprep.subr.mxu0 0.0
    %3029 = vmatpush1.xpose.msra.mxu0 0.0
    %3030 = vmatprep.subr.mxu0 0.0
    %3031 = vmatpush1.xpose.msra.mxu0 0.0
    %3032 = vmatprep.subr.mxu0 0.0
    %3033 = vmatpush1.xpose.msra.mxu0 0.0
    %3034 = vmatprep.subr.mxu0 0.0
    %3035 = vmatpush1.xpose.msra.mxu0 0.0
    %3036 = vmatprep.subr.mxu0 0.0
    %3037 = vmatpush1.xpose.msra.mxu0 0.0
    %3038 = vmatprep.subr.mxu0 0.0
    %3039 = vmatpush1.xpose.msra.mxu0 0.0
    %3040 = vmatprep.subr.mxu0 0.0
    %3041 = vmatpush1.xpose.msra.mxu0 0.0
    %3042 = vmatprep.mubr.f32.mxu0 0.0
    %3043 = vmatmul.mubr.f32.gmra.mrb[0].mxu0 %v2974
    %v3044 = vpop.f32.mrb[0].mxu0
    %v3045 = vadd.f32 0.0, %v3044
    %v3046 = vpop.f32.mrb[0].mxu0
    %3047 = vdwg.mxu0
    %v3048 = vsel %vm130, %v3045, -inf
    %3049 = vmax.xlane.f32.xlu0 %v3048
    %v3050 = vpop.xlane.xlu0 %3049
    %v3051 = vsub.f32 %v3045, %v3050
    %v3052 = vmul.f32 %v3051, 1.442695
    %v3053 = vpow.pop %v3052
    %v3054 = vsel %vm130, %v3053, 0.0
    %3055 = vadd.xlane.f32.xlu0 %v3054
    %v3056 = vpop.xlane.xlu0 %3055
    %v3057 = vrcp.pop %v3056
    %v3058 = vmul.f32 %v3053, %v3057
    %3059 = vrot.lane.b32.xlu0 %v2132, 48
    %v3060 = vpop.permute.xlu0 %3059
    %v3063 = vsel %vm130, %v3058, 0
    %3065 = vmatprep.subr.mxu0 0.0
    %3066 = vmatpush1.msra.mxu0 %v3060
    %3067 = vmatprep.subr.mxu0 0.0
    %3068 = vmatpush1.msra.mxu0 0.0
    %3069 = vmatprep.subr.mxu0 0.0
    %3070 = vmatpush1.msra.mxu0 0.0
    %3071 = vmatprep.subr.mxu0 0.0
    %3072 = vmatpush1.msra.mxu0 0.0
    %3073 = vmatprep.subr.mxu0 0.0
    %3074 = vmatpush1.msra.mxu0 0.0
    %3075 = vmatprep.subr.mxu0 0.0
    %3076 = vmatpush1.msra.mxu0 0.0
    %3077 = vmatprep.subr.mxu0 0.0
    %3078 = vmatpush1.msra.mxu0 0.0
    %3079 = vmatprep.subr.mxu0 0.0
    %3080 = vmatpush1.msra.mxu0 0.0
    %3081 = vmatprep.subr.mxu0 0.0
    %3082 = vmatpush1.msra.mxu0 0.0
    %3083 = vmatprep.subr.mxu0 0.0
    %3084 = vmatpush1.msra.mxu0 0.0
    %3085 = vmatprep.subr.mxu0 0.0
    %3086 = vmatpush1.msra.mxu0 0.0
    %3087 = vmatprep.subr.mxu0 0.0
    %3088 = vmatpush1.msra.mxu0 0.0
    %3089 = vmatprep.subr.mxu0 0.0
    %3090 = vmatpush1.msra.mxu0 0.0
    %3091 = vmatprep.subr.mxu0 0.0
    %3092 = vmatpush1.msra.mxu0 0.0
    %3093 = vmatprep.subr.mxu0 0.0
    %3094 = vmatpush1.msra.mxu0 0.0
    %3095 = vmatprep.subr.mxu0 0.0
    %3096 = vmatpush1.msra.mxu0 0.0
    %3097 = vmatprep.subr.mxu0 0.0
    %3098 = vmatpush1.msra.mxu0 0.0
    %3099 = vmatprep.subr.mxu0 0.0
    %3100 = vmatpush1.msra.mxu0 0.0
    %3101 = vmatprep.subr.mxu0 0.0
    %3102 = vmatpush1.msra.mxu0 0.0
    %3103 = vmatprep.subr.mxu0 0.0
    %3104 = vmatpush1.msra.mxu0 0.0
    %3105 = vmatprep.subr.mxu0 0.0
    %3106 = vmatpush1.msra.mxu0 0.0
    %3107 = vmatprep.subr.mxu0 0.0
    %3108 = vmatpush1.msra.mxu0 0.0
    %3109 = vmatprep.subr.mxu0 0.0
    %3110 = vmatpush1.msra.mxu0 0.0
    %3111 = vmatprep.subr.mxu0 0.0
    %3112 = vmatpush1.msra.mxu0 0.0
    %3113 = vmatprep.subr.mxu0 0.0
    %3114 = vmatpush1.msra.mxu0 0.0
    %3115 = vmatprep.subr.mxu0 0.0
    %3116 = vmatpush1.msra.mxu0 0.0
    %3117 = vmatprep.subr.mxu0 0.0
    %3118 = vmatpush1.msra.mxu0 0.0
    %3119 = vmatprep.subr.mxu0 0.0
    %3120 = vmatpush1.msra.mxu0 0.0
    %3121 = vmatprep.subr.mxu0 0.0
    %3122 = vmatpush1.msra.mxu0 0.0
    %3123 = vmatprep.subr.mxu0 0.0
    %3124 = vmatpush1.msra.mxu0 0.0
    %3125 = vmatprep.subr.mxu0 0.0
    %3126 = vmatpush1.msra.mxu0 0.0
    %3127 = vmatprep.subr.mxu0 0.0
    %3128 = vmatpush1.msra.mxu0 0.0
    %3129 = vmatprep.mubr.f32.mxu0 0.0
    %3130 = vmatmul.mubr.f32.gmra.mrb[0].mxu0 %v3063
    %v3131 = vpop.f32.mrb[0].mxu0
    %v3132 = vadd.f32 0.0, %v3131
    %v3133 = vpop.f32.mrb[0].mxu0
    %3134 = vdwg.mxu0
    %3135 = vrot.lane.b32.xlu0 %v2137, 112
    %v3136 = vpop.permute.xlu0 %3135
    %3137 = vrot.lane.b32.xlu0 %v2137, 80
    %v3138 = vpop.permute.xlu0 %3137
    %v3139 = vsel %vm130, %v3136, 0
    %v3141 = vsel %vm130, %v3138, 0
    %3143 = vmatprep.subr.mxu0 0.0
    %3144 = vmatpush1.xpose.msra.mxu0 %v3141
    %3145 = vmatprep.subr.mxu0 0.0
    %3146 = vmatpush1.xpose.msra.mxu0 0.0
    %3147 = vmatprep.subr.mxu0 0.0
    %3148 = vmatpush1.xpose.msra.mxu0 0.0
    %3149 = vmatprep.subr.mxu0 0.0
    %3150 = vmatpush1.xpose.msra.mxu0 0.0
    %3151 = vmatprep.subr.mxu0 0.0
    %3152 = vmatpush1.xpose.msra.mxu0 0.0
    %3153 = vmatprep.subr.mxu0 0.0
    %3154 = vmatpush1.xpose.msra.mxu0 0.0
    %3155 = vmatprep.subr.mxu0 0.0
    %3156 = vmatpush1.xpose.msra.mxu0 0.0
    %3157 = vmatprep.subr.mxu0 0.0
    %3158 = vmatpush1.xpose.msra.mxu0 0.0
    %3159 = vmatprep.subr.mxu0 0.0
    %3160 = vmatpush1.xpose.msra.mxu0 0.0
    %3161 = vmatprep.subr.mxu0 0.0
    %3162 = vmatpush1.xpose.msra.mxu0 0.0
    %3163 = vmatprep.subr.mxu0 0.0
    %3164 = vmatpush1.xpose.msra.mxu0 0.0
    %3165 = vmatprep.subr.mxu0 0.0
    %3166 = vmatpush1.xpose.msra.mxu0 0.0
    %3167 = vmatprep.subr.mxu0 0.0
    %3168 = vmatpush1.xpose.msra.mxu0 0.0
    %3169 = vmatprep.subr.mxu0 0.0
    %3170 = vmatpush1.xpose.msra.mxu0 0.0
    %3171 = vmatprep.subr.mxu0 0.0
    %3172 = vmatpush1.xpose.msra.mxu0 0.0
    %3173 = vmatprep.subr.mxu0 0.0
    %3174 = vmatpush1.xpose.msra.mxu0 0.0
    %3175 = vmatprep.subr.mxu0 0.0
    %3176 = vmatpush1.xpose.msra.mxu0 0.0
    %3177 = vmatprep.subr.mxu0 0.0
    %3178 = vmatpush1.xpose.msra.mxu0 0.0
    %3179 = vmatprep.subr.mxu0 0.0
    %3180 = vmatpush1.xpose.msra.mxu0 0.0
    %3181 = vmatprep.subr.mxu0 0.0
    %3182 = vmatpush1.xpose.msra.mxu0 0.0
    %3183 = vmatprep.subr.mxu0 0.0
    %3184 = vmatpush1.xpose.msra.mxu0 0.0
    %3185 = vmatprep.subr.mxu0 0.0
    %3186 = vmatpush1.xpose.msra.mxu0 0.0
    %3187 = vmatprep.subr.mxu0 0.0
    %3188 = vmatpush1.xpose.msra.mxu0 0.0
    %3189 = vmatprep.subr.mxu0 0.0
    %3190 = vmatpush1.xpose.msra.mxu0 0.0
    %3191 = vmatprep.subr.mxu0 0.0
    %3192 = vmatpush1.xpose.msra.mxu0 0.0
    %3193 = vmatprep.subr.mxu0 0.0
    %3194 = vmatpush1.xpose.msra.mxu0 0.0
    %3195 = vmatprep.subr.mxu0 0.0
    %3196 = vmatpush1.xpose.msra.mxu0 0.0
    %3197 = vmatprep.subr.mxu0 0.0
    %3198 = vmatpush1.xpose.msra.mxu0 0.0
    %3199 = vmatprep.subr.mxu0 0.0
    %3200 = vmatpush1.xpose.msra.mxu0 0.0
    %3201 = vmatprep.subr.mxu0 0.0
    %3202 = vmatpush1.xpose.msra.mxu0 0.0
    %3203 = vmatprep.subr.mxu0 0.0
    %3204 = vmatpush1.xpose.msra.mxu0 0.0
    %3205 = vmatprep.subr.mxu0 0.0
    %3206 = vmatpush1.xpose.msra.mxu0 0.0
    %3207 = vmatprep.mubr.f32.mxu0 0.0
    %3208 = vmatmul.mubr.f32.gmra.mrb[0].mxu0 %v3139
    %v3209 = vpop.f32.mrb[0].mxu0
    %v3210 = vadd.f32 0.0, %v3209
    %v3211 = vpop.f32.mrb[0].mxu0
    %3212 = vdwg.mxu0
    %v3213 = vsel %vm130, %v3210, -inf
    %3214 = vmax.xlane.f32.xlu0 %v3213
    %v3215 = vpop.xlane.xlu0 %3214
    %v3216 = vsub.f32 %v3210, %v3215
    %v3217 = vmul.f32 %v3216, 1.442695
    %v3218 = vpow.pop %v3217
    %v3219 = vsel %vm130, %v3218, 0.0
    %3220 = vadd.xlane.f32.xlu0 %v3219
    %v3221 = vpop.xlane.xlu0 %3220
    %v3222 = vrcp.pop %v3221
    %v3223 = vmul.f32 %v3218, %v3222
    %3224 = vrot.lane.b32.xlu0 %v2137, 48
    %v3225 = vpop.permute.xlu0 %3224
    %v3228 = vsel %vm130, %v3223, 0
    %3230 = vmatprep.subr.mxu0 0.0
    %3231 = vmatpush1.msra.mxu0 %v3225
    %3232 = vmatprep.subr.mxu0 0.0
    %3233 = vmatpush1.msra.mxu0 0.0
    %3234 = vmatprep.subr.mxu0 0.0
    %3235 = vmatpush1.msra.mxu0 0.0
    %3236 = vmatprep.subr.mxu0 0.0
    %3237 = vmatpush1.msra.mxu0 0.0
    %3238 = vmatprep.subr.mxu0 0.0
    %3239 = vmatpush1.msra.mxu0 0.0
    %3240 = vmatprep.subr.mxu0 0.0
    %3241 = vmatpush1.msra.mxu0 0.0
    %3242 = vmatprep.subr.mxu0 0.0
    %3243 = vmatpush1.msra.mxu0 0.0
    %3244 = vmatprep.subr.mxu0 0.0
    %3245 = vmatpush1.msra.mxu0 0.0
    %3246 = vmatprep.subr.mxu0 0.0
    %3247 = vmatpush1.msra.mxu0 0.0
    %3248 = vmatprep.subr.mxu0 0.0
    %3249 = vmatpush1.msra.mxu0 0.0
    %3250 = vmatprep.subr.mxu0 0.0
    %3251 = vmatpush1.msra.mxu0 0.0
    %3252 = vmatprep.subr.mxu0 0.0
    %3253 = vmatpush1.msra.mxu0 0.0
    %3254 = vmatprep.subr.mxu0 0.0
    %3255 = vmatpush1.msra.mxu0 0.0
    %3256 = vmatprep.subr.mxu0 0.0
    %3257 = vmatpush1.msra.mxu0 0.0
    %3258 = vmatprep.subr.mxu0 0.0
    %3259 = vmatpush1.msra.mxu0 0.0
    %3260 = vmatprep.subr.mxu0 0.0
    %3261 = vmatpush1.msra.mxu0 0.0
    %3262 = vmatprep.subr.mxu0 0.0
    %3263 = vmatpush1.msra.mxu0 0.0
    %3264 = vmatprep.subr.mxu0 0.0
    %3265 = vmatpush1.msra.mxu0 0.0
    %3266 = vmatprep.subr.mxu0 0.0
    %3267 = vmatpush1.msra.mxu0 0.0
    %3268 = vmatprep.subr.mxu0 0.0
    %3269 = vmatpush1.msra.mxu0 0.0
    %3270 = vmatprep.subr.mxu0 0.0
    %3271 = vmatpush1.msra.mxu0 0.0
    %3272 = vmatprep.subr.mxu0 0.0
    %3273 = vmatpush1.msra.mxu0 0.0
    %3274 = vmatprep.subr.mxu0 0.0
    %3275 = vmatpush1.msra.mxu0 0.0
    %3276 = vmatprep.subr.mxu0 0.0
    %3277 = vmatpush1.msra.mxu0 0.0
    %3278 = vmatprep.subr.mxu0 0.0
    %3279 = vmatpush1.msra.mxu0 0.0
    %3280 = vmatprep.subr.mxu0 0.0
    %3281 = vmatpush1.msra.mxu0 0.0
    %3282 = vmatprep.subr.mxu0 0.0
    %3283 = vmatpush1.msra.mxu0 0.0
    %3284 = vmatprep.subr.mxu0 0.0
    %3285 = vmatpush1.msra.mxu0 0.0
    %3286 = vmatprep.subr.mxu0 0.0
    %3287 = vmatpush1.msra.mxu0 0.0
    %3288 = vmatprep.subr.mxu0 0.0
    %3289 = vmatpush1.msra.mxu0 0.0
    %3290 = vmatprep.subr.mxu0 0.0
    %3291 = vmatpush1.msra.mxu0 0.0
    %3292 = vmatprep.subr.mxu0 0.0
    %3293 = vmatpush1.msra.mxu0 0.0
    %3294 = vmatprep.mubr.f32.mxu0 0.0
    %3295 = vmatmul.mubr.f32.gmra.mrb[0].mxu0 %v3228
    %v3296 = vpop.f32.mrb[0].mxu0
    %v3297 = vadd.f32 0.0, %v3296
    %v3298 = vpop.f32.mrb[0].mxu0
    %3299 = vdwg.mxu0
    %v3301 = vsel %vm130, %v3132, 0
    %v3304 = vsel %vm130, %v3297, 0
    %3306 = vmatprep.subr.mxu0 0.0
    %3307 = vmatpush1.msra.mxu0 %v2053
    %3308 = vmatprep.subr.mxu0 0.0
    %3309 = vmatpush1.msra.mxu0 0.0
    %3310 = vmatprep.subr.mxu0 0.0
    %3311 = vmatpush1.msra.mxu0 0.0
    %3312 = vmatprep.subr.mxu0 0.0
    %3313 = vmatpush1.msra.mxu0 0.0
    %3314 = vmatprep.subr.mxu0 0.0
    %3315 = vmatpush1.msra.mxu0 0.0
    %3316 = vmatprep.subr.mxu0 0.0
    %3317 = vmatpush1.msra.mxu0 0.0
    %3318 = vmatprep.subr.mxu0 0.0
    %3319 = vmatpush1.msra.mxu0 0.0
    %3320 = vmatprep.subr.mxu0 0.0
    %3321 = vmatpush1.msra.mxu0 0.0
    %3322 = vmatprep.subr.mxu0 0.0
    %3323 = vmatpush1.msra.mxu0 0.0
    %3324 = vmatprep.subr.mxu0 0.0
    %3325 = vmatpush1.msra.mxu0 0.0
    %3326 = vmatprep.subr.mxu0 0.0
    %3327 = vmatpush1.msra.mxu0 0.0
    %3328 = vmatprep.subr.mxu0 0.0
    %3329 = vmatpush1.msra.mxu0 0.0
    %3330 = vmatprep.subr.mxu0 0.0
    %3331 = vmatpush1.msra.mxu0 0.0
    %3332 = vmatprep.subr.mxu0 0.0
    %3333 = vmatpush1.msra.mxu0 0.0
    %3334 = vmatprep.subr.mxu0 0.0
    %3335 = vmatpush1.msra.mxu0 0.0
    %3336 = vmatprep.subr.mxu0 0.0
    %3337 = vmatpush1.msra.mxu0 0.0
    %3338 = vmatprep.subr.mxu0 0.0
    %3339 = vmatpush1.msra.mxu0 0.0
    %3340 = vmatprep.subr.mxu0 0.0
    %3341 = vmatpush1.msra.mxu0 0.0
    %3342 = vmatprep.subr.mxu0 0.0
    %3343 = vmatpush1.msra.mxu0 0.0
    %3344 = vmatprep.subr.mxu0 0.0
    %3345 = vmatpush1.msra.mxu0 0.0
    %3346 = vmatprep.subr.mxu0 0.0
    %3347 = vmatpush1.msra.mxu0 0.0
    %3348 = vmatprep.subr.mxu0 0.0
    %3349 = vmatpush1.msra.mxu0 0.0
    %3350 = vmatprep.subr.mxu0 0.0
    %3351 = vmatpush1.msra.mxu0 0.0
    %3352 = vmatprep.subr.mxu0 0.0
    %3353 = vmatpush1.msra.mxu0 0.0
    %3354 = vmatprep.subr.mxu0 0.0
    %3355 = vmatpush1.msra.mxu0 0.0
    %3356 = vmatprep.subr.mxu0 0.0
    %3357 = vmatpush1.msra.mxu0 0.0
    %3358 = vmatprep.subr.mxu0 0.0
    %3359 = vmatpush1.msra.mxu0 0.0
    %3360 = vmatprep.subr.mxu0 0.0
    %3361 = vmatpush1.msra.mxu0 0.0
    %3362 = vmatprep.subr.mxu0 0.0
    %3363 = vmatpush1.msra.mxu0 0.0
    %3364 = vmatprep.subr.mxu0 0.0
    %3365 = vmatpush1.msra.mxu0 0.0
    %3366 = vmatprep.subr.mxu0 0.0
    %3367 = vmatpush1.msra.mxu0 0.0
    %3368 = vmatprep.subr.mxu0 0.0
    %3369 = vmatpush1.msra.mxu0 0.0
    %3370 = vmatprep.mubr.f32.mxu0 0.0
    %3371 = vmatmul.mubr.f32.gmra.mrb[0].mxu0 %v3301
    %v3372 = vpop.f32.mrb[0].mxu0
    %v3373 = vadd.f32 0.0, %v3372
    %v3374 = vpop.f32.mrb[0].mxu0
    %3375 = vmatprep.mubr.f32.mxu0 0.0
    %3376 = vmatmul.mubr.f32.gmra.mrb[0].mxu0 %v3304
    %v3377 = vpop.f32.mrb[0].mxu0
    %v3378 = vadd.f32 0.0, %v3377
    %v3379 = vpop.f32.mrb[0].mxu0
    %3380 = vdwg.mxu0
    %v3381 = vadd.f32 %v2968, %v3373
    %v3382 = vadd.f32 %v2969, %v3378
    %3383 = vrot.lane.b32.xlu0 %v2132, 104
    %v3384 = vpop.permute.xlu0 %3383
    %3385 = vrot.lane.b32.xlu0 %v2132, 72
    %v3386 = vpop.permute.xlu0 %3385
    %v3387 = vsel %vm130, %v3384, 0
    %v3389 = vsel %vm130, %v3386, 0
    %3391 = vmatprep.subr.mxu0 0.0
    %3392 = vmatpush1.xpose.msra.mxu0 %v3389
    %3393 = vmatprep.subr.mxu0 0.0
    %3394 = vmatpush1.xpose.msra.mxu0 0.0
    %3395 = vmatprep.subr.mxu0 0.0
    %3396 = vmatpush1.xpose.msra.mxu0 0.0
    %3397 = vmatprep.subr.mxu0 0.0
    %3398 = vmatpush1.xpose.msra.mxu0 0.0
    %3399 = vmatprep.subr.mxu0 0.0
    %3400 = vmatpush1.xpose.msra.mxu0 0.0
    %3401 = vmatprep.subr.mxu0 0.0
    %3402 = vmatpush1.xpose.msra.mxu0 0.0
    %3403 = vmatprep.subr.mxu0 0.0
    %3404 = vmatpush1.xpose.msra.mxu0 0.0
    %3405 = vmatprep.subr.mxu0 0.0
    %3406 = vmatpush1.xpose.msra.mxu0 0.0
    %3407 = vmatprep.subr.mxu0 0.0
    %3408 = vmatpush1.xpose.msra.mxu0 0.0
    %3409 = vmatprep.subr.mxu0 0.0
    %3410 = vmatpush1.xpose.msra.mxu0 0.0
    %3411 = vmatprep.subr.mxu0 0.0
    %3412 = vmatpush1.xpose.msra.mxu0 0.0
    %3413 = vmatprep.subr.mxu0 0.0
    %3414 = vmatpush1.xpose.msra.mxu0 0.0
    %3415 = vmatprep.subr.mxu0 0.0
    %3416 = vmatpush1.xpose.msra.mxu0 0.0
    %3417 = vmatprep.subr.mxu0 0.0
    %3418 = vmatpush1.xpose.msra.mxu0 0.0
    %3419 = vmatprep.subr.mxu0 0.0
    %3420 = vmatpush1.xpose.msra.mxu0 0.0
    %3421 = vmatprep.subr.mxu0 0.0
    %3422 = vmatpush1.xpose.msra.mxu0 0.0
    %3423 = vmatprep.subr.mxu0 0.0
    %3424 = vmatpush1.xpose.msra.mxu0 0.0
    %3425 = vmatprep.subr.mxu0 0.0
    %3426 = vmatpush1.xpose.msra.mxu0 0.0
    %3427 = vmatprep.subr.mxu0 0.0
    %3428 = vmatpush1.xpose.msra.mxu0 0.0
    %3429 = vmatprep.subr.mxu0 0.0
    %3430 = vmatpush1.xpose.msra.mxu0 0.0
    %3431 = vmatprep.subr.mxu0 0.0
    %3432 = vmatpush1.xpose.msra.mxu0 0.0
    %3433 = vmatprep.subr.mxu0 0.0
    %3434 = vmatpush1.xpose.msra.mxu0 0.0
    %3435 = vmatprep.subr.mxu0 0.0
    %3436 = vmatpush1.xpose.msra.mxu0 0.0
    %3437 = vmatprep.subr.mxu0 0.0
    %3438 = vmatpush1.xpose.msra.mxu0 0.0
    %3439 = vmatprep.subr.mxu0 0.0
    %3440 = vmatpush1.xpose.msra.mxu0 0.0
    %3441 = vmatprep.subr.mxu0 0.0
    %3442 = vmatpush1.xpose.msra.mxu0 0.0
    %3443 = vmatprep.subr.mxu0 0.0
    %3444 = vmatpush1.xpose.msra.mxu0 0.0
    %3445 = vmatprep.subr.mxu0 0.0
    %3446 = vmatpush1.xpose.msra.mxu0 0.0
    %3447 = vmatprep.subr.mxu0 0.0
    %3448 = vmatpush1.xpose.msra.mxu0 0.0
    %3449 = vmatprep.subr.mxu0 0.0
    %3450 = vmatpush1.xpose.msra.mxu0 0.0
    %3451 = vmatprep.subr.mxu0 0.0
    %3452 = vmatpush1.xpose.msra.mxu0 0.0
    %3453 = vmatprep.subr.mxu0 0.0
    %3454 = vmatpush1.xpose.msra.mxu0 0.0
    %3455 = vmatprep.mubr.f32.mxu0 0.0
    %3456 = vmatmul.mubr.f32.gmra.mrb[0].mxu0 %v3387
    %v3457 = vpop.f32.mrb[0].mxu0
    %v3458 = vadd.f32 0.0, %v3457
    %v3459 = vpop.f32.mrb[0].mxu0
    %3460 = vdwg.mxu0
    %v3461 = vsel %vm130, %v3458, -inf
    %3462 = vmax.xlane.f32.xlu0 %v3461
    %v3463 = vpop.xlane.xlu0 %3462
    %v3464 = vsub.f32 %v3458, %v3463
    %v3465 = vmul.f32 %v3464, 1.442695
    %v3466 = vpow.pop %v3465
    %v3467 = vsel %vm130, %v3466, 0.0
    %3468 = vadd.xlane.f32.xlu0 %v3467
    %v3469 = vpop.xlane.xlu0 %3468
    %v3470 = vrcp.pop %v3469
    %v3471 = vmul.f32 %v3466, %v3470
    %3472 = vrot.lane.b32.xlu0 %v2132, 40
    %v3473 = vpop.permute.xlu0 %3472
    %v3476 = vsel %vm130, %v3471, 0
    %3478 = vmatprep.subr.mxu0 0.0
    %3479 = vmatpush1.msra.mxu0 %v3473
    %3480 = vmatprep.subr.mxu0 0.0
    %3481 = vmatpush1.msra.mxu0 0.0
    %3482 = vmatprep.subr.mxu0 0.0
    %3483 = vmatpush1.msra.mxu0 0.0
    %3484 = vmatprep.subr.mxu0 0.0
    %3485 = vmatpush1.msra.mxu0 0.0
    %3486 = vmatprep.subr.mxu0 0.0
    %3487 = vmatpush1.msra.mxu0 0.0
    %3488 = vmatprep.subr.mxu0 0.0
    %3489 = vmatpush1.msra.mxu0 0.0
    %3490 = vmatprep.subr.mxu0 0.0
    %3491 = vmatpush1.msra.mxu0 0.0
    %3492 = vmatprep.subr.mxu0 0.0
    %3493 = vmatpush1.msra.mxu0 0.0
    %3494 = vmatprep.subr.mxu0 0.0
    %3495 = vmatpush1.msra.mxu0 0.0
    %3496 = vmatprep.subr.mxu0 0.0
    %3497 = vmatpush1.msra.mxu0 0.0
    %3498 = vmatprep.subr.mxu0 0.0
    %3499 = vmatpush1.msra.mxu0 0.0
    %3500 = vmatprep.subr.mxu0 0.0
    %3501 = vmatpush1.msra.mxu0 0.0
    %3502 = vmatprep.subr.mxu0 0.0
    %3503 = vmatpush1.msra.mxu0 0.0
    %3504 = vmatprep.subr.mxu0 0.0
    %3505 = vmatpush1.msra.mxu0 0.0
    %3506 = vmatprep.subr.mxu0 0.0
    %3507 = vmatpush1.msra.mxu0 0.0
    %3508 = vmatprep.subr.mxu0 0.0
    %3509 = vmatpush1.msra.mxu0 0.0
    %3510 = vmatprep.subr.mxu0 0.0
    %3511 = vmatpush1.msra.mxu0 0.0
    %3512 = vmatprep.subr.mxu0 0.0
    %3513 = vmatpush1.msra.mxu0 0.0
    %3514 = vmatprep.subr.mxu0 0.0
    %3515 = vmatpush1.msra.mxu0 0.0
    %3516 = vmatprep.subr.mxu0 0.0
    %3517 = vmatpush1.msra.mxu0 0.0
    %3518 = vmatprep.subr.mxu0 0.0
    %3519 = vmatpush1.msra.mxu0 0.0
    %3520 = vmatprep.subr.mxu0 0.0
    %3521 = vmatpush1.msra.mxu0 0.0
    %3522 = vmatprep.subr.mxu0 0.0
    %3523 = vmatpush1.msra.mxu0 0.0
    %3524 = vmatprep.subr.mxu0 0.0
    %3525 = vmatpush1.msra.mxu0 0.0
    %3526 = vmatprep.subr.mxu0 0.0
    %3527 = vmatpush1.msra.mxu0 0.0
    %3528 = vmatprep.subr.mxu0 0.0
    %3529 = vmatpush1.msra.mxu0 0.0
    %3530 = vmatprep.subr.mxu0 0.0
    %3531 = vmatpush1.msra.mxu0 0.0
    %3532 = vmatprep.subr.mxu0 0.0
    %3533 = vmatpush1.msra.mxu0 0.0
    %3534 = vmatprep.subr.mxu0 0.0
    %3535 = vmatpush1.msra.mxu0 0.0
    %3536 = vmatprep.subr.mxu0 0.0
    %3537 = vmatpush1.msra.mxu0 0.0
    %3538 = vmatprep.subr.mxu0 0.0
    %3539 = vmatpush1.msra.mxu0 0.0
    %3540 = vmatprep.subr.mxu0 0.0
    %3541 = vmatpush1.msra.mxu0 0.0
    %3542 = vmatprep.mubr.f32.mxu0 0.0
    %3543 = vmatmul.mubr.f32.gmra.mrb[0].mxu0 %v3476
    %v3544 = vpop.f32.mrb[0].mxu0
    %v3545 = vadd.f32 0.0, %v3544
    %v3546 = vpop.f32.mrb[0].mxu0
    %3547 = vdwg.mxu0
    %3548 = vrot.lane.b32.xlu0 %v2137, 104
    %v3549 = vpop.permute.xlu0 %3548
    %3550 = vrot.lane.b32.xlu0 %v2137, 72
    %v3551 = vpop.permute.xlu0 %3550
    %v3552 = vsel %vm130, %v3549, 0
    %v3554 = vsel %vm130, %v3551, 0
    %3556 = vmatprep.subr.mxu0 0.0
    %3557 = vmatpush1.xpose.msra.mxu0 %v3554
    %3558 = vmatprep.subr.mxu0 0.0
    %3559 = vmatpush1.xpose.msra.mxu0 0.0
    %3560 = vmatprep.subr.mxu0 0.0
    %3561 = vmatpush1.xpose.msra.mxu0 0.0
    %3562 = vmatprep.subr.mxu0 0.0
    %3563 = vmatpush1.xpose.msra.mxu0 0.0
    %3564 = vmatprep.subr.mxu0 0.0
    %3565 = vmatpush1.xpose.msra.mxu0 0.0
    %3566 = vmatprep.subr.mxu0 0.0
    %3567 = vmatpush1.xpose.msra.mxu0 0.0
    %3568 = vmatprep.subr.mxu0 0.0
    %3569 = vmatpush1.xpose.msra.mxu0 0.0
    %3570 = vmatprep.subr.mxu0 0.0
    %3571 = vmatpush1.xpose.msra.mxu0 0.0
    %3572 = vmatprep.subr.mxu0 0.0
    %3573 = vmatpush1.xpose.msra.mxu0 0.0
    %3574 = vmatprep.subr.mxu0 0.0
    %3575 = vmatpush1.xpose.msra.mxu0 0.0
    %3576 = vmatprep.subr.mxu0 0.0
    %3577 = vmatpush1.xpose.msra.mxu0 0.0
    %3578 = vmatprep.subr.mxu0 0.0
    %3579 = vmatpush1.xpose.msra.mxu0 0.0
    %3580 = vmatprep.subr.mxu0 0.0
    %3581 = vmatpush1.xpose.msra.mxu0 0.0
    %3582 = vmatprep.subr.mxu0 0.0
    %3583 = vmatpush1.xpose.msra.mxu0 0.0
    %3584 = vmatprep.subr.mxu0 0.0
    %3585 = vmatpush1.xpose.msra.mxu0 0.0
    %3586 = vmatprep.subr.mxu0 0.0
    %3587 = vmatpush1.xpose.msra.mxu0 0.0
    %3588 = vmatprep.subr.mxu0 0.0
    %3589 = vmatpush1.xpose.msra.mxu0 0.0
    %3590 = vmatprep.subr.mxu0 0.0
    %3591 = vmatpush1.xpose.msra.mxu0 0.0
    %3592 = vmatprep.subr.mxu0 0.0
    %3593 = vmatpush1.xpose.msra.mxu0 0.0
    %3594 = vmatprep.subr.mxu0 0.0
    %3595 = vmatpush1.xpose.msra.mxu0 0.0
    %3596 = vmatprep.subr.mxu0 0.0
    %3597 = vmatpush1.xpose.msra.mxu0 0.0
    %3598 = vmatprep.subr.mxu0 0.0
    %3599 = vmatpush1.xpose.msra.mxu0 0.0
    %3600 = vmatprep.subr.mxu0 0.0
    %3601 = vmatpush1.xpose.msra.mxu0 0.0
    %3602 = vmatprep.subr.mxu0 0.0
    %3603 = vmatpush1.xpose.msra.mxu0 0.0
    %3604 = vmatprep.subr.mxu0 0.0
    %3605 = vmatpush1.xpose.msra.mxu0 0.0
    %3606 = vmatprep.subr.mxu0 0.0
    %3607 = vmatpush1.xpose.msra.mxu0 0.0
    %3608 = vmatprep.subr.mxu0 0.0
    %3609 = vmatpush1.xpose.msra.mxu0 0.0
    %3610 = vmatprep.subr.mxu0 0.0
    %3611 = vmatpush1.xpose.msra.mxu0 0.0
    %3612 = vmatprep.subr.mxu0 0.0
    %3613 = vmatpush1.xpose.msra.mxu0 0.0
    %3614 = vmatprep.subr.mxu0 0.0
    %3615 = vmatpush1.xpose.msra.mxu0 0.0
    %3616 = vmatprep.subr.mxu0 0.0
    %3617 = vmatpush1.xpose.msra.mxu0 0.0
    %3618 = vmatprep.subr.mxu0 0.0
    %3619 = vmatpush1.xpose.msra.mxu0 0.0
    %3620 = vmatprep.mubr.f32.mxu0 0.0
    %3621 = vmatmul.mubr.f32.gmra.mrb[0].mxu0 %v3552
    %v3622 = vpop.f32.mrb[0].mxu0
    %v3623 = vadd.f32 0.0, %v3622
    %v3624 = vpop.f32.mrb[0].mxu0
    %3625 = vdwg.mxu0
    %v3626 = vsel %vm130, %v3623, -inf
    %3627 = vmax.xlane.f32.xlu0 %v3626
    %v3628 = vpop.xlane.xlu0 %3627
    %v3629 = vsub.f32 %v3623, %v3628
    %v3630 = vmul.f32 %v3629, 1.442695
    %v3631 = vpow.pop %v3630
    %v3632 = vsel %vm130, %v3631, 0.0
    %3633 = vadd.xlane.f32.xlu0 %v3632
    %v3634 = vpop.xlane.xlu0 %3633
    %v3635 = vrcp.pop %v3634
    %v3636 = vmul.f32 %v3631, %v3635
    %3637 = vrot.lane.b32.xlu0 %v2137, 40
    %v3638 = vpop.permute.xlu0 %3637
    %v3641 = vsel %vm130, %v3636, 0
    %3643 = vmatprep.subr.mxu0 0.0
    %3644 = vmatpush1.msra.mxu0 %v3638
    %3645 = vmatprep.subr.mxu0 0.0
    %3646 = vmatpush1.msra.mxu0 0.0
    %3647 = vmatprep.subr.mxu0 0.0
    %3648 = vmatpush1.msra.mxu0 0.0
    %3649 = vmatprep.subr.mxu0 0.0
    %3650 = vmatpush1.msra.mxu0 0.0
    %3651 = vmatprep.subr.mxu0 0.0
    %3652 = vmatpush1.msra.mxu0 0.0
    %3653 = vmatprep.subr.mxu0 0.0
    %3654 = vmatpush1.msra.mxu0 0.0
    %3655 = vmatprep.subr.mxu0 0.0
    %3656 = vmatpush1.msra.mxu0 0.0
    %3657 = vmatprep.subr.mxu0 0.0
    %3658 = vmatpush1.msra.mxu0 0.0
    %3659 = vmatprep.subr.mxu0 0.0
    %3660 = vmatpush1.msra.mxu0 0.0
    %3661 = vmatprep.subr.mxu0 0.0
    %3662 = vmatpush1.msra.mxu0 0.0
    %3663 = vmatprep.subr.mxu0 0.0
    %3664 = vmatpush1.msra.mxu0 0.0
    %3665 = vmatprep.subr.mxu0 0.0
    %3666 = vmatpush1.msra.mxu0 0.0
    %3667 = vmatprep.subr.mxu0 0.0
    %3668 = vmatpush1.msra.mxu0 0.0
    %3669 = vmatprep.subr.mxu0 0.0
    %3670 = vmatpush1.msra.mxu0 0.0
    %3671 = vmatprep.subr.mxu0 0.0
    %3672 = vmatpush1.msra.mxu0 0.0
    %3673 = vmatprep.subr.mxu0 0.0
    %3674 = vmatpush1.msra.mxu0 0.0
    %3675 = vmatprep.subr.mxu0 0.0
    %3676 = vmatpush1.msra.mxu0 0.0
    %3677 = vmatprep.subr.mxu0 0.0
    %3678 = vmatpush1.msra.mxu0 0.0
    %3679 = vmatprep.subr.mxu0 0.0
    %3680 = vmatpush1.msra.mxu0 0.0
    %3681 = vmatprep.subr.mxu0 0.0
    %3682 = vmatpush1.msra.mxu0 0.0
    %3683 = vmatprep.subr.mxu0 0.0
    %3684 = vmatpush1.msra.mxu0 0.0
    %3685 = vmatprep.subr.mxu0 0.0
    %3686 = vmatpush1.msra.mxu0 0.0
    %3687 = vmatprep.subr.mxu0 0.0
    %3688 = vmatpush1.msra.mxu0 0.0
    %3689 = vmatprep.subr.mxu0 0.0
    %3690 = vmatpush1.msra.mxu0 0.0
    %3691 = vmatprep.subr.mxu0 0.0
    %3692 = vmatpush1.msra.mxu0 0.0
    %3693 = vmatprep.subr.mxu0 0.0
    %3694 = vmatpush1.msra.mxu0 0.0
    %3695 = vmatprep.subr.mxu0 0.0
    %3696 = vmatpush1.msra.mxu0 0.0
    %3697 = vmatprep.subr.mxu0 0.0
    %3698 = vmatpush1.msra.mxu0 0.0
    %3699 = vmatprep.subr.mxu0 0.0
    %3700 = vmatpush1.msra.mxu0 0.0
    %3701 = vmatprep.subr.mxu0 0.0
    %3702 = vmatpush1.msra.mxu0 0.0
    %3703 = vmatprep.subr.mxu0 0.0
    %3704 = vmatpush1.msra.mxu0 0.0
    %3705 = vmatprep.subr.mxu0 0.0
    %3706 = vmatpush1.msra.mxu0 0.0
    %3707 = vmatprep.mubr.f32.mxu0 0.0
    %3708 = vmatmul.mubr.f32.gmra.mrb[0].mxu0 %v3641
    %v3709 = vpop.f32.mrb[0].mxu0
    %v3710 = vadd.f32 0.0, %v3709
    %v3711 = vpop.f32.mrb[0].mxu0
    %3712 = vdwg.mxu0
    %v3714 = vsel %vm130, %v3545, 0
    %v3717 = vsel %vm130, %v3710, 0
    %3719 = vmatprep.subr.mxu0 0.0
    %3720 = vmatpush1.msra.mxu0 %v2054
    %3721 = vmatprep.subr.mxu0 0.0
    %3722 = vmatpush1.msra.mxu0 0.0
    %3723 = vmatprep.subr.mxu0 0.0
    %3724 = vmatpush1.msra.mxu0 0.0
    %3725 = vmatprep.subr.mxu0 0.0
    %3726 = vmatpush1.msra.mxu0 0.0
    %3727 = vmatprep.subr.mxu0 0.0
    %3728 = vmatpush1.msra.mxu0 0.0
    %3729 = vmatprep.subr.mxu0 0.0
    %3730 = vmatpush1.msra.mxu0 0.0
    %3731 = vmatprep.subr.mxu0 0.0
    %3732 = vmatpush1.msra.mxu0 0.0
    %3733 = vmatprep.subr.mxu0 0.0
    %3734 = vmatpush1.msra.mxu0 0.0
    %3735 = vmatprep.subr.mxu0 0.0
    %3736 = vmatpush1.msra.mxu0 0.0
    %3737 = vmatprep.subr.mxu0 0.0
    %3738 = vmatpush1.msra.mxu0 0.0
    %3739 = vmatprep.subr.mxu0 0.0
    %3740 = vmatpush1.msra.mxu0 0.0
    %3741 = vmatprep.subr.mxu0 0.0
    %3742 = vmatpush1.msra.mxu0 0.0
    %3743 = vmatprep.subr.mxu0 0.0
    %3744 = vmatpush1.msra.mxu0 0.0
    %3745 = vmatprep.subr.mxu0 0.0
    %3746 = vmatpush1.msra.mxu0 0.0
    %3747 = vmatprep.subr.mxu0 0.0
    %3748 = vmatpush1.msra.mxu0 0.0
    %3749 = vmatprep.subr.mxu0 0.0
    %3750 = vmatpush1.msra.mxu0 0.0
    %3751 = vmatprep.subr.mxu0 0.0
    %3752 = vmatpush1.msra.mxu0 0.0
    %3753 = vmatprep.subr.mxu0 0.0
    %3754 = vmatpush1.msra.mxu0 0.0
    %3755 = vmatprep.subr.mxu0 0.0
    %3756 = vmatpush1.msra.mxu0 0.0
    %3757 = vmatprep.subr.mxu0 0.0
    %3758 = vmatpush1.msra.mxu0 0.0
    %3759 = vmatprep.subr.mxu0 0.0
    %3760 = vmatpush1.msra.mxu0 0.0
    %3761 = vmatprep.subr.mxu0 0.0
    %3762 = vmatpush1.msra.mxu0 0.0
    %3763 = vmatprep.subr.mxu0 0.0
    %3764 = vmatpush1.msra.mxu0 0.0
    %3765 = vmatprep.subr.mxu0 0.0
    %3766 = vmatpush1.msra.mxu0 0.0
    %3767 = vmatprep.subr.mxu0 0.0
    %3768 = vmatpush1.msra.mxu0 0.0
    %3769 = vmatprep.subr.mxu0 0.0
    %3770 = vmatpush1.msra.mxu0 0.0
    %3771 = vmatprep.subr.mxu0 0.0
    %3772 = vmatpush1.msra.mxu0 0.0
    %3773 = vmatprep.subr.mxu0 0.0
    %3774 = vmatpush1.msra.mxu0 0.0
    %3775 = vmatprep.subr.mxu0 0.0
    %3776 = vmatpush1.msra.mxu0 0.0
    %3777 = vmatprep.subr.mxu0 0.0
    %3778 = vmatpush1.msra.mxu0 0.0
    %3779 = vmatprep.subr.mxu0 0.0
    %3780 = vmatpush1.msra.mxu0 0.0
    %3781 = vmatprep.subr.mxu0 0.0
    %3782 = vmatpush1.msra.mxu0 0.0
    %3783 = vmatprep.mubr.f32.mxu0 0.0
    %3784 = vmatmul.mubr.f32.gmra.mrb[0].mxu0 %v3714
    %v3785 = vpop.f32.mrb[0].mxu0
    %v3786 = vadd.f32 0.0, %v3785
    %v3787 = vpop.f32.mrb[0].mxu0
    %3788 = vmatprep.mubr.f32.mxu0 0.0
    %3789 = vmatmul.mubr.f32.gmra.mrb[0].mxu0 %v3717
    %v3790 = vpop.f32.mrb[0].mxu0
    %v3791 = vadd.f32 0.0, %v3790
    %v3792 = vpop.f32.mrb[0].mxu0
    %3793 = vdwg.mxu0
    %v3794 = vadd.f32 %v3381, %v3786
    %v3795 = vadd.f32 %v3382, %v3791
    %v3796 = vsel %vm39, %v3794, 0.0
    %3797 = vadd.xlane.f32.xlu0 %v3796
    %v3798 = vpop.xlane.xlu0 %3797
    %v3799 = vsel %vm39, %v3795, 0.0
    %3800 = vadd.xlane.f32.xlu0 %v3799
    %v3801 = vpop.xlane.xlu0 %3800
    %v3802 = vmul.f32 %v3798, %v1784
    %v3803 = vmul.f32 %v3801, %v1784
    %v3804 = vsub.f32 %v3794, %v3802
    %v3805 = vsub.f32 %v3795, %v3803
    %v3806 = vmul.f32 %v3804, %v3804
    %v3807 = vmul.f32 %v3805, %v3805
    %v3808 = vsel %vm39, %v3806, 0.0
    %3809 = vadd.xlane.f32.xlu0 %v3808
    %v3810 = vpop.xlane.xlu0 %3809
    %v3811 = vsel %vm39, %v3807, 0.0
    %3812 = vadd.xlane.f32.xlu0 %v3811
    %v3813 = vpop.xlane.xlu0 %3812
    %v3814 = vmul.f32 %v3810, %v1784
    %v3815 = vmul.f32 %v3813, %v1784
    %v3816 = vadd.f32 %v3814, 1e-05
    %v3817 = vadd.f32 %v3815, 1e-05
    %v3818 = vrsqrt.pop %v3816
    %v3819 = vrsqrt.pop %v3817
    %v3820 = vmul.f32 %v3804, %v3818
    %v3821 = vmul.f32 %v3805, %v3819
    %v3822 = vlaneseq
    %v3823 = vshrl.u32 %v3822, 7
    %v3824 = vsub.s32 1, %v3823
    %v3825 = vrot.slane %v2056, %v3824
    %v3826 = vmul.f32 %v3820, %v3825
    %v3827 = vmul.f32 %v3821, %v3825
    %v3828 = vlaneseq
    %v3829 = vshrl.u32 %v3828, 7
    %v3830 = vsub.s32 2, %v3829
    %v3831 = vrot.slane %v2056, %v3830
    %v3832 = vadd.f32 %v3826, %v3831
    %v3833 = vadd.f32 %v3827, %v3831
    %s3834 = scalar_lea.vmem %s3, 32
    %v3835 = vld [vmem:[%s3834] sm:$0xff]
    %v3836 = vld [vmem:[%s3834 + $0x8] sm:$0xff]
    %v3837 = vld [vmem:[%s3834 + $0x10] sm:$0xff]
    %v3838 = vld [vmem:[%s3834 + $0x18] sm:$0xff]
    %v3840 = vlaneseq
    %v3841 = vshrl.u32 %v3840, 7
    %v3842 = vsub.s32 0, %v3841
    %v3843 = vrot.slane %v2058, %v3842
    %v3846 = vsel %vm39, %v3832, 0
    %v3849 = vsel %vm39, %v3833, 0
    %3851 = vmatprep.subr.mxu0 0.0
    %3852 = vmatpush1.msra.mxu0 %v3835
    %3853 = vmatprep.subr.mxu0 0.0
    %3854 = vmatpush1.msra.mxu0 %v3836
    %3855 = vmatprep.subr.mxu0 0.0
    %3856 = vmatpush1.msra.mxu0 %v3837
    %3857 = vmatprep.subr.mxu0 0.0
    %3858 = vmatpush1.msra.mxu0 %v3838
    %3859 = vmatprep.subr.mxu0 0.0
    %3860 = vmatpush1.msra.mxu0 0.0
    %3861 = vmatprep.subr.mxu0 0.0
    %3862 = vmatpush1.msra.mxu0 0.0
    %3863 = vmatprep.subr.mxu0 0.0
    %3864 = vmatpush1.msra.mxu0 0.0
    %3865 = vmatprep.subr.mxu0 0.0
    %3866 = vmatpush1.msra.mxu0 0.0
    %3867 = vmatprep.subr.mxu0 0.0
    %3868 = vmatpush1.msra.mxu0 0.0
    %3869 = vmatprep.subr.mxu0 0.0
    %3870 = vmatpush1.msra.mxu0 0.0
    %3871 = vmatprep.subr.mxu0 0.0
    %3872 = vmatpush1.msra.mxu0 0.0
    %3873 = vmatprep.subr.mxu0 0.0
    %3874 = vmatpush1.msra.mxu0 0.0
    %3875 = vmatprep.subr.mxu0 0.0
    %3876 = vmatpush1.msra.mxu0 0.0
    %3877 = vmatprep.subr.mxu0 0.0
    %3878 = vmatpush1.msra.mxu0 0.0
    %3879 = vmatprep.subr.mxu0 0.0
    %3880 = vmatpush1.msra.mxu0 0.0
    %3881 = vmatprep.subr.mxu0 0.0
    %3882 = vmatpush1.msra.mxu0 0.0
    %3883 = vmatprep.subr.mxu0 0.0
    %3884 = vmatpush1.msra.mxu0 0.0
    %3885 = vmatprep.subr.mxu0 0.0
    %3886 = vmatpush1.msra.mxu0 0.0
    %3887 = vmatprep.subr.mxu0 0.0
    %3888 = vmatpush1.msra.mxu0 0.0
    %3889 = vmatprep.subr.mxu0 0.0
    %3890 = vmatpush1.msra.mxu0 0.0
    %3891 = vmatprep.subr.mxu0 0.0
    %3892 = vmatpush1.msra.mxu0 0.0
    %3893 = vmatprep.subr.mxu0 0.0
    %3894 = vmatpush1.msra.mxu0 0.0
    %3895 = vmatprep.subr.mxu0 0.0
    %3896 = vmatpush1.msra.mxu0 0.0
    %3897 = vmatprep.subr.mxu0 0.0
    %3898 = vmatpush1.msra.mxu0 0.0
    %3899 = vmatprep.subr.mxu0 0.0
    %3900 = vmatpush1.msra.mxu0 0.0
    %3901 = vmatprep.subr.mxu0 0.0
    %3902 = vmatpush1.msra.mxu0 0.0
    %3903 = vmatprep.subr.mxu0 0.0
    %3904 = vmatpush1.msra.mxu0 0.0
    %3905 = vmatprep.subr.mxu0 0.0
    %3906 = vmatpush1.msra.mxu0 0.0
    %3907 = vmatprep.subr.mxu0 0.0
    %3908 = vmatpush1.msra.mxu0 0.0
    %3909 = vmatprep.subr.mxu0 0.0
    %3910 = vmatpush1.msra.mxu0 0.0
    %3911 = vmatprep.subr.mxu0 0.0
    %3912 = vmatpush1.msra.mxu0 0.0
    %3913 = vmatprep.subr.mxu0 0.0
    %3914 = vmatpush1.msra.mxu0 0.0
    %3915 = vmatprep.mubr.f32.mxu0 0.0
    %3916 = vmatmul.mubr.f32.gmra.mrb[0].mxu0 %v3846
    %v3917 = vpop.f32.mrb[0].mxu0
    %v3918 = vadd.f32 %v3843, %v3917
    %v3919 = vpop.f32.mrb[0].mxu0
    %3920 = vmatprep.mubr.f32.mxu0 0.0
    %3921 = vmatmul.mubr.f32.gmra.mrb[0].mxu0 %v3849
    %v3922 = vpop.f32.mrb[0].mxu0
    %v3923 = vadd.f32 %v3843, %v3922
    %v3924 = vpop.f32.mrb[0].mxu0
    %3925 = vdwg.mxu0
    %v3926 = vmax.f32 %v3918, 0.0
    %v3927 = vmax.f32 %v3923, 0.0
    %s3928 = scalar_lea.vmem %s4, 128
    %v3929 = vld [vmem:[%s3928] sm:$0xff]
    %v3930 = vld [vmem:[%s3928 + $0x8] sm:$0xff]
    %v3931 = vld [vmem:[%s3928 + $0x10] sm:$0xff]
    %v3932 = vld [vmem:[%s3928 + $0x18] sm:$0xff]
    %v3933 = vld [vmem:[%s3928 + $0x20] sm:$0xff]
    %v3934 = vld [vmem:[%s3928 + $0x28] sm:$0xff]
    %v3935 = vld [vmem:[%s3928 + $0x30] sm:$0xff]
    %v3936 = vld [vmem:[%s3928 + $0x38] sm:$0xff]
    %v3937 = vld [vmem:[%s3928 + $0x40] sm:$0xff]
    %v3938 = vld [vmem:[%s3928 + $0x48] sm:$0xff]
    %v3939 = vld [vmem:[%s3928 + $0x50] sm:$0xff]
    %v3940 = vld [vmem:[%s3928 + $0x58] sm:$0xff]
    %v3941 = vld [vmem:[%s3928 + $0x60] sm:$0xff]
    %v3942 = vld [vmem:[%s3928 + $0x68] sm:$0xff]
    %v3943 = vld [vmem:[%s3928 + $0x70] sm:$0xff]
    %v3944 = vld [vmem:[%s3928 + $0x78] sm:$0xff]
    %v3945 = vlaneseq
    %v3946 = vshrl.u32 %v3945, 7
    %v3947 = vsub.s32 3, %v3946
    %v3948 = vrot.slane %v2056, %v3947
    %3949 = vmatprep.subr.mxu0 0.0
    %3950 = vmatpush1.msra.mxu0 %v3929
    %3951 = vmatprep.subr.mxu0 0.0
    %3952 = vmatpush1.msra.mxu0 %v3930
    %3953 = vmatprep.subr.mxu0 0.0
    %3954 = vmatpush1.msra.mxu0 %v3931
    %3955 = vmatprep.subr.mxu0 0.0
    %3956 = vmatpush1.msra.mxu0 %v3932
    %3957 = vmatprep.subr.mxu0 0.0
    %3958 = vmatpush1.msra.mxu0 %v3933
    %3959 = vmatprep.subr.mxu0 0.0
    %3960 = vmatpush1.msra.mxu0 %v3934
    %3961 = vmatprep.subr.mxu0 0.0
    %3962 = vmatpush1.msra.mxu0 %v3935
    %3963 = vmatprep.subr.mxu0 0.0
    %3964 = vmatpush1.msra.mxu0 %v3936
    %3965 = vmatprep.subr.mxu0 0.0
    %3966 = vmatpush1.msra.mxu0 %v3937
    %3967 = vmatprep.subr.mxu0 0.0
    %3968 = vmatpush1.msra.mxu0 %v3938
    %3969 = vmatprep.subr.mxu0 0.0
    %3970 = vmatpush1.msra.mxu0 %v3939
    %3971 = vmatprep.subr.mxu0 0.0
    %3972 = vmatpush1.msra.mxu0 %v3940
    %3973 = vmatprep.subr.mxu0 0.0
    %3974 = vmatpush1.msra.mxu0 %v3941
    %3975 = vmatprep.subr.mxu0 0.0
    %3976 = vmatpush1.msra.mxu0 %v3942
    %3977 = vmatprep.subr.mxu0 0.0
    %3978 = vmatpush1.msra.mxu0 %v3943
    %3979 = vmatprep.subr.mxu0 0.0
    %3980 = vmatpush1.msra.mxu0 %v3944
    %3981 = vmatprep.subr.mxu0 0.0
    %3982 = vmatpush1.msra.mxu0 0.0
    %3983 = vmatprep.subr.mxu0 0.0
    %3984 = vmatpush1.msra.mxu0 0.0
    %3985 = vmatprep.subr.mxu0 0.0
    %3986 = vmatpush1.msra.mxu0 0.0
    %3987 = vmatprep.subr.mxu0 0.0
    %3988 = vmatpush1.msra.mxu0 0.0
    %3989 = vmatprep.subr.mxu0 0.0
    %3990 = vmatpush1.msra.mxu0 0.0
    %3991 = vmatprep.subr.mxu0 0.0
    %3992 = vmatpush1.msra.mxu0 0.0
    %3993 = vmatprep.subr.mxu0 0.0
    %3994 = vmatpush1.msra.mxu0 0.0
    %3995 = vmatprep.subr.mxu0 0.0
    %3996 = vmatpush1.msra.mxu0 0.0
    %3997 = vmatprep.subr.mxu0 0.0
    %3998 = vmatpush1.msra.mxu0 0.0
    %3999 = vmatprep.subr.mxu0 0.0
    %4000 = vmatpush1.msra.mxu0 0.0
    %4001 = vmatprep.subr.mxu0 0.0
    %4002 = vmatpush1.msra.mxu0 0.0
    %4003 = vmatprep.subr.mxu0 0.0
    %4004 = vmatpush1.msra.mxu0 0.0
    %4005 = vmatprep.subr.mxu0 0.0
    %4006 = vmatpush1.msra.mxu0 0.0
    %4007 = vmatprep.subr.mxu0 0.0
    %4008 = vmatpush1.msra.mxu0 0.0
    %4009 = vmatprep.subr.mxu0 0.0
    %4010 = vmatpush1.msra.mxu0 0.0
    %4011 = vmatprep.subr.mxu0 0.0
    %4012 = vmatpush1.msra.mxu0 0.0
    %4013 = vmatprep.mubr.f32.mxu0 0.0
    %4014 = vmatmul.mubr.f32.gmra.mrb[0].mxu0 %v3926
    %v4015 = vpop.f32.mrb[0].mxu0
    %v4016 = vadd.f32 %v3948, %v4015
    %v4017 = vpop.f32.mrb[0].mxu0
    %4018 = vmatprep.mubr.f32.mxu0 0.0
    %4019 = vmatmul.mubr.f32.gmra.mrb[0].mxu0 %v3927
    %v4020 = vpop.f32.mrb[0].mxu0
    %v4021 = vadd.f32 %v3948, %v4020
    %v4022 = vpop.f32.mrb[0].mxu0
    %4023 = vdwg.mxu0
    %v4024 = vadd.f32 %v4016, %v3832
    %v4025 = vadd.f32 %v4021, %v3833
    %v4026 = vsel %vm39, %v4024, 0.0
    %4027 = vadd.xlane.f32.xlu0 %v4026
    %v4028 = vpop.xlane.xlu0 %4027
    %v4029 = vsel %vm39, %v4025, 0.0
    %4030 = vadd.xlane.f32.xlu0 %v4029
    %v4031 = vpop.xlane.xlu0 %4030
    %v4032 = vmul.f32 %v4028, %v1784
    %v4033 = vmul.f32 %v4031, %v1784
    %v4034 = vsub.f32 %v4024, %v4032
    %v4035 = vsub.f32 %v4025, %v4033
    %v4036 = vmul.f32 %v4034, %v4034
    %v4037 = vmul.f32 %v4035, %v4035
    %v4038 = vsel %vm39, %v4036, 0.0
    %4039 = vadd.xlane.f32.xlu0 %v4038
    %v4040 = vpop.xlane.xlu0 %4039
    %v4041 = vsel %vm39, %v4037, 0.0
    %4042 = vadd.xlane.f32.xlu0 %v4041
    %v4043 = vpop.xlane.xlu0 %4042
    %v4044 = vmul.f32 %v4040, %v1784
    %v4045 = vmul.f32 %v4043, %v1784
    %v4046 = vadd.f32 %v4044, 1e-05
    %v4047 = vadd.f32 %v4045, 1e-05
    %v4048 = vrsqrt.pop %v4046
    %v4049 = vrsqrt.pop %v4047
    %v4050 = vmul.f32 %v4034, %v4048
    %v4051 = vmul.f32 %v4035, %v4049
    %v4052 = vlaneseq
    %v4053 = vshrl.u32 %v4052, 7
    %v4054 = vsub.s32 4, %v4053
    %v4055 = vrot.slane %v2056, %v4054
    %v4056 = vmul.f32 %v4050, %v4055
    %v4057 = vmul.f32 %v4051, %v4055
    %v4058 = vlaneseq
    %v4059 = vshrl.u32 %v4058, 7
    %v4060 = vsub.s32 5, %v4059
    %v4061 = vrot.slane %v2056, %v4060
    %v4062 = vadd.f32 %v4056, %v4061
    %v4063 = vadd.f32 %v4057, %v4061
    %4064 = vst.msk [vmem:[#allocation2] sm:$0xff] %vm39, %v4062
    %4065 = vst.msk [vmem:[#allocation2 + $0x8] sm:$0xff] %vm39, %v4063
    // Predicated region
    $region30: #{tpu_custom_call.1} parent=1 // pred_check
      _
    $region31: #{tpu_custom_call.1} parent=1 // pred_check_branch
      %4067 = sbr.rel (0) target = $region33
    $region32: #{tpu_custom_call.1} parent=1 // pred_region
      %s4069 = ssub.s32 256, 256
      %4070 = vsyncadd [#allocation3], %s4069
      %s4071 = sshll.u32 [#allocation2], 4
      %s4072 = int_to_ptr.vmem [resolvable:$true] %s4071
      %4077 = dma.vmem_to_hbm [thread:$0]  %s4072, 256, %s7, [#allocation3], 128, 128, 8
    $region33: #{tpu_custom_call.1} parent=1 // pred_fallthru
      _
    // Predicated region
    $region34: #{tpu_custom_call.1} parent=1 // pred_check
      _
    $region35: #{tpu_custom_call.1} parent=1 // pred_check_branch
      %4079 = sbr.rel (0) target = $region37
    $region36: #{tpu_custom_call.1} parent=1 // pred_region
      %4080 = dma.done [#allocation3], 256
    $region37: #{tpu_custom_call.1} parent=1 // pred_fallthru
      _
    %4081 = vsyncpa [#allocation3], 1

</llo_original>
